<compile_context>
chip_gen: v6e
topology: v6e:2x2x1
jax: 0.10.0
libtpu: 0.0.40
codegen_flags: <defaults>
</compile_context>

<pallas_src>
import math
import jax
import jax.numpy as jnp
from jax.experimental import pallas as pl
from jax.experimental.pallas import tpu as pltpu


# ----------------------------------------------------------------------------
# Fused 4-layer kernel (one grid step == B batch images packed along lanes).
# ----------------------------------------------------------------------------
def _make_fused_unet_kernel(H, W, B, C1, C2, C3):
    assert H >= 2 and W >= 2
    HW = H * W
    L = B * HW
    # tap t = kh*3+kw  <->  (dh, dw) = (kh-1, kw-1); flattened shift s = dh*W+dw.
    taps = [(kh - 1, kw - 1) for kh in range(3) for kw in range(3)]
    shifts = [dh * W + dw for dh, dw in taps]

    def kernel(x_ref, m_ref, w1_ref, b1_ref, w2_ref, b2_ref,
               w3_ref, b3_ref, w4_ref, b4_ref, o_ref, patch_ref):
        f32 = jnp.float32

        def tap_of(a, t):
            """a: (C, L) activation -> zero-padded spatially shifted copy, tap t."""
            s = shifts[t]
            if s == 0:
                return a                              # center tap: always valid
            # Want tap[:, r] = a[:, r + s]; expressed as a non-negative lane
            # rotation.  Wrapped / cross-image / out-of-image lanes are killed
            # by the precomputed border mask row for this tap.
            rolled = pltpu.roll(a, shift=(-s) % L, axis=1)
            return rolled * m_ref[t:t + 1, :]

        def build_patches(a, c):
            """Write the 9 shifted/masked taps of a (c, L) activation into
            patch_ref rows [0, 9*c): row block t holds tap t."""
            for t in range(9):
                patch_ref[t * c:(t + 1) * c, :] = tap_of(a, t)

        # ---- layer 1: Conv2d(1, 16) + ReLU.  K = 9 is far too small for the
        # MXU, so do it as 9 broadcasted VPU FMAs on the single-channel row.
        x = x_ref[0]                                   # (1, L)
        w1 = w1_ref[...]                               # (C1, 9)
        acc1 = jnp.zeros((C1, L), f32)
        for t in range(9):
            acc1 = acc1 + w1[:, t:t + 1] * tap_of(x, t)
        a1 = jnp.maximum(acc1 + b1_ref[...], 0.0)      # (C1, L)

        # ---- layer 2: Conv2d(16, 32) + ReLU — (C2, 9*C1) @ (9*C1, L) on MXU.
        build_patches(a1, C1)
        a2 = jnp.maximum(
            jnp.dot(w2_ref[...], patch_ref[0:9 * C1, :],
                    preferred_element_type=f32) + b2_ref[...], 0.0)   # (C2, L)

        # ---- layer 3: ConvTranspose2d(32, 16) + ReLU (flipped-kernel conv).
        build_patches(a2, C2)
        a3 = jnp.maximum(
            jnp.dot(w3_ref[...], patch_ref[0:9 * C2, :],
                    preferred_element_type=f32) + b3_ref[...], 0.0)   # (C3, L)

        # ---- layer 4: ConvTranspose2d(16, 1) + Sigmoid.
        build_patches(a3, C3)
        y4 = jnp.dot(w4_ref[...], patch_ref[0:9 * C3, :],
                     preferred_element_type=f32) + b4_ref[...]        # (8, L)
        y4 = y4[0:1, :]                                # rows 1..7 are M padding
        o_ref[0] = (1.0 / (1.0 + jnp.exp(-y4))).astype(o_ref.dtype)   # exact sigmoid

    return kernel


# ----------------------------------------------------------------------------
# Host-side helpers.
# ----------------------------------------------------------------------------
def _pick_imgs_per_step(N, max_imgs=8):
    """Largest divisor of N that is <= max_imgs while keeping >= 2 grid steps
    (so both v7x TensorCores get work) whenever N >= 2."""
    best = 1
    for b in range(1, min(N, max_imgs) + 1):
        if N % b == 0 and (N // b >= 2 or N == 1):
            best = b
    return best


def _border_masks(H, W, B):
    """(9, B*H*W) f32 per-tap validity masks (tap order = kh*3+kw), tiled over
    the B images packed along the lane axis."""
    hw = jnp.arange(H * W, dtype=jnp.int32)
    hh, ww = hw // W, hw % W
    rows = []
    for dh in (-1, 0, 1):
        for dw in (-1, 0, 1):
            valid = ((hh + dh >= 0) & (hh + dh < H) &
                     (ww + dw >= 0) & (ww + dw < W)).astype(jnp.float32)
            rows.append(jnp.tile(valid, B))
    return jnp.stack(rows, axis=0)


def unet_forward(x_nchw, p, max_imgs_per_step=8):
    """NCHW in, NCHW out.  Whole network runs in a single fused Pallas kernel."""
    N, _, H, W = x_nchw.shape
    HW = H * W
    C1 = p["w1"].shape[-1]
    C2 = p["w2"].shape[-1]
    C3 = p["w3"].shape[-1]

    B = _pick_imgs_per_step(N, max_imgs_per_step)   # images packed per grid step
    G = N // B                                      # grid steps
    L = B * HW                                      # lane extent per step

    # Raw single-channel images, B per grid step along the lane axis.
    x_rows = x_nchw.astype(jnp.float32).reshape(G, 1, L)
    masks = _border_masks(H, W, B)                  # (9, L), resident in VMEM

    # Kernel-layout weights: (Cout, 9*Cin) with column index (kh*3+kw)*Cin + ci.
    w1t = p["w1"].reshape(9, C1).T                                   # (C1, 9)
    b1c = p["b1"].reshape(C1, 1)
    w2t = p["w2"].reshape(9 * C1, C2).T                              # (C2, 144)
    b2c = p["b2"].reshape(C2, 1)
    w3t = p["w3"].reshape(9 * C2, C3).T                              # (C3, 288)
    b3c = p["b3"].reshape(C3, 1)
    # Single output channel: pad the matmul M dim to 8 sublanes (row 0 is real).
    w4t = jnp.pad(p["w4"].reshape(9 * C3, 1).T, ((0, 7), (0, 0)))    # (8, 144)
    b4c = jnp.pad(p["b4"].reshape(1, 1), ((0, 7), (0, 0)))           # (8, 1)

    # Explicit VMEM budget: shared patch scratch + live activations + resident
    # masks/weights + double-buffered image/output rows, with headroom.
    # (Default scoped VMEM is only 16 MiB on v5e / 32 MiB on v6e & v7x.)
    f32b = 4
    patch_bytes = 9 * C2 * L * f32b
    act_bytes = (C1 + C2 + C3 + 8) * L * f32b
    io_bytes = (2 * L + 2 * L + 9 * L) * f32b
    w_bytes = 2 * (9 * C1 + 9 * C1 * C2 + 9 * C2 * C3 + 8 * 9 * C3
                   + C1 + C2 + C3 + 8) * f32b
    vmem_limit = 2 * (patch_bytes + act_bytes) + io_bytes + w_bytes + (4 << 20)
    vmem_limit = int(min(max(vmem_limit, 32 << 20), 128 << 20))

    const = lambda n: (0, 0)
    out = pl.pallas_call(
        _make_fused_unet_kernel(H, W, B, C1, C2, C3),
        out_shape=jax.ShapeDtypeStruct((G, 1, L), jnp.float32),
        grid_spec=pltpu.PrefetchScalarGridSpec(
            num_scalar_prefetch=0,
            grid=(G,),
            in_specs=[
                pl.BlockSpec((1, 1, L), lambda n: (n, 0, 0)),   # B packed images
                pl.BlockSpec((9, L), const),                    # border masks (resident)
                pl.BlockSpec((C1, 9), const),
                pl.BlockSpec((C1, 1), const),
                pl.BlockSpec((C2, 9 * C1), const),
                pl.BlockSpec((C2, 1), const),
                pl.BlockSpec((C3, 9 * C2), const),
                pl.BlockSpec((C3, 1), const),
                pl.BlockSpec((8, 9 * C3), const),
                pl.BlockSpec((8, 1), const),
            ],
            out_specs=pl.BlockSpec((1, 1, L), lambda n: (n, 0, 0)),
            scratch_shapes=[pltpu.VMEM((9 * C2, L), jnp.float32)],  # shared patches
        ),
        compiler_params=pltpu.CompilerParams(
            dimension_semantics=("parallel",),   # >= 2 steps -> both v7x TCs busy
            vmem_limit_bytes=vmem_limit),
    )(x_rows, masks, w1t, b1c, w2t, b2c, w3t, b3c, w4t, b4c)

    return out.reshape(N, 1, H, W)


# ----------------------------------------------------------------------------
# Parameter setup (deterministic, PyTorch-shaped, converted to HWIO).
# ----------------------------------------------------------------------------
def _uniform(key, shape, fan_in):
    bound = 1.0 / math.sqrt(fan_in)
    return jax.random.uniform(key, shape, jnp.float32, -bound, bound)


def init_params(key):
    ks = jax.random.split(key, 8)
    # Conv2d weights: (Cout, Cin, 3, 3)
    w1 = _uniform(ks[0], (16, 1, 3, 3), 1 * 9)
    b1 = _uniform(ks[1], (16,), 1 * 9)
    w2 = _uniform(ks[2], (32, 16, 3, 3), 16 * 9)
    b2 = _uniform(ks[3], (32,), 16 * 9)
    # ConvTranspose2d weights: (Cin, Cout, 3, 3)
    w3 = _uniform(ks[4], (32, 16, 3, 3), 32 * 9)
    b3 = _uniform(ks[5], (16,), 32 * 9)
    w4 = _uniform(ks[6], (16, 1, 3, 3), 16 * 9)
    b4 = _uniform(ks[7], (1,), 16 * 9)

    def conv_to_hwio(w):          # (Cout, Cin, kh, kw) -> (kh, kw, Cin, Cout)
        return jnp.transpose(w, (2, 3, 1, 0))

    def convT_to_hwio(w):
        # ConvTranspose2d (stride=1, pad=1) == conv with spatially flipped,
        # channel-transposed kernel: (Cin, Cout, kh, kw) -> (kh, kw, Cin, Cout).
        return jnp.transpose(w, (2, 3, 0, 1))[::-1, ::-1, :, :]

    return {
        "w1": conv_to_hwio(w1), "b1": b1,
        "w2": conv_to_hwio(w2), "b2": b2,
        "w3": convT_to_hwio(w3), "b3": b3,
        "w4": convT_to_hwio(w4), "b4": b4,
    }


# ----------------------------------------------------------------------------
# Pure-JAX reference for the correctness check.
# ----------------------------------------------------------------------------
def _conv_ref(x, w, b):
    y = jax.lax.conv_general_dilated(
        x, w, (1, 1), "SAME",
        dimension_numbers=("NHWC", "HWIO", "NHWC"),
        precision=jax.lax.Precision.HIGHEST)
    return y + b.reshape(1, 1, 1, -1)


def unet_ref(x_nchw, p):
    x = jnp.transpose(x_nchw, (0, 2, 3, 1))
    x = jnp.maximum(_conv_ref(x, p["w1"], p["b1"]), 0.0)
    x = jnp.maximum(_conv_ref(x, p["w2"], p["b2"]), 0.0)
    x = jnp.maximum(_conv_ref(x, p["w3"], p["b3"]), 0.0)
    x = jax.nn.sigmoid(_conv_ref(x, p["w4"], p["b4"]))
    return jnp.transpose(x, (0, 3, 1, 2))


if __name__ == "__main__":
    key = jax.random.PRNGKey(0)
    k_x, k_p = jax.random.split(key)
    # Small NCHW input: 4 images so the kernel packs B=2 images per grid step
    # and still keeps a 2-step "parallel" grid.
    x = jax.random.normal(k_x, (4, 1, 16, 16), jnp.float32)
    params = init_params(k_p)

    out = jax.block_until_ready(jax.jit(unet_forward)(x, params))
    assert out.shape == (4, 1, 16, 16), out.shape

    ref = jax.block_until_ready(jax.jit(unet_ref)(x, params))
    max_err = float(jnp.max(jnp.abs(out - ref)))
    assert max_err < 5e-3, f"max abs error vs reference: {max_err}"

    print("KERNEL_OK")
</pallas_src>

<mosaic_0001>
module attributes {stable_mosaic.version = 11 : i64} {
  func.func @kernel(%arg0: i32, %arg1: memref<1x1x512xf32, #tpu.memory_space<vmem>>, %arg2: memref<9x512xf32, #tpu.memory_space<vmem>>, %arg3: memref<16x9xf32, #tpu.memory_space<vmem>>, %arg4: memref<16x1xf32, #tpu.memory_space<vmem>>, %arg5: memref<32x144xf32, #tpu.memory_space<vmem>>, %arg6: memref<32x1xf32, #tpu.memory_space<vmem>>, %arg7: memref<16x288xf32, #tpu.memory_space<vmem>>, %arg8: memref<16x1xf32, #tpu.memory_space<vmem>>, %arg9: memref<8x144xf32, #tpu.memory_space<vmem>>, %arg10: memref<8x1xf32, #tpu.memory_space<vmem>>, %arg11: memref<1x1x512xf32, #tpu.memory_space<vmem>>, %arg12: memref<288x512xf32, #tpu.memory_space<vmem>>) attributes {dimension_semantics = [#tpu.dimension_semantics<parallel>], iteration_bounds = array<i64: 2>, scalar_prefetch = 0 : i64, scratch_operands = 1 : i64, tpu.core_type = #tpu.core_type<tc>, window_params = [{transform_indices = @transform_0, window_bounds = array<i64: 1, 1, 512>}, {pipeline_mode = #tpu.pipeline_mode<synchronous>, transform_indices = @transform_1, window_bounds = array<i64: 9, 512>}, {pipeline_mode = #tpu.pipeline_mode<synchronous>, transform_indices = @transform_2, window_bounds = array<i64: 16, 9>}, {pipeline_mode = #tpu.pipeline_mode<synchronous>, transform_indices = @transform_3, window_bounds = array<i64: 16, 1>}, {pipeline_mode = #tpu.pipeline_mode<synchronous>, transform_indices = @transform_4, window_bounds = array<i64: 32, 144>}, {pipeline_mode = #tpu.pipeline_mode<synchronous>, transform_indices = @transform_5, window_bounds = array<i64: 32, 1>}, {pipeline_mode = #tpu.pipeline_mode<synchronous>, transform_indices = @transform_6, window_bounds = array<i64: 16, 288>}, {pipeline_mode = #tpu.pipeline_mode<synchronous>, transform_indices = @transform_7, window_bounds = array<i64: 16, 1>}, {pipeline_mode = #tpu.pipeline_mode<synchronous>, transform_indices = @transform_8, window_bounds = array<i64: 8, 144>}, {pipeline_mode = #tpu.pipeline_mode<synchronous>, transform_indices = @transform_9, window_bounds = array<i64: 8, 1>}, {transform_indices = @transform_10, window_bounds = array<i64: 1, 1, 512>}]} {
    %c0 = arith.constant 0 : index
    %c0_0 = arith.constant 0 : index
    %c0_1 = arith.constant 0 : index
    %0 = vector.load %arg1[%c0, %c0_0, %c0_1] : memref<1x1x512xf32, #tpu.memory_space<vmem>>, vector<1x1x512xf32>
    %1 = vector.shape_cast %0 : vector<1x1x512xf32> to vector<1x512xf32>
    %c0_2 = arith.constant 0 : index
    %c0_3 = arith.constant 0 : index
    %2 = vector.load %arg3[%c0_2, %c0_3] : memref<16x9xf32, #tpu.memory_space<vmem>>, vector<16x9xf32>
    %cst = arith.constant 0.000000e+00 : f32
    %3 = vector.broadcast %cst : f32 to vector<16x512xf32>
    %4 = vector.extract_strided_slice %2 {offsets = [0, 0], sizes = [16, 1], strides = [1, 1]} : vector<16x9xf32> to vector<16x1xf32>
    %c17_i32 = arith.constant 17 : i32
    %5 = tpu.dynamic_rotate %1 by %c17_i32 dim 1 : vector<1x512xf32>, i32 -> vector<1x512xf32>
    %c0_4 = arith.constant 0 : index
    %c0_5 = arith.constant 0 : index
    %6 = vector.load %arg2[%c0_4, %c0_5] : memref<9x512xf32, #tpu.memory_space<vmem>>, vector<1x512xf32>
    %7 = arith.mulf %5, %6 : vector<1x512xf32>
    %8 = vector.broadcast %4 : vector<16x1xf32> to vector<16x512xf32>
    %9 = vector.broadcast %7 : vector<1x512xf32> to vector<16x512xf32>
    %10 = arith.mulf %8, %9 : vector<16x512xf32>
    %11 = arith.addf %3, %10 : vector<16x512xf32>
    %12 = vector.extract_strided_slice %2 {offsets = [0, 1], sizes = [16, 1], strides = [1, 1]} : vector<16x9xf32> to vector<16x1xf32>
    %c16_i32 = arith.constant 16 : i32
    %13 = tpu.dynamic_rotate %1 by %c16_i32 dim 1 : vector<1x512xf32>, i32 -> vector<1x512xf32>
    %c1 = arith.constant 1 : index
    %c0_6 = arith.constant 0 : index
    %14 = vector.load %arg2[%c1, %c0_6] : memref<9x512xf32, #tpu.memory_space<vmem>>, vector<1x512xf32>
    %15 = arith.mulf %13, %14 : vector<1x512xf32>
    %16 = vector.broadcast %12 : vector<16x1xf32> to vector<16x512xf32>
    %17 = vector.broadcast %15 : vector<1x512xf32> to vector<16x512xf32>
    %18 = arith.mulf %16, %17 : vector<16x512xf32>
    %19 = arith.addf %11, %18 : vector<16x512xf32>
    %20 = vector.extract_strided_slice %2 {offsets = [0, 2], sizes = [16, 1], strides = [1, 1]} : vector<16x9xf32> to vector<16x1xf32>
    %c15_i32 = arith.constant 15 : i32
    %21 = tpu.dynamic_rotate %1 by %c15_i32 dim 1 : vector<1x512xf32>, i32 -> vector<1x512xf32>
    %c2 = arith.constant 2 : index
    %c0_7 = arith.constant 0 : index
    %22 = vector.load %arg2[%c2, %c0_7] : memref<9x512xf32, #tpu.memory_space<vmem>>, vector<1x512xf32>
    %23 = arith.mulf %21, %22 : vector<1x512xf32>
    %24 = vector.broadcast %20 : vector<16x1xf32> to vector<16x512xf32>
    %25 = vector.broadcast %23 : vector<1x512xf32> to vector<16x512xf32>
    %26 = arith.mulf %24, %25 : vector<16x512xf32>
    %27 = arith.addf %19, %26 : vector<16x512xf32>
    %28 = vector.extract_strided_slice %2 {offsets = [0, 3], sizes = [16, 1], strides = [1, 1]} : vector<16x9xf32> to vector<16x1xf32>
    %c1_i32 = arith.constant 1 : i32
    %29 = tpu.dynamic_rotate %1 by %c1_i32 dim 1 : vector<1x512xf32>, i32 -> vector<1x512xf32>
    %c3 = arith.constant 3 : index
    %c0_8 = arith.constant 0 : index
    %30 = vector.load %arg2[%c3, %c0_8] : memref<9x512xf32, #tpu.memory_space<vmem>>, vector<1x512xf32>
    %31 = arith.mulf %29, %30 : vector<1x512xf32>
    %32 = vector.broadcast %28 : vector<16x1xf32> to vector<16x512xf32>
    %33 = vector.broadcast %31 : vector<1x512xf32> to vector<16x512xf32>
    %34 = arith.mulf %32, %33 : vector<16x512xf32>
    %35 = arith.addf %27, %34 : vector<16x512xf32>
    %36 = vector.extract_strided_slice %2 {offsets = [0, 4], sizes = [16, 1], strides = [1, 1]} : vector<16x9xf32> to vector<16x1xf32>
    %37 = vector.broadcast %36 : vector<16x1xf32> to vector<16x512xf32>
    %38 = vector.broadcast %1 : vector<1x512xf32> to vector<16x512xf32>
    %39 = arith.mulf %37, %38 : vector<16x512xf32>
    %40 = arith.addf %35, %39 : vector<16x512xf32>
    %41 = vector.extract_strided_slice %2 {offsets = [0, 5], sizes = [16, 1], strides = [1, 1]} : vector<16x9xf32> to vector<16x1xf32>
    %c511_i32 = arith.constant 511 : i32
    %42 = tpu.dynamic_rotate %1 by %c511_i32 dim 1 : vector<1x512xf32>, i32 -> vector<1x512xf32>
    %c5 = arith.constant 5 : index
    %c0_9 = arith.constant 0 : index
    %43 = vector.load %arg2[%c5, %c0_9] : memref<9x512xf32, #tpu.memory_space<vmem>>, vector<1x512xf32>
    %44 = arith.mulf %42, %43 : vector<1x512xf32>
    %45 = vector.broadcast %41 : vector<16x1xf32> to vector<16x512xf32>
    %46 = vector.broadcast %44 : vector<1x512xf32> to vector<16x512xf32>
    %47 = arith.mulf %45, %46 : vector<16x512xf32>
    %48 = arith.addf %40, %47 : vector<16x512xf32>
    %49 = vector.extract_strided_slice %2 {offsets = [0, 6], sizes = [16, 1], strides = [1, 1]} : vector<16x9xf32> to vector<16x1xf32>
    %c497_i32 = arith.constant 497 : i32
    %50 = tpu.dynamic_rotate %1 by %c497_i32 dim 1 : vector<1x512xf32>, i32 -> vector<1x512xf32>
    %c6 = arith.constant 6 : index
    %c0_10 = arith.constant 0 : index
    %51 = vector.load %arg2[%c6, %c0_10] : memref<9x512xf32, #tpu.memory_space<vmem>>, vector<1x512xf32>
    %52 = arith.mulf %50, %51 : vector<1x512xf32>
    %53 = vector.broadcast %49 : vector<16x1xf32> to vector<16x512xf32>
    %54 = vector.broadcast %52 : vector<1x512xf32> to vector<16x512xf32>
    %55 = arith.mulf %53, %54 : vector<16x512xf32>
    %56 = arith.addf %48, %55 : vector<16x512xf32>
    %57 = vector.extract_strided_slice %2 {offsets = [0, 7], sizes = [16, 1], strides = [1, 1]} : vector<16x9xf32> to vector<16x1xf32>
    %c496_i32 = arith.constant 496 : i32
    %58 = tpu.dynamic_rotate %1 by %c496_i32 dim 1 : vector<1x512xf32>, i32 -> vector<1x512xf32>
    %c7 = arith.constant 7 : index
    %c0_11 = arith.constant 0 : index
    %59 = vector.load %arg2[%c7, %c0_11] : memref<9x512xf32, #tpu.memory_space<vmem>>, vector<1x512xf32>
    %60 = arith.mulf %58, %59 : vector<1x512xf32>
    %61 = vector.broadcast %57 : vector<16x1xf32> to vector<16x512xf32>
    %62 = vector.broadcast %60 : vector<1x512xf32> to vector<16x512xf32>
    %63 = arith.mulf %61, %62 : vector<16x512xf32>
    %64 = arith.addf %56, %63 : vector<16x512xf32>
    %65 = vector.extract_strided_slice %2 {offsets = [0, 8], sizes = [16, 1], strides = [1, 1]} : vector<16x9xf32> to vector<16x1xf32>
    %c495_i32 = arith.constant 495 : i32
    %66 = tpu.dynamic_rotate %1 by %c495_i32 dim 1 : vector<1x512xf32>, i32 -> vector<1x512xf32>
    %c8 = arith.constant 8 : index
    %c0_12 = arith.constant 0 : index
    %67 = vector.load %arg2[%c8, %c0_12] : memref<9x512xf32, #tpu.memory_space<vmem>>, vector<1x512xf32>
    %68 = arith.mulf %66, %67 : vector<1x512xf32>
    %69 = vector.broadcast %65 : vector<16x1xf32> to vector<16x512xf32>
    %70 = vector.broadcast %68 : vector<1x512xf32> to vector<16x512xf32>
    %71 = arith.mulf %69, %70 : vector<16x512xf32>
    %72 = arith.addf %64, %71 : vector<16x512xf32>
    %c0_13 = arith.constant 0 : index
    %c0_14 = arith.constant 0 : index
    %73 = vector.load %arg4[%c0_13, %c0_14] : memref<16x1xf32, #tpu.memory_space<vmem>>, vector<16x1xf32>
    %74 = vector.broadcast %73 : vector<16x1xf32> to vector<16x512xf32>
    %75 = arith.addf %72, %74 : vector<16x512xf32>
    %cst_15 = arith.constant 0.000000e+00 : f32
    %76 = vector.broadcast %cst_15 : f32 to vector<16x512xf32>
    %77 = arith.maximumf %75, %76 : vector<16x512xf32>
    %c17_i32_16 = arith.constant 17 : i32
    %78 = tpu.dynamic_rotate %77 by %c17_i32_16 dim 1 : vector<16x512xf32>, i32 -> vector<16x512xf32>
    %c0_17 = arith.constant 0 : index
    %c0_18 = arith.constant 0 : index
    %79 = vector.load %arg2[%c0_17, %c0_18] : memref<9x512xf32, #tpu.memory_space<vmem>>, vector<1x512xf32>
    %80 = vector.broadcast %79 : vector<1x512xf32> to vector<16x512xf32>
    %81 = arith.mulf %78, %80 : vector<16x512xf32>
    %c0_19 = arith.constant 0 : index
    %c0_20 = arith.constant 0 : index
    %82 = vector.load %arg12[%c0_19, %c0_20] : memref<288x512xf32, #tpu.memory_space<vmem>>, vector<16x512xf32>
    tpu.vector_store %arg12[%c0_19, %c0_20], %81 {strides = array<i32>} : memref<288x512xf32, #tpu.memory_space<vmem>>, vector<16x512xf32>,
    %c16_i32_21 = arith.constant 16 : i32
    %83 = tpu.dynamic_rotate %77 by %c16_i32_21 dim 1 : vector<16x512xf32>, i32 -> vector<16x512xf32>
    %c1_22 = arith.constant 1 : index
    %c0_23 = arith.constant 0 : index
    %84 = vector.load %arg2[%c1_22, %c0_23] : memref<9x512xf32, #tpu.memory_space<vmem>>, vector<1x512xf32>
    %85 = vector.broadcast %84 : vector<1x512xf32> to vector<16x512xf32>
    %86 = arith.mulf %83, %85 : vector<16x512xf32>
    %c16 = arith.constant 16 : index
    %c0_24 = arith.constant 0 : index
    %87 = vector.load %arg12[%c16, %c0_24] : memref<288x512xf32, #tpu.memory_space<vmem>>, vector<16x512xf32>
    tpu.vector_store %arg12[%c16, %c0_24], %86 {strides = array<i32>} : memref<288x512xf32, #tpu.memory_space<vmem>>, vector<16x512xf32>,
    %c15_i32_25 = arith.constant 15 : i32
    %88 = tpu.dynamic_rotate %77 by %c15_i32_25 dim 1 : vector<16x512xf32>, i32 -> vector<16x512xf32>
    %c2_26 = arith.constant 2 : index
    %c0_27 = arith.constant 0 : index
    %89 = vector.load %arg2[%c2_26, %c0_27] : memref<9x512xf32, #tpu.memory_space<vmem>>, vector<1x512xf32>
    %90 = vector.broadcast %89 : vector<1x512xf32> to vector<16x512xf32>
    %91 = arith.mulf %88, %90 : vector<16x512xf32>
    %c32 = arith.constant 32 : index
    %c0_28 = arith.constant 0 : index
    %92 = vector.load %arg12[%c32, %c0_28] : memref<288x512xf32, #tpu.memory_space<vmem>>, vector<16x512xf32>
    tpu.vector_store %arg12[%c32, %c0_28], %91 {strides = array<i32>} : memref<288x512xf32, #tpu.memory_space<vmem>>, vector<16x512xf32>,
    %c1_i32_29 = arith.constant 1 : i32
    %93 = tpu.dynamic_rotate %77 by %c1_i32_29 dim 1 : vector<16x512xf32>, i32 -> vector<16x512xf32>
    %c3_30 = arith.constant 3 : index
    %c0_31 = arith.constant 0 : index
    %94 = vector.load %arg2[%c3_30, %c0_31] : memref<9x512xf32, #tpu.memory_space<vmem>>, vector<1x512xf32>
    %95 = vector.broadcast %94 : vector<1x512xf32> to vector<16x512xf32>
    %96 = arith.mulf %93, %95 : vector<16x512xf32>
    %c48 = arith.constant 48 : index
    %c0_32 = arith.constant 0 : index
    %97 = vector.load %arg12[%c48, %c0_32] : memref<288x512xf32, #tpu.memory_space<vmem>>, vector<16x512xf32>
    tpu.vector_store %arg12[%c48, %c0_32], %96 {strides = array<i32>} : memref<288x512xf32, #tpu.memory_space<vmem>>, vector<16x512xf32>,
    %c64 = arith.constant 64 : index
    %c0_33 = arith.constant 0 : index
    %98 = vector.load %arg12[%c64, %c0_33] : memref<288x512xf32, #tpu.memory_space<vmem>>, vector<16x512xf32>
    tpu.vector_store %arg12[%c64, %c0_33], %77 {strides = array<i32>} : memref<288x512xf32, #tpu.memory_space<vmem>>, vector<16x512xf32>,
    %c511_i32_34 = arith.constant 511 : i32
    %99 = tpu.dynamic_rotate %77 by %c511_i32_34 dim 1 : vector<16x512xf32>, i32 -> vector<16x512xf32>
    %c5_35 = arith.constant 5 : index
    %c0_36 = arith.constant 0 : index
    %100 = vector.load %arg2[%c5_35, %c0_36] : memref<9x512xf32, #tpu.memory_space<vmem>>, vector<1x512xf32>
    %101 = vector.broadcast %100 : vector<1x512xf32> to vector<16x512xf32>
    %102 = arith.mulf %99, %101 : vector<16x512xf32>
    %c80 = arith.constant 80 : index
    %c0_37 = arith.constant 0 : index
    %103 = vector.load %arg12[%c80, %c0_37] : memref<288x512xf32, #tpu.memory_space<vmem>>, vector<16x512xf32>
    tpu.vector_store %arg12[%c80, %c0_37], %102 {strides = array<i32>} : memref<288x512xf32, #tpu.memory_space<vmem>>, vector<16x512xf32>,
    %c497_i32_38 = arith.constant 497 : i32
    %104 = tpu.dynamic_rotate %77 by %c497_i32_38 dim 1 : vector<16x512xf32>, i32 -> vector<16x512xf32>
    %c6_39 = arith.constant 6 : index
    %c0_40 = arith.constant 0 : index
    %105 = vector.load %arg2[%c6_39, %c0_40] : memref<9x512xf32, #tpu.memory_space<vmem>>, vector<1x512xf32>
    %106 = vector.broadcast %105 : vector<1x512xf32> to vector<16x512xf32>
    %107 = arith.mulf %104, %106 : vector<16x512xf32>
    %c96 = arith.constant 96 : index
    %c0_41 = arith.constant 0 : index
    %108 = vector.load %arg12[%c96, %c0_41] : memref<288x512xf32, #tpu.memory_space<vmem>>, vector<16x512xf32>
    tpu.vector_store %arg12[%c96, %c0_41], %107 {strides = array<i32>} : memref<288x512xf32, #tpu.memory_space<vmem>>, vector<16x512xf32>,
    %c496_i32_42 = arith.constant 496 : i32
    %109 = tpu.dynamic_rotate %77 by %c496_i32_42 dim 1 : vector<16x512xf32>, i32 -> vector<16x512xf32>
    %c7_43 = arith.constant 7 : index
    %c0_44 = arith.constant 0 : index
    %110 = vector.load %arg2[%c7_43, %c0_44] : memref<9x512xf32, #tpu.memory_space<vmem>>, vector<1x512xf32>
    %111 = vector.broadcast %110 : vector<1x512xf32> to vector<16x512xf32>
    %112 = arith.mulf %109, %111 : vector<16x512xf32>
    %c112 = arith.constant 112 : index
    %c0_45 = arith.constant 0 : index
    %113 = vector.load %arg12[%c112, %c0_45] : memref<288x512xf32, #tpu.memory_space<vmem>>, vector<16x512xf32>
    tpu.vector_store %arg12[%c112, %c0_45], %112 {strides = array<i32>} : memref<288x512xf32, #tpu.memory_space<vmem>>, vector<16x512xf32>,
    %c495_i32_46 = arith.constant 495 : i32
    %114 = tpu.dynamic_rotate %77 by %c495_i32_46 dim 1 : vector<16x512xf32>, i32 -> vector<16x512xf32>
    %c8_47 = arith.constant 8 : index
    %c0_48 = arith.constant 0 : index
    %115 = vector.load %arg2[%c8_47, %c0_48] : memref<9x512xf32, #tpu.memory_space<vmem>>, vector<1x512xf32>
    %116 = vector.broadcast %115 : vector<1x512xf32> to vector<16x512xf32>
    %117 = arith.mulf %114, %116 : vector<16x512xf32>
    %c128 = arith.constant 128 : index
    %c0_49 = arith.constant 0 : index
    %118 = vector.load %arg12[%c128, %c0_49] : memref<288x512xf32, #tpu.memory_space<vmem>>, vector<16x512xf32>
    tpu.vector_store %arg12[%c128, %c0_49], %117 {strides = array<i32>} : memref<288x512xf32, #tpu.memory_space<vmem>>, vector<16x512xf32>,
    %c0_50 = arith.constant 0 : index
    %c0_51 = arith.constant 0 : index
    %119 = vector.load %arg5[%c0_50, %c0_51] : memref<32x144xf32, #tpu.memory_space<vmem>>, vector<32x144xf32>
    %c0_52 = arith.constant 0 : index
    %c0_53 = arith.constant 0 : index
    %120 = vector.load %arg12[%c0_52, %c0_53] : memref<288x512xf32, #tpu.memory_space<vmem>>, vector<144x512xf32>
    %cst_54 = arith.constant dense<0.000000e+00> : vector<32x512xf32>
    %121 = tpu.matmul %119, %120, %cst_54 {dimension_numbers = #tpu.dot_dimension_numbers<[1], [0], [0], [1], [0, 0, 1, 1], [], []>} : vector<32x144xf32>, vector<144x512xf32>, vector<32x512xf32> -> vector<32x512xf32>
    %c0_55 = arith.constant 0 : index
    %c0_56 = arith.constant 0 : index
    %122 = vector.load %arg6[%c0_55, %c0_56] : memref<32x1xf32, #tpu.memory_space<vmem>>, vector<32x1xf32>
    %123 = vector.broadcast %122 : vector<32x1xf32> to vector<32x512xf32>
    %124 = arith.addf %121, %123 : vector<32x512xf32>
    %cst_57 = arith.constant 0.000000e+00 : f32
    %125 = vector.broadcast %cst_57 : f32 to vector<32x512xf32>
    %126 = arith.maximumf %124, %125 : vector<32x512xf32>
    %c17_i32_58 = arith.constant 17 : i32
    %127 = tpu.dynamic_rotate %126 by %c17_i32_58 dim 1 : vector<32x512xf32>, i32 -> vector<32x512xf32>
    %c0_59 = arith.constant 0 : index
    %c0_60 = arith.constant 0 : index
    %128 = vector.load %arg2[%c0_59, %c0_60] : memref<9x512xf32, #tpu.memory_space<vmem>>, vector<1x512xf32>
    %129 = vector.broadcast %128 : vector<1x512xf32> to vector<32x512xf32>
    %130 = arith.mulf %127, %129 : vector<32x512xf32>
    %c0_61 = arith.constant 0 : index
    %c0_62 = arith.constant 0 : index
    %131 = vector.load %arg12[%c0_61, %c0_62] : memref<288x512xf32, #tpu.memory_space<vmem>>, vector<32x512xf32>
    tpu.vector_store %arg12[%c0_61, %c0_62], %130 {strides = array<i32>} : memref<288x512xf32, #tpu.memory_space<vmem>>, vector<32x512xf32>,
    %c16_i32_63 = arith.constant 16 : i32
    %132 = tpu.dynamic_rotate %126 by %c16_i32_63 dim 1 : vector<32x512xf32>, i32 -> vector<32x512xf32>
    %c1_64 = arith.constant 1 : index
    %c0_65 = arith.constant 0 : index
    %133 = vector.load %arg2[%c1_64, %c0_65] : memref<9x512xf32, #tpu.memory_space<vmem>>, vector<1x512xf32>
    %134 = vector.broadcast %133 : vector<1x512xf32> to vector<32x512xf32>
    %135 = arith.mulf %132, %134 : vector<32x512xf32>
    %c32_66 = arith.constant 32 : index
    %c0_67 = arith.constant 0 : index
    %136 = vector.load %arg12[%c32_66, %c0_67] : memref<288x512xf32, #tpu.memory_space<vmem>>, vector<32x512xf32>
    tpu.vector_store %arg12[%c32_66, %c0_67], %135 {strides = array<i32>} : memref<288x512xf32, #tpu.memory_space<vmem>>, vector<32x512xf32>,
    %c15_i32_68 = arith.constant 15 : i32
    %137 = tpu.dynamic_rotate %126 by %c15_i32_68 dim 1 : vector<32x512xf32>, i32 -> vector<32x512xf32>
    %c2_69 = arith.constant 2 : index
    %c0_70 = arith.constant 0 : index
    %138 = vector.load %arg2[%c2_69, %c0_70] : memref<9x512xf32, #tpu.memory_space<vmem>>, vector<1x512xf32>
    %139 = vector.broadcast %138 : vector<1x512xf32> to vector<32x512xf32>
    %140 = arith.mulf %137, %139 : vector<32x512xf32>
    %c64_71 = arith.constant 64 : index
    %c0_72 = arith.constant 0 : index
    %141 = vector.load %arg12[%c64_71, %c0_72] : memref<288x512xf32, #tpu.memory_space<vmem>>, vector<32x512xf32>
    tpu.vector_store %arg12[%c64_71, %c0_72], %140 {strides = array<i32>} : memref<288x512xf32, #tpu.memory_space<vmem>>, vector<32x512xf32>,
    %c1_i32_73 = arith.constant 1 : i32
    %142 = tpu.dynamic_rotate %126 by %c1_i32_73 dim 1 : vector<32x512xf32>, i32 -> vector<32x512xf32>
    %c3_74 = arith.constant 3 : index
    %c0_75 = arith.constant 0 : index
    %143 = vector.load %arg2[%c3_74, %c0_75] : memref<9x512xf32, #tpu.memory_space<vmem>>, vector<1x512xf32>
    %144 = vector.broadcast %143 : vector<1x512xf32> to vector<32x512xf32>
    %145 = arith.mulf %142, %144 : vector<32x512xf32>
    %c96_76 = arith.constant 96 : index
    %c0_77 = arith.constant 0 : index
    %146 = vector.load %arg12[%c96_76, %c0_77] : memref<288x512xf32, #tpu.memory_space<vmem>>, vector<32x512xf32>
    tpu.vector_store %arg12[%c96_76, %c0_77], %145 {strides = array<i32>} : memref<288x512xf32, #tpu.memory_space<vmem>>, vector<32x512xf32>,
    %c128_78 = arith.constant 128 : index
    %c0_79 = arith.constant 0 : index
    %147 = vector.load %arg12[%c128_78, %c0_79] : memref<288x512xf32, #tpu.memory_space<vmem>>, vector<32x512xf32>
    tpu.vector_store %arg12[%c128_78, %c0_79], %126 {strides = array<i32>} : memref<288x512xf32, #tpu.memory_space<vmem>>, vector<32x512xf32>,
    %c511_i32_80 = arith.constant 511 : i32
    %148 = tpu.dynamic_rotate %126 by %c511_i32_80 dim 1 : vector<32x512xf32>, i32 -> vector<32x512xf32>
    %c5_81 = arith.constant 5 : index
    %c0_82 = arith.constant 0 : index
    %149 = vector.load %arg2[%c5_81, %c0_82] : memref<9x512xf32, #tpu.memory_space<vmem>>, vector<1x512xf32>
    %150 = vector.broadcast %149 : vector<1x512xf32> to vector<32x512xf32>
    %151 = arith.mulf %148, %150 : vector<32x512xf32>
    %c160 = arith.constant 160 : index
    %c0_83 = arith.constant 0 : index
    %152 = vector.load %arg12[%c160, %c0_83] : memref<288x512xf32, #tpu.memory_space<vmem>>, vector<32x512xf32>
    tpu.vector_store %arg12[%c160, %c0_83], %151 {strides = array<i32>} : memref<288x512xf32, #tpu.memory_space<vmem>>, vector<32x512xf32>,
    %c497_i32_84 = arith.constant 497 : i32
    %153 = tpu.dynamic_rotate %126 by %c497_i32_84 dim 1 : vector<32x512xf32>, i32 -> vector<32x512xf32>
    %c6_85 = arith.constant 6 : index
    %c0_86 = arith.constant 0 : index
    %154 = vector.load %arg2[%c6_85, %c0_86] : memref<9x512xf32, #tpu.memory_space<vmem>>, vector<1x512xf32>
    %155 = vector.broadcast %154 : vector<1x512xf32> to vector<32x512xf32>
    %156 = arith.mulf %153, %155 : vector<32x512xf32>
    %c192 = arith.constant 192 : index
    %c0_87 = arith.constant 0 : index
    %157 = vector.load %arg12[%c192, %c0_87] : memref<288x512xf32, #tpu.memory_space<vmem>>, vector<32x512xf32>
    tpu.vector_store %arg12[%c192, %c0_87], %156 {strides = array<i32>} : memref<288x512xf32, #tpu.memory_space<vmem>>, vector<32x512xf32>,
    %c496_i32_88 = arith.constant 496 : i32
    %158 = tpu.dynamic_rotate %126 by %c496_i32_88 dim 1 : vector<32x512xf32>, i32 -> vector<32x512xf32>
    %c7_89 = arith.constant 7 : index
    %c0_90 = arith.constant 0 : index
    %159 = vector.load %arg2[%c7_89, %c0_90] : memref<9x512xf32, #tpu.memory_space<vmem>>, vector<1x512xf32>
    %160 = vector.broadcast %159 : vector<1x512xf32> to vector<32x512xf32>
    %161 = arith.mulf %158, %160 : vector<32x512xf32>
    %c224 = arith.constant 224 : index
    %c0_91 = arith.constant 0 : index
    %162 = vector.load %arg12[%c224, %c0_91] : memref<288x512xf32, #tpu.memory_space<vmem>>, vector<32x512xf32>
    tpu.vector_store %arg12[%c224, %c0_91], %161 {strides = array<i32>} : memref<288x512xf32, #tpu.memory_space<vmem>>, vector<32x512xf32>,
    %c495_i32_92 = arith.constant 495 : i32
    %163 = tpu.dynamic_rotate %126 by %c495_i32_92 dim 1 : vector<32x512xf32>, i32 -> vector<32x512xf32>
    %c8_93 = arith.constant 8 : index
    %c0_94 = arith.constant 0 : index
    %164 = vector.load %arg2[%c8_93, %c0_94] : memref<9x512xf32, #tpu.memory_space<vmem>>, vector<1x512xf32>
    %165 = vector.broadcast %164 : vector<1x512xf32> to vector<32x512xf32>
    %166 = arith.mulf %163, %165 : vector<32x512xf32>
    %c256 = arith.constant 256 : index
    %c0_95 = arith.constant 0 : index
    %167 = vector.load %arg12[%c256, %c0_95] : memref<288x512xf32, #tpu.memory_space<vmem>>, vector<32x512xf32>
    tpu.vector_store %arg12[%c256, %c0_95], %166 {strides = array<i32>} : memref<288x512xf32, #tpu.memory_space<vmem>>, vector<32x512xf32>,
    %c0_96 = arith.constant 0 : index
    %c0_97 = arith.constant 0 : index
    %168 = vector.load %arg7[%c0_96, %c0_97] : memref<16x288xf32, #tpu.memory_space<vmem>>, vector<16x288xf32>
    %c0_98 = arith.constant 0 : index
    %c0_99 = arith.constant 0 : index
    %169 = vector.load %arg12[%c0_98, %c0_99] : memref<288x512xf32, #tpu.memory_space<vmem>>, vector<288x512xf32>
    %cst_100 = arith.constant dense<0.000000e+00> : vector<16x512xf32>
    %170 = tpu.matmul %168, %169, %cst_100 {dimension_numbers = #tpu.dot_dimension_numbers<[1], [0], [0], [1], [0, 0, 1, 1], [], []>} : vector<16x288xf32>, vector<288x512xf32>, vector<16x512xf32> -> vector<16x512xf32>
    %c0_101 = arith.constant 0 : index
    %c0_102 = arith.constant 0 : index
    %171 = vector.load %arg8[%c0_101, %c0_102] : memref<16x1xf32, #tpu.memory_space<vmem>>, vector<16x1xf32>
    %172 = vector.broadcast %171 : vector<16x1xf32> to vector<16x512xf32>
    %173 = arith.addf %170, %172 : vector<16x512xf32>
    %cst_103 = arith.constant 0.000000e+00 : f32
    %174 = vector.broadcast %cst_103 : f32 to vector<16x512xf32>
    %175 = arith.maximumf %173, %174 : vector<16x512xf32>
    %c17_i32_104 = arith.constant 17 : i32
    %176 = tpu.dynamic_rotate %175 by %c17_i32_104 dim 1 : vector<16x512xf32>, i32 -> vector<16x512xf32>
    %c0_105 = arith.constant 0 : index
    %c0_106 = arith.constant 0 : index
    %177 = vector.load %arg2[%c0_105, %c0_106] : memref<9x512xf32, #tpu.memory_space<vmem>>, vector<1x512xf32>
    %178 = vector.broadcast %177 : vector<1x512xf32> to vector<16x512xf32>
    %179 = arith.mulf %176, %178 : vector<16x512xf32>
    %c0_107 = arith.constant 0 : index
    %c0_108 = arith.constant 0 : index
    %180 = vector.load %arg12[%c0_107, %c0_108] : memref<288x512xf32, #tpu.memory_space<vmem>>, vector<16x512xf32>
    tpu.vector_store %arg12[%c0_107, %c0_108], %179 {strides = array<i32>} : memref<288x512xf32, #tpu.memory_space<vmem>>, vector<16x512xf32>,
    %c16_i32_109 = arith.constant 16 : i32
    %181 = tpu.dynamic_rotate %175 by %c16_i32_109 dim 1 : vector<16x512xf32>, i32 -> vector<16x512xf32>
    %c1_110 = arith.constant 1 : index
    %c0_111 = arith.constant 0 : index
    %182 = vector.load %arg2[%c1_110, %c0_111] : memref<9x512xf32, #tpu.memory_space<vmem>>, vector<1x512xf32>
    %183 = vector.broadcast %182 : vector<1x512xf32> to vector<16x512xf32>
    %184 = arith.mulf %181, %183 : vector<16x512xf32>
    %c16_112 = arith.constant 16 : index
    %c0_113 = arith.constant 0 : index
    %185 = vector.load %arg12[%c16_112, %c0_113] : memref<288x512xf32, #tpu.memory_space<vmem>>, vector<16x512xf32>
    tpu.vector_store %arg12[%c16_112, %c0_113], %184 {strides = array<i32>} : memref<288x512xf32, #tpu.memory_space<vmem>>, vector<16x512xf32>,
    %c15_i32_114 = arith.constant 15 : i32
    %186 = tpu.dynamic_rotate %175 by %c15_i32_114 dim 1 : vector<16x512xf32>, i32 -> vector<16x512xf32>
    %c2_115 = arith.constant 2 : index
    %c0_116 = arith.constant 0 : index
    %187 = vector.load %arg2[%c2_115, %c0_116] : memref<9x512xf32, #tpu.memory_space<vmem>>, vector<1x512xf32>
    %188 = vector.broadcast %187 : vector<1x512xf32> to vector<16x512xf32>
    %189 = arith.mulf %186, %188 : vector<16x512xf32>
    %c32_117 = arith.constant 32 : index
    %c0_118 = arith.constant 0 : index
    %190 = vector.load %arg12[%c32_117, %c0_118] : memref<288x512xf32, #tpu.memory_space<vmem>>, vector<16x512xf32>
    tpu.vector_store %arg12[%c32_117, %c0_118], %189 {strides = array<i32>} : memref<288x512xf32, #tpu.memory_space<vmem>>, vector<16x512xf32>,
    %c1_i32_119 = arith.constant 1 : i32
    %191 = tpu.dynamic_rotate %175 by %c1_i32_119 dim 1 : vector<16x512xf32>, i32 -> vector<16x512xf32>
    %c3_120 = arith.constant 3 : index
    %c0_121 = arith.constant 0 : index
    %192 = vector.load %arg2[%c3_120, %c0_121] : memref<9x512xf32, #tpu.memory_space<vmem>>, vector<1x512xf32>
    %193 = vector.broadcast %192 : vector<1x512xf32> to vector<16x512xf32>
    %194 = arith.mulf %191, %193 : vector<16x512xf32>
    %c48_122 = arith.constant 48 : index
    %c0_123 = arith.constant 0 : index
    %195 = vector.load %arg12[%c48_122, %c0_123] : memref<288x512xf32, #tpu.memory_space<vmem>>, vector<16x512xf32>
    tpu.vector_store %arg12[%c48_122, %c0_123], %194 {strides = array<i32>} : memref<288x512xf32, #tpu.memory_space<vmem>>, vector<16x512xf32>,
    %c64_124 = arith.constant 64 : index
    %c0_125 = arith.constant 0 : index
    %196 = vector.load %arg12[%c64_124, %c0_125] : memref<288x512xf32, #tpu.memory_space<vmem>>, vector<16x512xf32>
    tpu.vector_store %arg12[%c64_124, %c0_125], %175 {strides = array<i32>} : memref<288x512xf32, #tpu.memory_space<vmem>>, vector<16x512xf32>,
    %c511_i32_126 = arith.constant 511 : i32
    %197 = tpu.dynamic_rotate %175 by %c511_i32_126 dim 1 : vector<16x512xf32>, i32 -> vector<16x512xf32>
    %c5_127 = arith.constant 5 : index
    %c0_128 = arith.constant 0 : index
    %198 = vector.load %arg2[%c5_127, %c0_128] : memref<9x512xf32, #tpu.memory_space<vmem>>, vector<1x512xf32>
    %199 = vector.broadcast %198 : vector<1x512xf32> to vector<16x512xf32>
    %200 = arith.mulf %197, %199 : vector<16x512xf32>
    %c80_129 = arith.constant 80 : index
    %c0_130 = arith.constant 0 : index
    %201 = vector.load %arg12[%c80_129, %c0_130] : memref<288x512xf32, #tpu.memory_space<vmem>>, vector<16x512xf32>
    tpu.vector_store %arg12[%c80_129, %c0_130], %200 {strides = array<i32>} : memref<288x512xf32, #tpu.memory_space<vmem>>, vector<16x512xf32>,
    %c497_i32_131 = arith.constant 497 : i32
    %202 = tpu.dynamic_rotate %175 by %c497_i32_131 dim 1 : vector<16x512xf32>, i32 -> vector<16x512xf32>
    %c6_132 = arith.constant 6 : index
    %c0_133 = arith.constant 0 : index
    %203 = vector.load %arg2[%c6_132, %c0_133] : memref<9x512xf32, #tpu.memory_space<vmem>>, vector<1x512xf32>
    %204 = vector.broadcast %203 : vector<1x512xf32> to vector<16x512xf32>
    %205 = arith.mulf %202, %204 : vector<16x512xf32>
    %c96_134 = arith.constant 96 : index
    %c0_135 = arith.constant 0 : index
    %206 = vector.load %arg12[%c96_134, %c0_135] : memref<288x512xf32, #tpu.memory_space<vmem>>, vector<16x512xf32>
    tpu.vector_store %arg12[%c96_134, %c0_135], %205 {strides = array<i32>} : memref<288x512xf32, #tpu.memory_space<vmem>>, vector<16x512xf32>,
    %c496_i32_136 = arith.constant 496 : i32
    %207 = tpu.dynamic_rotate %175 by %c496_i32_136 dim 1 : vector<16x512xf32>, i32 -> vector<16x512xf32>
    %c7_137 = arith.constant 7 : index
    %c0_138 = arith.constant 0 : index
    %208 = vector.load %arg2[%c7_137, %c0_138] : memref<9x512xf32, #tpu.memory_space<vmem>>, vector<1x512xf32>
    %209 = vector.broadcast %208 : vector<1x512xf32> to vector<16x512xf32>
    %210 = arith.mulf %207, %209 : vector<16x512xf32>
    %c112_139 = arith.constant 112 : index
    %c0_140 = arith.constant 0 : index
    %211 = vector.load %arg12[%c112_139, %c0_140] : memref<288x512xf32, #tpu.memory_space<vmem>>, vector<16x512xf32>
    tpu.vector_store %arg12[%c112_139, %c0_140], %210 {strides = array<i32>} : memref<288x512xf32, #tpu.memory_space<vmem>>, vector<16x512xf32>,
    %c495_i32_141 = arith.constant 495 : i32
    %212 = tpu.dynamic_rotate %175 by %c495_i32_141 dim 1 : vector<16x512xf32>, i32 -> vector<16x512xf32>
    %c8_142 = arith.constant 8 : index
    %c0_143 = arith.constant 0 : index
    %213 = vector.load %arg2[%c8_142, %c0_143] : memref<9x512xf32, #tpu.memory_space<vmem>>, vector<1x512xf32>
    %214 = vector.broadcast %213 : vector<1x512xf32> to vector<16x512xf32>
    %215 = arith.mulf %212, %214 : vector<16x512xf32>
    %c128_144 = arith.constant 128 : index
    %c0_145 = arith.constant 0 : index
    %216 = vector.load %arg12[%c128_144, %c0_145] : memref<288x512xf32, #tpu.memory_space<vmem>>, vector<16x512xf32>
    tpu.vector_store %arg12[%c128_144, %c0_145], %215 {strides = array<i32>} : memref<288x512xf32, #tpu.memory_space<vmem>>, vector<16x512xf32>,
    %c0_146 = arith.constant 0 : index
    %c0_147 = arith.constant 0 : index
    %217 = vector.load %arg9[%c0_146, %c0_147] : memref<8x144xf32, #tpu.memory_space<vmem>>, vector<8x144xf32>
    %c0_148 = arith.constant 0 : index
    %c0_149 = arith.constant 0 : index
    %218 = vector.load %arg12[%c0_148, %c0_149] : memref<288x512xf32, #tpu.memory_space<vmem>>, vector<144x512xf32>
    %cst_150 = arith.constant dense<0.000000e+00> : vector<8x512xf32>
    %219 = tpu.matmul %217, %218, %cst_150 {dimension_numbers = #tpu.dot_dimension_numbers<[1], [0], [0], [1], [0, 0, 1, 1], [], []>} : vector<8x144xf32>, vector<144x512xf32>, vector<8x512xf32> -> vector<8x512xf32>
    %c0_151 = arith.constant 0 : index
    %c0_152 = arith.constant 0 : index
    %220 = vector.load %arg10[%c0_151, %c0_152] : memref<8x1xf32, #tpu.memory_space<vmem>>, vector<8x1xf32>
    %221 = vector.broadcast %220 : vector<8x1xf32> to vector<8x512xf32>
    %222 = arith.addf %219, %221 : vector<8x512xf32>
    %223 = vector.extract_strided_slice %222 {offsets = [0, 0], sizes = [1, 512], strides = [1, 1]} : vector<8x512xf32> to vector<1x512xf32>
    %cst_153 = arith.constant 0.000000e+00 : f32
    %224 = vector.broadcast %cst_153 : f32 to vector<1x512xf32>
    %225 = arith.subf %224, %223 : vector<1x512xf32>
    %226 = math.exp %225 : vector<1x512xf32>
    %cst_154 = arith.constant 1.000000e+00 : f32
    %227 = vector.broadcast %cst_154 : f32 to vector<1x512xf32>
    %228 = arith.addf %227, %226 : vector<1x512xf32>
    %cst_155 = arith.constant 1.000000e+00 : f32
    %229 = vector.broadcast %cst_155 : f32 to vector<1x512xf32>
    %230 = arith.divf %229, %228 : vector<1x512xf32>
    %c0_156 = arith.constant 0 : index
    %c0_157 = arith.constant 0 : index
    %c0_158 = arith.constant 0 : index
    %231 = vector.load %arg11[%c0_156, %c0_157, %c0_158] : memref<1x1x512xf32, #tpu.memory_space<vmem>>, vector<1x1x512xf32>
    %232 = vector.shape_cast %231 : vector<1x1x512xf32> to vector<1x512xf32>
    %233 = vector.shape_cast %230 : vector<1x512xf32> to vector<1x1x512xf32>
    tpu.vector_store %arg11[%c0_156, %c0_157, %c0_158], %233 {strides = array<i32>} : memref<1x1x512xf32, #tpu.memory_space<vmem>>, vector<1x1x512xf32>,
    return
  }
  func.func @transform_0(%arg0: i32) -> (i32, i32, i32) {
    %c0_i32 = arith.constant 0 : i32
    %c0_i32_0 = arith.constant 0 : i32
    %c0_i32_1 = arith.constant 0 : i32
    return %arg0, %c0_i32, %c0_i32_0 : i32, i32, i32
  }
  func.func @transform_1(%arg0: i32) -> (i32, i32) {
    %c0_i32 = arith.constant 0 : i32
    %c0_i32_0 = arith.constant 0 : i32
    %c0_i32_1 = arith.constant 0 : i32
    return %c0_i32, %c0_i32_0 : i32, i32
  }
  func.func @transform_2(%arg0: i32) -> (i32, i32) {
    %c0_i32 = arith.constant 0 : i32
    %c0_i32_0 = arith.constant 0 : i32
    %c0_i32_1 = arith.constant 0 : i32
    return %c0_i32, %c0_i32_0 : i32, i32
  }
  func.func @transform_3(%arg0: i32) -> (i32, i32) {
    %c0_i32 = arith.constant 0 : i32
    %c0_i32_0 = arith.constant 0 : i32
    %c0_i32_1 = arith.constant 0 : i32
    return %c0_i32, %c0_i32_0 : i32, i32
  }
  func.func @transform_4(%arg0: i32) -> (i32, i32) {
    %c0_i32 = arith.constant 0 : i32
    %c0_i32_0 = arith.constant 0 : i32
    %c0_i32_1 = arith.constant 0 : i32
    return %c0_i32, %c0_i32_0 : i32, i32
  }
  func.func @transform_5(%arg0: i32) -> (i32, i32) {
    %c0_i32 = arith.constant 0 : i32
    %c0_i32_0 = arith.constant 0 : i32
    %c0_i32_1 = arith.constant 0 : i32
    return %c0_i32, %c0_i32_0 : i32, i32
  }
  func.func @transform_6(%arg0: i32) -> (i32, i32) {
    %c0_i32 = arith.constant 0 : i32
    %c0_i32_0 = arith.constant 0 : i32
    %c0_i32_1 = arith.constant 0 : i32
    return %c0_i32, %c0_i32_0 : i32, i32
  }
  func.func @transform_7(%arg0: i32) -> (i32, i32) {
    %c0_i32 = arith.constant 0 : i32
    %c0_i32_0 = arith.constant 0 : i32
    %c0_i32_1 = arith.constant 0 : i32
    return %c0_i32, %c0_i32_0 : i32, i32
  }
  func.func @transform_8(%arg0: i32) -> (i32, i32) {
    %c0_i32 = arith.constant 0 : i32
    %c0_i32_0 = arith.constant 0 : i32
    %c0_i32_1 = arith.constant 0 : i32
    return %c0_i32, %c0_i32_0 : i32, i32
  }
  func.func @transform_9(%arg0: i32) -> (i32, i32) {
    %c0_i32 = arith.constant 0 : i32
    %c0_i32_0 = arith.constant 0 : i32
    %c0_i32_1 = arith.constant 0 : i32
    return %c0_i32, %c0_i32_0 : i32, i32
  }
  func.func @transform_10(%arg0: i32) -> (i32, i32, i32) {
    %c0_i32 = arith.constant 0 : i32
    %c0_i32_0 = arith.constant 0 : i32
    %c0_i32_1 = arith.constant 0 : i32
    return %arg0, %c0_i32, %c0_i32_0 : i32, i32, i32
  }
}

</mosaic_0001>

<llo_original>
// kernel: unet_forward.1
$region0: #{unet_forward.1}
  #allocation0 [shape = 'u32[]', space=smem, size = 0x4, offset = 0x4, fixed_abs, tag = 'smem constant byte address 0x4 - core index']
  #allocation1 [shape = 'u32[144,128]{1,0:T(1,128)}', space=vmem, size = 0x12000, scoped, tag = 'internal scratch']
  #allocation2 [shape = 'f32[288,512]{1,0:T(8,128)}', space=vmem, size = 0x90000, scoped, tag = 'scratch operand']
  %s0 = inlined_call_operand.vmem [shape: f32[2,1,512], index: 0, kind: input, shape index: {}]
  %s1 = inlined_call_operand.vmem [shape: f32[9,512], index: 1, kind: input, shape index: {}]
  %s2 = inlined_call_operand.vmem [shape: f32[16,9], index: 2, kind: input, shape index: {}]
  %s3 = inlined_call_operand.vmem [shape: f32[16,1], index: 3, kind: input, shape index: {}]
  %s4 = inlined_call_operand.vmem [shape: f32[32,144], index: 4, kind: input, shape index: {}]
  %s5 = inlined_call_operand.vmem [shape: f32[32,1], index: 5, kind: input, shape index: {}]
  %s6 = inlined_call_operand.vmem [shape: f32[16,288], index: 6, kind: input, shape index: {}]
  %s7 = inlined_call_operand.vmem [shape: f32[16,1], index: 7, kind: input, shape index: {}]
  %s8 = inlined_call_operand.vmem [shape: f32[8,144], index: 8, kind: input, shape index: {}]
  %s9 = inlined_call_operand.vmem [shape: f32[8,1], index: 9, kind: input, shape index: {}]
  %s10 = inlined_call_operand.vmem [shape: f32[2,1,512], index: 10, kind: output, shape index: {}]
  %s11 = sld [smem:[#allocation0]]
  $region73: #{unet_forward.1} parent=0
    _
  %s13 = ssub.s32 1, %s11
  %s14 = scalar_select 0, %s13, %s11
  loop: start=0, step=1, limit=4
  $region2: #{unet_forward.1} parent=0 // loop_pre_header
    _
  $region3: #{unet_forward.1} parent=0 // loop_header
    %s16 = sphi 0, %s20
    %p17 = scmp.ge.s32.totalorder %s16, 4
    %s26 = sphi 0, %s28
    %s29 = sphi 0, %s26
    %s30 = sphi 0, %s29
    %s46 = sphi 0, %s30
    %s50 = sphi 0, %s50
    %s52 = sphi 0, %s50
    %s53 = sphi 0, %s52
    %s67 = sphi 0, %s53
    %s71 = sphi 0, %s71
    %s73 = sphi 0, %s71
    %s74 = sphi 0, %s73
    %s88 = sphi 0, %s74
    %s92 = sphi 0, %s92
    %s94 = sphi 0, %s92
    %s95 = sphi 0, %s94
    %s109 = sphi 0, %s95
    %s113 = sphi 0, %s113
    %s115 = sphi 0, %s113
    %s116 = sphi 0, %s115
    %s130 = sphi 0, %s116
    %s134 = sphi 0, %s134
    %s136 = sphi 0, %s134
    %s137 = sphi 0, %s136
    %s151 = sphi 0, %s137
    %s155 = sphi 0, %s155
    %s157 = sphi 0, %s155
    %s158 = sphi 0, %s157
    %s172 = sphi 0, %s158
    %s176 = sphi 0, %s176
    %s178 = sphi 0, %s176
    %s179 = sphi 0, %s178
    %s193 = sphi 0, %s179
    %s197 = sphi 0, %s197
    %s199 = sphi 0, %s197
    %s200 = sphi 0, %s199
    %s214 = sphi 0, %s200
    %s218 = sphi 0, %s218
    %s220 = sphi 0, %s218
    %s221 = sphi 0, %s220
    %s235 = sphi 0, %s221
    %s241 = sphi 0, %s243
    %s244 = sphi 0, %s241
    %s245 = sphi 0, %s244
    %s261 = sphi 0, %s245
  $region4: #{unet_forward.1} parent=0 // loop_header_branch
    %19 = sbr.rel (%p17) target = $region8
  $region5: #{unet_forward.1} parent=0 // loop_body
    %s21 = ssub.s32 %s16, 1
    %s22 = ssub.s32 %s16, 2
    %s23 = sadd.s32 %s16, 1
    %s24 = ssub.s32 %s16, %s23
    %p25 = scmp.eq.s32.totalorder %s24, 0
    %s27 = sadd.s32 %s26, 1
    %s28 = scalar_select %p25, %s26, %s27
    %p31 = pneg %p25
    %p32 = scmp.eq.s32.totalorder %s16, 1
    %p33 = por %p31, %p32
    %p34 = scmp.ne.s32.totalorder %s26, %s29
    %p35 = scmp.eq.s32.totalorder %s16, 0
    %p36 = por %p34, %p35
    %p37 = scmp.ne.s32.totalorder %s26, %s29
    %p38 = scmp.eq.s32.totalorder %s21, 1
    %p39 = por %p37, %p38
    %p40 = scmp.ne.s32.totalorder %s29, %s30
    %p41 = scmp.eq.s32.totalorder %s21, 0
    %p42 = por %p40, %p41
    %p43 = scmp.ne.s32.totalorder %s29, %s30
    %p44 = scmp.eq.s32.totalorder %s22, 1
    %p45 = por %p43, %p44
    %p47 = scmp.ne.s32.totalorder %s30, %s46
    %p48 = scmp.eq.s32.totalorder %s22, 0
    %p49 = por %p47, %p48
    %s51 = sadd.s32 %s50, 1
    %p54 = scmp.eq.s32.totalorder %s16, 1
    %p55 = scmp.ne.s32.totalorder %s50, %s52
    %p56 = scmp.eq.s32.totalorder %s16, 0
    %p57 = por %p55, %p56
    %p58 = scmp.ne.s32.totalorder %s50, %s52
    %p59 = scmp.eq.s32.totalorder %s21, 1
    %p60 = por %p58, %p59
    %p61 = scmp.ne.s32.totalorder %s52, %s53
    %p62 = scmp.eq.s32.totalorder %s21, 0
    %p63 = por %p61, %p62
    %p64 = scmp.ne.s32.totalorder %s52, %s53
    %p65 = scmp.eq.s32.totalorder %s22, 1
    %p66 = por %p64, %p65
    %p68 = scmp.ne.s32.totalorder %s53, %s67
    %p69 = scmp.eq.s32.totalorder %s22, 0
    %p70 = por %p68, %p69
    %s72 = sadd.s32 %s71, 1
    %p75 = scmp.eq.s32.totalorder %s16, 1
    %p76 = scmp.ne.s32.totalorder %s71, %s73
    %p77 = scmp.eq.s32.totalorder %s16, 0
    %p78 = por %p76, %p77
    %p79 = scmp.ne.s32.totalorder %s71, %s73
    %p80 = scmp.eq.s32.totalorder %s21, 1
    %p81 = por %p79, %p80
    %p82 = scmp.ne.s32.totalorder %s73, %s74
    %p83 = scmp.eq.s32.totalorder %s21, 0
    %p84 = por %p82, %p83
    %p85 = scmp.ne.s32.totalorder %s73, %s74
    %p86 = scmp.eq.s32.totalorder %s22, 1
    %p87 = por %p85, %p86
    %p89 = scmp.ne.s32.totalorder %s74, %s88
    %p90 = scmp.eq.s32.totalorder %s22, 0
    %p91 = por %p89, %p90
    %s93 = sadd.s32 %s92, 1
    %p96 = scmp.eq.s32.totalorder %s16, 1
    %p97 = scmp.ne.s32.totalorder %s92, %s94
    %p98 = scmp.eq.s32.totalorder %s16, 0
    %p99 = por %p97, %p98
    %p100 = scmp.ne.s32.totalorder %s92, %s94
    %p101 = scmp.eq.s32.totalorder %s21, 1
    %p102 = por %p100, %p101
    %p103 = scmp.ne.s32.totalorder %s94, %s95
    %p104 = scmp.eq.s32.totalorder %s21, 0
    %p105 = por %p103, %p104
    %p106 = scmp.ne.s32.totalorder %s94, %s95
    %p107 = scmp.eq.s32.totalorder %s22, 1
    %p108 = por %p106, %p107
    %p110 = scmp.ne.s32.totalorder %s95, %s109
    %p111 = scmp.eq.s32.totalorder %s22, 0
    %p112 = por %p110, %p111
    %s114 = sadd.s32 %s113, 1
    %p117 = scmp.eq.s32.totalorder %s16, 1
    %p118 = scmp.ne.s32.totalorder %s113, %s115
    %p119 = scmp.eq.s32.totalorder %s16, 0
    %p120 = por %p118, %p119
    %p121 = scmp.ne.s32.totalorder %s113, %s115
    %p122 = scmp.eq.s32.totalorder %s21, 1
    %p123 = por %p121, %p122
    %p124 = scmp.ne.s32.totalorder %s115, %s116
    %p125 = scmp.eq.s32.totalorder %s21, 0
    %p126 = por %p124, %p125
    %p127 = scmp.ne.s32.totalorder %s115, %s116
    %p128 = scmp.eq.s32.totalorder %s22, 1
    %p129 = por %p127, %p128
    %p131 = scmp.ne.s32.totalorder %s116, %s130
    %p132 = scmp.eq.s32.totalorder %s22, 0
    %p133 = por %p131, %p132
    %s135 = sadd.s32 %s134, 1
    %p138 = scmp.eq.s32.totalorder %s16, 1
    %p139 = scmp.ne.s32.totalorder %s134, %s136
    %p140 = scmp.eq.s32.totalorder %s16, 0
    %p141 = por %p139, %p140
    %p142 = scmp.ne.s32.totalorder %s134, %s136
    %p143 = scmp.eq.s32.totalorder %s21, 1
    %p144 = por %p142, %p143
    %p145 = scmp.ne.s32.totalorder %s136, %s137
    %p146 = scmp.eq.s32.totalorder %s21, 0
    %p147 = por %p145, %p146
    %p148 = scmp.ne.s32.totalorder %s136, %s137
    %p149 = scmp.eq.s32.totalorder %s22, 1
    %p150 = por %p148, %p149
    %p152 = scmp.ne.s32.totalorder %s137, %s151
    %p153 = scmp.eq.s32.totalorder %s22, 0
    %p154 = por %p152, %p153
    %s156 = sadd.s32 %s155, 1
    %p159 = scmp.eq.s32.totalorder %s16, 1
    %p160 = scmp.ne.s32.totalorder %s155, %s157
    %p161 = scmp.eq.s32.totalorder %s16, 0
    %p162 = por %p160, %p161
    %p163 = scmp.ne.s32.totalorder %s155, %s157
    %p164 = scmp.eq.s32.totalorder %s21, 1
    %p165 = por %p163, %p164
    %p166 = scmp.ne.s32.totalorder %s157, %s158
    %p167 = scmp.eq.s32.totalorder %s21, 0
    %p168 = por %p166, %p167
    %p169 = scmp.ne.s32.totalorder %s157, %s158
    %p170 = scmp.eq.s32.totalorder %s22, 1
    %p171 = por %p169, %p170
    %p173 = scmp.ne.s32.totalorder %s158, %s172
    %p174 = scmp.eq.s32.totalorder %s22, 0
    %p175 = por %p173, %p174
    %s177 = sadd.s32 %s176, 1
    %p180 = scmp.eq.s32.totalorder %s16, 1
    %p181 = scmp.ne.s32.totalorder %s176, %s178
    %p182 = scmp.eq.s32.totalorder %s16, 0
    %p183 = por %p181, %p182
    %p184 = scmp.ne.s32.totalorder %s176, %s178
    %p185 = scmp.eq.s32.totalorder %s21, 1
    %p186 = por %p184, %p185
    %p187 = scmp.ne.s32.totalorder %s178, %s179
    %p188 = scmp.eq.s32.totalorder %s21, 0
    %p189 = por %p187, %p188
    %p190 = scmp.ne.s32.totalorder %s178, %s179
    %p191 = scmp.eq.s32.totalorder %s22, 1
    %p192 = por %p190, %p191
    %p194 = scmp.ne.s32.totalorder %s179, %s193
    %p195 = scmp.eq.s32.totalorder %s22, 0
    %p196 = por %p194, %p195
    %s198 = sadd.s32 %s197, 1
    %p201 = scmp.eq.s32.totalorder %s16, 1
    %p202 = scmp.ne.s32.totalorder %s197, %s199
    %p203 = scmp.eq.s32.totalorder %s16, 0
    %p204 = por %p202, %p203
    %p205 = scmp.ne.s32.totalorder %s197, %s199
    %p206 = scmp.eq.s32.totalorder %s21, 1
    %p207 = por %p205, %p206
    %p208 = scmp.ne.s32.totalorder %s199, %s200
    %p209 = scmp.eq.s32.totalorder %s21, 0
    %p210 = por %p208, %p209
    %p211 = scmp.ne.s32.totalorder %s199, %s200
    %p212 = scmp.eq.s32.totalorder %s22, 1
    %p213 = por %p211, %p212
    %p215 = scmp.ne.s32.totalorder %s200, %s214
    %p216 = scmp.eq.s32.totalorder %s22, 0
    %p217 = por %p215, %p216
    %s219 = sadd.s32 %s218, 1
    %p222 = scmp.eq.s32.totalorder %s16, 1
    %p223 = scmp.ne.s32.totalorder %s218, %s220
    %p224 = scmp.eq.s32.totalorder %s16, 0
    %p225 = por %p223, %p224
    %p226 = scmp.ne.s32.totalorder %s218, %s220
    %p227 = scmp.eq.s32.totalorder %s21, 1
    %p228 = por %p226, %p227
    %p229 = scmp.ne.s32.totalorder %s220, %s221
    %p230 = scmp.eq.s32.totalorder %s21, 0
    %p231 = por %p229, %p230
    %p232 = scmp.ne.s32.totalorder %s220, %s221
    %p233 = scmp.eq.s32.totalorder %s22, 1
    %p234 = por %p232, %p233
    %p236 = scmp.ne.s32.totalorder %s221, %s235
    %p237 = scmp.eq.s32.totalorder %s22, 0
    %p238 = por %p236, %p237
    %s239 = ssub.s32 %s16, %s23
    %p240 = scmp.eq.s32.totalorder %s239, 0
    %s242 = sadd.s32 %s241, 1
    %s243 = scalar_select %p240, %s241, %s242
    %p246 = pneg %p240
    %p247 = scmp.eq.s32.totalorder %s16, 1
    %p248 = por %p246, %p247
    %p249 = scmp.ne.s32.totalorder %s241, %s244
    %p250 = scmp.eq.s32.totalorder %s16, 0
    %p251 = por %p249, %p250
    %p252 = scmp.ne.s32.totalorder %s241, %s244
    %p253 = scmp.eq.s32.totalorder %s21, 1
    %p254 = por %p252, %p253
    %p255 = scmp.ne.s32.totalorder %s244, %s245
    %p256 = scmp.eq.s32.totalorder %s21, 0
    %p257 = por %p255, %p256
    %p258 = scmp.ne.s32.totalorder %s244, %s245
    %p259 = scmp.eq.s32.totalorder %s22, 1
    %p260 = por %p258, %p259
    %p262 = scmp.ne.s32.totalorder %s245, %s261
    %p263 = scmp.eq.s32.totalorder %s22, 0
    %p264 = por %p262, %p263
    %p265 = scmp.le.s32.totalorder 1, %s16
    %p266 = scmp.lt.s32.totalorder %s16, 3
    %p267 = pnand %p265, %p266
    %p268 = pneg %p267
    // Predicated region
    $region9: #{unet_forward.1} parent=5 // pred_check
      _
    $region10: #{unet_forward.1} parent=5 // pred_check_branch
      %270 = sbr.rel (%p267) target = $region12
    $region11: #{unet_forward.1} parent=5 // pred_region
      %s271 = ssub.s32 %s16, 1
      // Predicated region
      $region13: #{unet_forward.1} parent=11 // pred_check
        %p272 = pneg %p63
      $region14: #{unet_forward.1} parent=11 // pred_check_branch
        %274 = sbr.rel (%p272) target = $region16
      $region15: #{unet_forward.1} parent=11 // pred_region
        _
      $region16: #{unet_forward.1} parent=11 // pred_fallthru
        _
      // Predicated region
      $region17: #{unet_forward.1} parent=11 // pred_check
        %p275 = pneg %p84
      $region18: #{unet_forward.1} parent=11 // pred_check_branch
        %277 = sbr.rel (%p275) target = $region20
      $region19: #{unet_forward.1} parent=11 // pred_region
        _
      $region20: #{unet_forward.1} parent=11 // pred_fallthru
        _
      // Predicated region
      $region21: #{unet_forward.1} parent=11 // pred_check
        %p278 = pneg %p105
      $region22: #{unet_forward.1} parent=11 // pred_check_branch
        %280 = sbr.rel (%p278) target = $region24
      $region23: #{unet_forward.1} parent=11 // pred_region
        _
      $region24: #{unet_forward.1} parent=11 // pred_fallthru
        _
      // Predicated region
      $region25: #{unet_forward.1} parent=11 // pred_check
        %p281 = pneg %p126
      $region26: #{unet_forward.1} parent=11 // pred_check_branch
        %283 = sbr.rel (%p281) target = $region28
      $region27: #{unet_forward.1} parent=11 // pred_region
        _
      $region28: #{unet_forward.1} parent=11 // pred_fallthru
        _
      // Predicated region
      $region29: #{unet_forward.1} parent=11 // pred_check
        %p284 = pneg %p147
      $region30: #{unet_forward.1} parent=11 // pred_check_branch
        %286 = sbr.rel (%p284) target = $region32
      $region31: #{unet_forward.1} parent=11 // pred_region
        _
      $region32: #{unet_forward.1} parent=11 // pred_fallthru
        _
      // Predicated region
      $region33: #{unet_forward.1} parent=11 // pred_check
        %p287 = pneg %p168
      $region34: #{unet_forward.1} parent=11 // pred_check_branch
        %289 = sbr.rel (%p287) target = $region36
      $region35: #{unet_forward.1} parent=11 // pred_region
        _
      $region36: #{unet_forward.1} parent=11 // pred_fallthru
        _
      // Predicated region
      $region37: #{unet_forward.1} parent=11 // pred_check
        %p290 = pneg %p189
      $region38: #{unet_forward.1} parent=11 // pred_check_branch
        %292 = sbr.rel (%p290) target = $region40
      $region39: #{unet_forward.1} parent=11 // pred_region
        _
      $region40: #{unet_forward.1} parent=11 // pred_fallthru
        _
      // Predicated region
      $region41: #{unet_forward.1} parent=11 // pred_check
        %p293 = pneg %p210
      $region42: #{unet_forward.1} parent=11 // pred_check_branch
        %295 = sbr.rel (%p293) target = $region44
      $region43: #{unet_forward.1} parent=11 // pred_region
        _
      $region44: #{unet_forward.1} parent=11 // pred_fallthru
        _
      // Predicated region
      $region45: #{unet_forward.1} parent=11 // pred_check
        %p296 = pneg %p231
      $region46: #{unet_forward.1} parent=11 // pred_check_branch
        %298 = sbr.rel (%p296) target = $region48
      $region47: #{unet_forward.1} parent=11 // pred_region
        _
      $region48: #{unet_forward.1} parent=11 // pred_fallthru
        _
    $region12: #{unet_forward.1} parent=5 // pred_fallthru
      _
    %p299 = scmp.lt.s32.totalorder %s16, 2
    // Predicated region
    $region49: #{unet_forward.1} parent=5 // pred_check
      %p300 = pneg %p299
    $region50: #{unet_forward.1} parent=5 // pred_check_branch
      %302 = sbr.rel (%p300) target = $region52
    $region51: #{unet_forward.1} parent=5 // pred_region
      // Predicated region
      $region53: #{unet_forward.1} parent=51 // pred_check
        %p303 = pneg %p36
      $region54: #{unet_forward.1} parent=51 // pred_check_branch
        %305 = sbr.rel (%p303) target = $region56
      $region55: #{unet_forward.1} parent=51 // pred_region
        %p306 = scmp.lt.s32.totalorder %s16, 1
        %s307 = scalar_select %p306, %s16, 1
        %s308 = smul.addr %s307, 4
        %s309 = scalar_lea.vmem %s0, %s308
      $region56: #{unet_forward.1} parent=51 // pred_fallthru
        _
    $region52: #{unet_forward.1} parent=5 // pred_fallthru
      _
    %p310 = scmp.le.s32.totalorder 1, %s16
    %p311 = scmp.lt.s32.totalorder %s16, 3
    %p312 = pnand %p310, %p311
    %p313 = pneg %p312
    // Predicated region
    $region57: #{unet_forward.1} parent=5 // pred_check
      _
    $region58: #{unet_forward.1} parent=5 // pred_check_branch
      %315 = sbr.rel (%p312) target = $region60
    $region59: #{unet_forward.1} parent=5 // pred_region
      %s316 = ssub.s32 %s16, 1
      %p317 = scmp.lt.s32.totalorder %s21, 1
      %s318 = scalar_select %p317, %s21, 1
      %s319 = smul.addr %s318, 4
      %s320 = scalar_lea.vmem %s0, %s319
      %p321 = pneg %p42
      %p322 = pneg %p39
      %p323 = pneg %p63
      %p324 = pneg %p60
      %p325 = pneg %p84
      %p326 = pneg %p81
      %p327 = pneg %p105
      %p328 = pneg %p102
      %p329 = pneg %p126
      %p330 = pneg %p123
      %p331 = pneg %p147
      %p332 = pneg %p144
      %p333 = pneg %p168
      %p334 = pneg %p165
      %p335 = pneg %p189
      %p336 = pneg %p186
      %p337 = pneg %p210
      %p338 = pneg %p207
      %p339 = pneg %p231
      %p340 = pneg %p228
      %p341 = pneg %p257
      %p342 = pneg %p254
      %p343 = scmp.lt.s32.totalorder %s21, 1
      %s344 = scalar_select %p343, %s21, 1
      %s345 = smul.addr %s344, 4
      %s346 = scalar_lea.vmem %s10, %s345
      %p347 = scmp.lt.s32.totalorder %s21, 1
      %s348 = scalar_select %p347, %s21, 1
      %s349 = smul.addr %s348, 4
      %s350 = scalar_lea.vmem %s0, %s349
      %p351 = scmp.lt.s32.totalorder %s21, 1
      %s352 = scalar_select %p351, %s21, 1
      %s353 = smul.addr %s352, 4
      %s354 = scalar_lea.vmem %s10, %s353
      %v355 = vld [vmem:[%s350] sm:$0xf]
      %v356 = vld [vmem:[%s2] sm:$0xff]
      %v357 = vld [vmem:[%s2 + $0x8] sm:$0xff]
      %v359 = vlaneseq
      %v360 = vshrl.u32 %v359, 7
      %v361 = vsub.s32 0, %v360
      %v362 = vrot.slane %v355, %v361
      %v363 = vlaneseq
      %v364 = vshrl.u32 %v363, 7
      %v365 = vsub.s32 1, %v364
      %v366 = vrot.slane %v355, %v365
      %v367 = vlaneseq
      %v368 = vshrl.u32 %v367, 7
      %v369 = vsub.s32 2, %v368
      %v370 = vrot.slane %v355, %v369
      %v371 = vlaneseq
      %v372 = vshrl.u32 %v371, 7
      %v373 = vsub.s32 3, %v372
      %v374 = vrot.slane %v355, %v373
      %379 = vrot.lane.b32.xlu0 %v362, 17
      %v380 = vpop.permute.xlu0 %379
      %381 = vrot.lane.b32.xlu0 %v366, 17
      %v382 = vpop.permute.xlu0 %381
      %383 = vrot.lane.b32.xlu0 %v370, 17
      %v384 = vpop.permute.xlu0 %383
      %385 = vrot.lane.b32.xlu0 %v374, 17
      %v386 = vpop.permute.xlu0 %385
      %v387 = vlaneseq
      %v388 = vand.u32 %v387, 127
      %vm389 = vcmp.lt.s32.totalorder %v388, 17
      %v390 = vsel %vm389, %v384, %v386
      %v391 = vsel %vm389, %v382, %v384
      %v392 = vsel %vm389, %v380, %v382
      %v393 = vsel %vm389, %v386, %v380
      %v394 = vld [vmem:[%s1] ss:$8 sm:$0xf]
      %v396 = vlaneseq
      %v397 = vshrl.u32 %v396, 7
      %v398 = vsub.s32 0, %v397
      %v399 = vrot.slane %v394, %v398
      %v400 = vlaneseq
      %v401 = vshrl.u32 %v400, 7
      %v402 = vsub.s32 1, %v401
      %v403 = vrot.slane %v394, %v402
      %v404 = vlaneseq
      %v405 = vshrl.u32 %v404, 7
      %v406 = vsub.s32 2, %v405
      %v407 = vrot.slane %v394, %v406
      %v408 = vlaneseq
      %v409 = vshrl.u32 %v408, 7
      %v410 = vsub.s32 3, %v409
      %v411 = vrot.slane %v394, %v410
      %v416 = vmul.f32 %v393, %v399
      %v417 = vmul.f32 %v392, %v403
      %v418 = vmul.f32 %v391, %v407
      %v419 = vmul.f32 %v390, %v411
      %421 = vset.pattern.permute.xlu0 0
      %422 = vperm.xlu0 %421, %v356
      %v423 = vpop.permute.xlu0 %422
      %426 = vset.pattern.permute.xlu0 0
      %427 = vperm.xlu0 %426, %v357
      %v428 = vpop.permute.xlu0 %427
      %v430 = vlaneseq
      %v431 = vshrl.u32 %v430, 7
      %v432 = vsub.s32 0, %v431
      %v433 = vrot.slane %v416, %v432
      %v434 = vlaneseq
      %v435 = vshrl.u32 %v434, 7
      %v436 = vsub.s32 0, %v435
      %v437 = vrot.slane %v417, %v436
      %v438 = vlaneseq
      %v439 = vshrl.u32 %v438, 7
      %v440 = vsub.s32 0, %v439
      %v441 = vrot.slane %v418, %v440
      %v442 = vlaneseq
      %v443 = vshrl.u32 %v442, 7
      %v444 = vsub.s32 0, %v443
      %v445 = vrot.slane %v419, %v444
      %v446 = vmul.f32 %v423, %v433
      %v447 = vmul.f32 %v423, %v437
      %v448 = vmul.f32 %v423, %v441
      %v449 = vmul.f32 %v423, %v445
      %v450 = vmul.f32 %v428, %v433
      %v451 = vmul.f32 %v428, %v437
      %v452 = vmul.f32 %v428, %v441
      %v453 = vmul.f32 %v428, %v445
      %v454 = vadd.f32 %v446, 0.0
      %v455 = vadd.f32 %v447, 0.0
      %v456 = vadd.f32 %v448, 0.0
      %v457 = vadd.f32 %v449, 0.0
      %v458 = vadd.f32 %v450, 0.0
      %v459 = vadd.f32 %v451, 0.0
      %v460 = vadd.f32 %v452, 0.0
      %v461 = vadd.f32 %v453, 0.0
      %462 = vrot.lane.b32.xlu0 %v362, 16
      %v463 = vpop.permute.xlu0 %462
      %464 = vrot.lane.b32.xlu0 %v366, 16
      %v465 = vpop.permute.xlu0 %464
      %466 = vrot.lane.b32.xlu0 %v370, 16
      %v467 = vpop.permute.xlu0 %466
      %468 = vrot.lane.b32.xlu0 %v374, 16
      %v469 = vpop.permute.xlu0 %468
      %vm470 = vcmp.lt.s32.totalorder %v388, 16
      %v471 = vsel %vm470, %v467, %v469
      %v472 = vsel %vm470, %v465, %v467
      %v473 = vsel %vm470, %v463, %v465
      %v474 = vsel %vm470, %v469, %v463
      %s475 = scalar_lea.vmem %s1, 1
      %v476 = vld [vmem:[%s475] ss:$8 sm:$0xf]
      %v478 = vlaneseq
      %v479 = vshrl.u32 %v478, 7
      %v480 = vsub.s32 0, %v479
      %v481 = vrot.slane %v476, %v480
      %v482 = vlaneseq
      %v483 = vshrl.u32 %v482, 7
      %v484 = vsub.s32 1, %v483
      %v485 = vrot.slane %v476, %v484
      %v486 = vlaneseq
      %v487 = vshrl.u32 %v486, 7
      %v488 = vsub.s32 2, %v487
      %v489 = vrot.slane %v476, %v488
      %v490 = vlaneseq
      %v491 = vshrl.u32 %v490, 7
      %v492 = vsub.s32 3, %v491
      %v493 = vrot.slane %v476, %v492
      %v498 = vmul.f32 %v474, %v481
      %v499 = vmul.f32 %v473, %v485
      %v500 = vmul.f32 %v472, %v489
      %v501 = vmul.f32 %v471, %v493
      %502 = vset.pattern.permute.xlu0 1
      %503 = vperm.xlu0 %502, %v356
      %v504 = vpop.permute.xlu0 %503
      %506 = vset.pattern.permute.xlu0 1
      %507 = vperm.xlu0 %506, %v357
      %v508 = vpop.permute.xlu0 %507
      %v510 = vlaneseq
      %v511 = vshrl.u32 %v510, 7
      %v512 = vsub.s32 0, %v511
      %v513 = vrot.slane %v498, %v512
      %v514 = vlaneseq
      %v515 = vshrl.u32 %v514, 7
      %v516 = vsub.s32 0, %v515
      %v517 = vrot.slane %v499, %v516
      %v518 = vlaneseq
      %v519 = vshrl.u32 %v518, 7
      %v520 = vsub.s32 0, %v519
      %v521 = vrot.slane %v500, %v520
      %v522 = vlaneseq
      %v523 = vshrl.u32 %v522, 7
      %v524 = vsub.s32 0, %v523
      %v525 = vrot.slane %v501, %v524
      %v526 = vmul.f32 %v504, %v513
      %v527 = vmul.f32 %v504, %v517
      %v528 = vmul.f32 %v504, %v521
      %v529 = vmul.f32 %v504, %v525
      %v530 = vmul.f32 %v508, %v513
      %v531 = vmul.f32 %v508, %v517
      %v532 = vmul.f32 %v508, %v521
      %v533 = vmul.f32 %v508, %v525
      %v534 = vadd.f32 %v454, %v526
      %v535 = vadd.f32 %v455, %v527
      %v536 = vadd.f32 %v456, %v528
      %v537 = vadd.f32 %v457, %v529
      %v538 = vadd.f32 %v458, %v530
      %v539 = vadd.f32 %v459, %v531
      %v540 = vadd.f32 %v460, %v532
      %v541 = vadd.f32 %v461, %v533
      %542 = vrot.lane.b32.xlu0 %v362, 15
      %v543 = vpop.permute.xlu0 %542
      %544 = vrot.lane.b32.xlu0 %v366, 15
      %v545 = vpop.permute.xlu0 %544
      %546 = vrot.lane.b32.xlu0 %v370, 15
      %v547 = vpop.permute.xlu0 %546
      %548 = vrot.lane.b32.xlu0 %v374, 15
      %v549 = vpop.permute.xlu0 %548
      %vm550 = vcmp.lt.s32.totalorder %v388, 15
      %v551 = vsel %vm550, %v547, %v549
      %v552 = vsel %vm550, %v545, %v547
      %v553 = vsel %vm550, %v543, %v545
      %v554 = vsel %vm550, %v549, %v543
      %s555 = scalar_lea.vmem %s1, 2
      %v556 = vld [vmem:[%s555] ss:$8 sm:$0xf]
      %v558 = vlaneseq
      %v559 = vshrl.u32 %v558, 7
      %v560 = vsub.s32 0, %v559
      %v561 = vrot.slane %v556, %v560
      %v562 = vlaneseq
      %v563 = vshrl.u32 %v562, 7
      %v564 = vsub.s32 1, %v563
      %v565 = vrot.slane %v556, %v564
      %v566 = vlaneseq
      %v567 = vshrl.u32 %v566, 7
      %v568 = vsub.s32 2, %v567
      %v569 = vrot.slane %v556, %v568
      %v570 = vlaneseq
      %v571 = vshrl.u32 %v570, 7
      %v572 = vsub.s32 3, %v571
      %v573 = vrot.slane %v556, %v572
      %v578 = vmul.f32 %v554, %v561
      %v579 = vmul.f32 %v553, %v565
      %v580 = vmul.f32 %v552, %v569
      %v581 = vmul.f32 %v551, %v573
      %582 = vset.pattern.permute.xlu0 2
      %583 = vperm.xlu0 %582, %v356
      %v584 = vpop.permute.xlu0 %583
      %586 = vset.pattern.permute.xlu0 2
      %587 = vperm.xlu0 %586, %v357
      %v588 = vpop.permute.xlu0 %587
      %v590 = vlaneseq
      %v591 = vshrl.u32 %v590, 7
      %v592 = vsub.s32 0, %v591
      %v593 = vrot.slane %v578, %v592
      %v594 = vlaneseq
      %v595 = vshrl.u32 %v594, 7
      %v596 = vsub.s32 0, %v595
      %v597 = vrot.slane %v579, %v596
      %v598 = vlaneseq
      %v599 = vshrl.u32 %v598, 7
      %v600 = vsub.s32 0, %v599
      %v601 = vrot.slane %v580, %v600
      %v602 = vlaneseq
      %v603 = vshrl.u32 %v602, 7
      %v604 = vsub.s32 0, %v603
      %v605 = vrot.slane %v581, %v604
      %v606 = vmul.f32 %v584, %v593
      %v607 = vmul.f32 %v584, %v597
      %v608 = vmul.f32 %v584, %v601
      %v609 = vmul.f32 %v584, %v605
      %v610 = vmul.f32 %v588, %v593
      %v611 = vmul.f32 %v588, %v597
      %v612 = vmul.f32 %v588, %v601
      %v613 = vmul.f32 %v588, %v605
      %v614 = vadd.f32 %v534, %v606
      %v615 = vadd.f32 %v535, %v607
      %v616 = vadd.f32 %v536, %v608
      %v617 = vadd.f32 %v537, %v609
      %v618 = vadd.f32 %v538, %v610
      %v619 = vadd.f32 %v539, %v611
      %v620 = vadd.f32 %v540, %v612
      %v621 = vadd.f32 %v541, %v613
      %622 = vrot.lane.b32.xlu0 %v362, 1
      %v623 = vpop.permute.xlu0 %622
      %624 = vrot.lane.b32.xlu0 %v366, 1
      %v625 = vpop.permute.xlu0 %624
      %626 = vrot.lane.b32.xlu0 %v370, 1
      %v627 = vpop.permute.xlu0 %626
      %628 = vrot.lane.b32.xlu0 %v374, 1
      %v629 = vpop.permute.xlu0 %628
      %vm630 = vcmp.lt.s32.totalorder %v388, 1
      %v631 = vsel %vm630, %v627, %v629
      %v632 = vsel %vm630, %v625, %v627
      %v633 = vsel %vm630, %v623, %v625
      %v634 = vsel %vm630, %v629, %v623
      %s635 = scalar_lea.vmem %s1, 3
      %v636 = vld [vmem:[%s635] ss:$8 sm:$0xf]
      %v638 = vlaneseq
      %v639 = vshrl.u32 %v638, 7
      %v640 = vsub.s32 0, %v639
      %v641 = vrot.slane %v636, %v640
      %v642 = vlaneseq
      %v643 = vshrl.u32 %v642, 7
      %v644 = vsub.s32 1, %v643
      %v645 = vrot.slane %v636, %v644
      %v646 = vlaneseq
      %v647 = vshrl.u32 %v646, 7
      %v648 = vsub.s32 2, %v647
      %v649 = vrot.slane %v636, %v648
      %v650 = vlaneseq
      %v651 = vshrl.u32 %v650, 7
      %v652 = vsub.s32 3, %v651
      %v653 = vrot.slane %v636, %v652
      %v658 = vmul.f32 %v634, %v641
      %v659 = vmul.f32 %v633, %v645
      %v660 = vmul.f32 %v632, %v649
      %v661 = vmul.f32 %v631, %v653
      %662 = vset.pattern.permute.xlu0 3
      %663 = vperm.xlu0 %662, %v356
      %v664 = vpop.permute.xlu0 %663
      %666 = vset.pattern.permute.xlu0 3
      %667 = vperm.xlu0 %666, %v357
      %v668 = vpop.permute.xlu0 %667
      %v670 = vlaneseq
      %v671 = vshrl.u32 %v670, 7
      %v672 = vsub.s32 0, %v671
      %v673 = vrot.slane %v658, %v672
      %v674 = vlaneseq
      %v675 = vshrl.u32 %v674, 7
      %v676 = vsub.s32 0, %v675
      %v677 = vrot.slane %v659, %v676
      %v678 = vlaneseq
      %v679 = vshrl.u32 %v678, 7
      %v680 = vsub.s32 0, %v679
      %v681 = vrot.slane %v660, %v680
      %v682 = vlaneseq
      %v683 = vshrl.u32 %v682, 7
      %v684 = vsub.s32 0, %v683
      %v685 = vrot.slane %v661, %v684
      %v686 = vmul.f32 %v664, %v673
      %v687 = vmul.f32 %v664, %v677
      %v688 = vmul.f32 %v664, %v681
      %v689 = vmul.f32 %v664, %v685
      %v690 = vmul.f32 %v668, %v673
      %v691 = vmul.f32 %v668, %v677
      %v692 = vmul.f32 %v668, %v681
      %v693 = vmul.f32 %v668, %v685
      %v694 = vadd.f32 %v614, %v686
      %v695 = vadd.f32 %v615, %v687
      %v696 = vadd.f32 %v616, %v688
      %v697 = vadd.f32 %v617, %v689
      %v698 = vadd.f32 %v618, %v690
      %v699 = vadd.f32 %v619, %v691
      %v700 = vadd.f32 %v620, %v692
      %v701 = vadd.f32 %v621, %v693
      %702 = vset.pattern.permute.xlu0 4
      %703 = vperm.xlu0 %702, %v356
      %v704 = vpop.permute.xlu0 %703
      %706 = vset.pattern.permute.xlu0 4
      %707 = vperm.xlu0 %706, %v357
      %v708 = vpop.permute.xlu0 %707
      %v710 = vmul.f32 %v704, %v362
      %v711 = vmul.f32 %v704, %v366
      %v712 = vmul.f32 %v704, %v370
      %v713 = vmul.f32 %v704, %v374
      %v714 = vmul.f32 %v708, %v362
      %v715 = vmul.f32 %v708, %v366
      %v716 = vmul.f32 %v708, %v370
      %v717 = vmul.f32 %v708, %v374
      %v718 = vadd.f32 %v694, %v710
      %v719 = vadd.f32 %v695, %v711
      %v720 = vadd.f32 %v696, %v712
      %v721 = vadd.f32 %v697, %v713
      %v722 = vadd.f32 %v698, %v714
      %v723 = vadd.f32 %v699, %v715
      %v724 = vadd.f32 %v700, %v716
      %v725 = vadd.f32 %v701, %v717
      %726 = vrot.lane.b32.xlu0 %v362, 127
      %v727 = vpop.permute.xlu0 %726
      %728 = vrot.lane.b32.xlu0 %v366, 127
      %v729 = vpop.permute.xlu0 %728
      %730 = vrot.lane.b32.xlu0 %v370, 127
      %v731 = vpop.permute.xlu0 %730
      %732 = vrot.lane.b32.xlu0 %v374, 127
      %v733 = vpop.permute.xlu0 %732
      %vm734 = vcmp.lt.s32.totalorder %v388, 127
      %v735 = vsel %vm734, %v731, %v733
      %v736 = vsel %vm734, %v729, %v731
      %v737 = vsel %vm734, %v727, %v729
      %v738 = vsel %vm734, %v733, %v727
      %s739 = scalar_lea.vmem %s1, 5
      %v740 = vld [vmem:[%s739] ss:$8 sm:$0xf]
      %v742 = vlaneseq
      %v743 = vshrl.u32 %v742, 7
      %v744 = vsub.s32 0, %v743
      %v745 = vrot.slane %v740, %v744
      %v746 = vlaneseq
      %v747 = vshrl.u32 %v746, 7
      %v748 = vsub.s32 1, %v747
      %v749 = vrot.slane %v740, %v748
      %v750 = vlaneseq
      %v751 = vshrl.u32 %v750, 7
      %v752 = vsub.s32 2, %v751
      %v753 = vrot.slane %v740, %v752
      %v754 = vlaneseq
      %v755 = vshrl.u32 %v754, 7
      %v756 = vsub.s32 3, %v755
      %v757 = vrot.slane %v740, %v756
      %v762 = vmul.f32 %v737, %v745
      %v763 = vmul.f32 %v736, %v749
      %v764 = vmul.f32 %v735, %v753
      %v765 = vmul.f32 %v738, %v757
      %766 = vset.pattern.permute.xlu0 5
      %767 = vperm.xlu0 %766, %v356
      %v768 = vpop.permute.xlu0 %767
      %770 = vset.pattern.permute.xlu0 5
      %771 = vperm.xlu0 %770, %v357
      %v772 = vpop.permute.xlu0 %771
      %v774 = vlaneseq
      %v775 = vshrl.u32 %v774, 7
      %v776 = vsub.s32 0, %v775
      %v777 = vrot.slane %v762, %v776
      %v778 = vlaneseq
      %v779 = vshrl.u32 %v778, 7
      %v780 = vsub.s32 0, %v779
      %v781 = vrot.slane %v763, %v780
      %v782 = vlaneseq
      %v783 = vshrl.u32 %v782, 7
      %v784 = vsub.s32 0, %v783
      %v785 = vrot.slane %v764, %v784
      %v786 = vlaneseq
      %v787 = vshrl.u32 %v786, 7
      %v788 = vsub.s32 0, %v787
      %v789 = vrot.slane %v765, %v788
      %v790 = vmul.f32 %v768, %v777
      %v791 = vmul.f32 %v768, %v781
      %v792 = vmul.f32 %v768, %v785
      %v793 = vmul.f32 %v768, %v789
      %v794 = vmul.f32 %v772, %v777
      %v795 = vmul.f32 %v772, %v781
      %v796 = vmul.f32 %v772, %v785
      %v797 = vmul.f32 %v772, %v789
      %v798 = vadd.f32 %v718, %v790
      %v799 = vadd.f32 %v719, %v791
      %v800 = vadd.f32 %v720, %v792
      %v801 = vadd.f32 %v721, %v793
      %v802 = vadd.f32 %v722, %v794
      %v803 = vadd.f32 %v723, %v795
      %v804 = vadd.f32 %v724, %v796
      %v805 = vadd.f32 %v725, %v797
      %806 = vrot.lane.b32.xlu0 %v362, 113
      %v807 = vpop.permute.xlu0 %806
      %808 = vrot.lane.b32.xlu0 %v366, 113
      %v809 = vpop.permute.xlu0 %808
      %810 = vrot.lane.b32.xlu0 %v370, 113
      %v811 = vpop.permute.xlu0 %810
      %812 = vrot.lane.b32.xlu0 %v374, 113
      %v813 = vpop.permute.xlu0 %812
      %vm814 = vcmp.lt.s32.totalorder %v388, 113
      %v815 = vsel %vm814, %v811, %v813
      %v816 = vsel %vm814, %v809, %v811
      %v817 = vsel %vm814, %v807, %v809
      %v818 = vsel %vm814, %v813, %v807
      %s819 = scalar_lea.vmem %s1, 6
      %v820 = vld [vmem:[%s819] ss:$8 sm:$0xf]
      %v822 = vlaneseq
      %v823 = vshrl.u32 %v822, 7
      %v824 = vsub.s32 0, %v823
      %v825 = vrot.slane %v820, %v824
      %v826 = vlaneseq
      %v827 = vshrl.u32 %v826, 7
      %v828 = vsub.s32 1, %v827
      %v829 = vrot.slane %v820, %v828
      %v830 = vlaneseq
      %v831 = vshrl.u32 %v830, 7
      %v832 = vsub.s32 2, %v831
      %v833 = vrot.slane %v820, %v832
      %v834 = vlaneseq
      %v835 = vshrl.u32 %v834, 7
      %v836 = vsub.s32 3, %v835
      %v837 = vrot.slane %v820, %v836
      %v842 = vmul.f32 %v817, %v825
      %v843 = vmul.f32 %v816, %v829
      %v844 = vmul.f32 %v815, %v833
      %v845 = vmul.f32 %v818, %v837
      %846 = vset.pattern.permute.xlu0 6
      %847 = vperm.xlu0 %846, %v356
      %v848 = vpop.permute.xlu0 %847
      %850 = vset.pattern.permute.xlu0 6
      %851 = vperm.xlu0 %850, %v357
      %v852 = vpop.permute.xlu0 %851
      %v854 = vlaneseq
      %v855 = vshrl.u32 %v854, 7
      %v856 = vsub.s32 0, %v855
      %v857 = vrot.slane %v842, %v856
      %v858 = vlaneseq
      %v859 = vshrl.u32 %v858, 7
      %v860 = vsub.s32 0, %v859
      %v861 = vrot.slane %v843, %v860
      %v862 = vlaneseq
      %v863 = vshrl.u32 %v862, 7
      %v864 = vsub.s32 0, %v863
      %v865 = vrot.slane %v844, %v864
      %v866 = vlaneseq
      %v867 = vshrl.u32 %v866, 7
      %v868 = vsub.s32 0, %v867
      %v869 = vrot.slane %v845, %v868
      %v870 = vmul.f32 %v848, %v857
      %v871 = vmul.f32 %v848, %v861
      %v872 = vmul.f32 %v848, %v865
      %v873 = vmul.f32 %v848, %v869
      %v874 = vmul.f32 %v852, %v857
      %v875 = vmul.f32 %v852, %v861
      %v876 = vmul.f32 %v852, %v865
      %v877 = vmul.f32 %v852, %v869
      %v878 = vadd.f32 %v798, %v870
      %v879 = vadd.f32 %v799, %v871
      %v880 = vadd.f32 %v800, %v872
      %v881 = vadd.f32 %v801, %v873
      %v882 = vadd.f32 %v802, %v874
      %v883 = vadd.f32 %v803, %v875
      %v884 = vadd.f32 %v804, %v876
      %v885 = vadd.f32 %v805, %v877
      %886 = vrot.lane.b32.xlu0 %v362, 112
      %v887 = vpop.permute.xlu0 %886
      %888 = vrot.lane.b32.xlu0 %v366, 112
      %v889 = vpop.permute.xlu0 %888
      %890 = vrot.lane.b32.xlu0 %v370, 112
      %v891 = vpop.permute.xlu0 %890
      %892 = vrot.lane.b32.xlu0 %v374, 112
      %v893 = vpop.permute.xlu0 %892
      %vm894 = vcmp.lt.s32.totalorder %v388, 112
      %v895 = vsel %vm894, %v891, %v893
      %v896 = vsel %vm894, %v889, %v891
      %v897 = vsel %vm894, %v887, %v889
      %v898 = vsel %vm894, %v893, %v887
      %s899 = scalar_lea.vmem %s1, 7
      %v900 = vld [vmem:[%s899] ss:$8 sm:$0xf]
      %v902 = vlaneseq
      %v903 = vshrl.u32 %v902, 7
      %v904 = vsub.s32 0, %v903
      %v905 = vrot.slane %v900, %v904
      %v906 = vlaneseq
      %v907 = vshrl.u32 %v906, 7
      %v908 = vsub.s32 1, %v907
      %v909 = vrot.slane %v900, %v908
      %v910 = vlaneseq
      %v911 = vshrl.u32 %v910, 7
      %v912 = vsub.s32 2, %v911
      %v913 = vrot.slane %v900, %v912
      %v914 = vlaneseq
      %v915 = vshrl.u32 %v914, 7
      %v916 = vsub.s32 3, %v915
      %v917 = vrot.slane %v900, %v916
      %v922 = vmul.f32 %v897, %v905
      %v923 = vmul.f32 %v896, %v909
      %v924 = vmul.f32 %v895, %v913
      %v925 = vmul.f32 %v898, %v917
      %926 = vset.pattern.permute.xlu0 7
      %927 = vperm.xlu0 %926, %v356
      %v928 = vpop.permute.xlu0 %927
      %930 = vset.pattern.permute.xlu0 7
      %931 = vperm.xlu0 %930, %v357
      %v932 = vpop.permute.xlu0 %931
      %v934 = vlaneseq
      %v935 = vshrl.u32 %v934, 7
      %v936 = vsub.s32 0, %v935
      %v937 = vrot.slane %v922, %v936
      %v938 = vlaneseq
      %v939 = vshrl.u32 %v938, 7
      %v940 = vsub.s32 0, %v939
      %v941 = vrot.slane %v923, %v940
      %v942 = vlaneseq
      %v943 = vshrl.u32 %v942, 7
      %v944 = vsub.s32 0, %v943
      %v945 = vrot.slane %v924, %v944
      %v946 = vlaneseq
      %v947 = vshrl.u32 %v946, 7
      %v948 = vsub.s32 0, %v947
      %v949 = vrot.slane %v925, %v948
      %v950 = vmul.f32 %v928, %v937
      %v951 = vmul.f32 %v928, %v941
      %v952 = vmul.f32 %v928, %v945
      %v953 = vmul.f32 %v928, %v949
      %v954 = vmul.f32 %v932, %v937
      %v955 = vmul.f32 %v932, %v941
      %v956 = vmul.f32 %v932, %v945
      %v957 = vmul.f32 %v932, %v949
      %v958 = vadd.f32 %v878, %v950
      %v959 = vadd.f32 %v879, %v951
      %v960 = vadd.f32 %v880, %v952
      %v961 = vadd.f32 %v881, %v953
      %v962 = vadd.f32 %v882, %v954
      %v963 = vadd.f32 %v883, %v955
      %v964 = vadd.f32 %v884, %v956
      %v965 = vadd.f32 %v885, %v957
      %966 = vrot.lane.b32.xlu0 %v362, 111
      %v967 = vpop.permute.xlu0 %966
      %968 = vrot.lane.b32.xlu0 %v366, 111
      %v969 = vpop.permute.xlu0 %968
      %970 = vrot.lane.b32.xlu0 %v370, 111
      %v971 = vpop.permute.xlu0 %970
      %972 = vrot.lane.b32.xlu0 %v374, 111
      %v973 = vpop.permute.xlu0 %972
      %vm974 = vcmp.lt.s32.totalorder %v388, 111
      %v975 = vsel %vm974, %v971, %v973
      %v976 = vsel %vm974, %v969, %v971
      %v977 = vsel %vm974, %v967, %v969
      %v978 = vsel %vm974, %v973, %v967
      %s979 = scalar_lea.vmem %s1, 32
      %v980 = vld [vmem:[%s979] ss:$8 sm:$0xf]
      %v982 = vlaneseq
      %v983 = vshrl.u32 %v982, 7
      %v984 = vsub.s32 0, %v983
      %v985 = vrot.slane %v980, %v984
      %v986 = vlaneseq
      %v987 = vshrl.u32 %v986, 7
      %v988 = vsub.s32 1, %v987
      %v989 = vrot.slane %v980, %v988
      %v990 = vlaneseq
      %v991 = vshrl.u32 %v990, 7
      %v992 = vsub.s32 2, %v991
      %v993 = vrot.slane %v980, %v992
      %v994 = vlaneseq
      %v995 = vshrl.u32 %v994, 7
      %v996 = vsub.s32 3, %v995
      %v997 = vrot.slane %v980, %v996
      %v1002 = vmul.f32 %v977, %v985
      %v1003 = vmul.f32 %v976, %v989
      %v1004 = vmul.f32 %v975, %v993
      %v1005 = vmul.f32 %v978, %v997
      %1006 = vset.pattern.permute.xlu0 8
      %1007 = vperm.xlu0 %1006, %v356
      %v1008 = vpop.permute.xlu0 %1007
      %1010 = vset.pattern.permute.xlu0 8
      %1011 = vperm.xlu0 %1010, %v357
      %v1012 = vpop.permute.xlu0 %1011
      %v1014 = vlaneseq
      %v1015 = vshrl.u32 %v1014, 7
      %v1016 = vsub.s32 0, %v1015
      %v1017 = vrot.slane %v1002, %v1016
      %v1018 = vlaneseq
      %v1019 = vshrl.u32 %v1018, 7
      %v1020 = vsub.s32 0, %v1019
      %v1021 = vrot.slane %v1003, %v1020
      %v1022 = vlaneseq
      %v1023 = vshrl.u32 %v1022, 7
      %v1024 = vsub.s32 0, %v1023
      %v1025 = vrot.slane %v1004, %v1024
      %v1026 = vlaneseq
      %v1027 = vshrl.u32 %v1026, 7
      %v1028 = vsub.s32 0, %v1027
      %v1029 = vrot.slane %v1005, %v1028
      %v1030 = vmul.f32 %v1008, %v1017
      %v1031 = vmul.f32 %v1008, %v1021
      %v1032 = vmul.f32 %v1008, %v1025
      %v1033 = vmul.f32 %v1008, %v1029
      %v1034 = vmul.f32 %v1012, %v1017
      %v1035 = vmul.f32 %v1012, %v1021
      %v1036 = vmul.f32 %v1012, %v1025
      %v1037 = vmul.f32 %v1012, %v1029
      %v1038 = vadd.f32 %v958, %v1030
      %v1039 = vadd.f32 %v959, %v1031
      %v1040 = vadd.f32 %v960, %v1032
      %v1041 = vadd.f32 %v961, %v1033
      %v1042 = vadd.f32 %v962, %v1034
      %v1043 = vadd.f32 %v963, %v1035
      %v1044 = vadd.f32 %v964, %v1036
      %v1045 = vadd.f32 %v965, %v1037
      %v1046 = vld [vmem:[%s3] sm:$0xff]
      %v1047 = vld [vmem:[%s3 + $0x8] sm:$0xff]
      %1049 = vset.pattern.permute.xlu0 0
      %1050 = vperm.xlu0 %1049, %v1046
      %v1051 = vpop.permute.xlu0 %1050
      %1054 = vset.pattern.permute.xlu0 0
      %1055 = vperm.xlu0 %1054, %v1047
      %v1056 = vpop.permute.xlu0 %1055
      %v1058 = vadd.f32 %v1038, %v1051
      %v1059 = vadd.f32 %v1039, %v1051
      %v1060 = vadd.f32 %v1040, %v1051
      %v1061 = vadd.f32 %v1041, %v1051
      %v1062 = vadd.f32 %v1042, %v1056
      %v1063 = vadd.f32 %v1043, %v1056
      %v1064 = vadd.f32 %v1044, %v1056
      %v1065 = vadd.f32 %v1045, %v1056
      %v1066 = vmax.f32 %v1058, 0.0
      %v1067 = vmax.f32 %v1059, 0.0
      %v1068 = vmax.f32 %v1060, 0.0
      %v1069 = vmax.f32 %v1061, 0.0
      %v1070 = vmax.f32 %v1062, 0.0
      %v1071 = vmax.f32 %v1063, 0.0
      %v1072 = vmax.f32 %v1064, 0.0
      %v1073 = vmax.f32 %v1065, 0.0
      %1074 = vrot.lane.b32.xlu0 %v1066, 17
      %v1075 = vpop.permute.xlu0 %1074
      %1076 = vrot.lane.b32.xlu0 %v1070, 17
      %v1077 = vpop.permute.xlu0 %1076
      %1078 = vrot.lane.b32.xlu0 %v1067, 17
      %v1079 = vpop.permute.xlu0 %1078
      %1080 = vrot.lane.b32.xlu0 %v1071, 17
      %v1081 = vpop.permute.xlu0 %1080
      %1082 = vrot.lane.b32.xlu0 %v1068, 17
      %v1083 = vpop.permute.xlu0 %1082
      %1084 = vrot.lane.b32.xlu0 %v1072, 17
      %v1085 = vpop.permute.xlu0 %1084
      %1086 = vrot.lane.b32.xlu0 %v1069, 17
      %v1087 = vpop.permute.xlu0 %1086
      %1088 = vrot.lane.b32.xlu0 %v1073, 17
      %v1089 = vpop.permute.xlu0 %1088
      %v1090 = vsel %vm389, %v1083, %v1087
      %v1091 = vsel %vm389, %v1085, %v1089
      %v1092 = vsel %vm389, %v1079, %v1083
      %v1093 = vsel %vm389, %v1081, %v1085
      %v1094 = vsel %vm389, %v1075, %v1079
      %v1095 = vsel %vm389, %v1077, %v1081
      %v1096 = vsel %vm389, %v1087, %v1075
      %v1097 = vsel %vm389, %v1089, %v1077
      %v1098 = vmul.f32 %v1096, %v399
      %v1099 = vmul.f32 %v1094, %v403
      %v1100 = vmul.f32 %v1092, %v407
      %v1101 = vmul.f32 %v1090, %v411
      %v1102 = vmul.f32 %v1097, %v399
      %v1103 = vmul.f32 %v1095, %v403
      %v1104 = vmul.f32 %v1093, %v407
      %v1105 = vmul.f32 %v1091, %v411
      %1106 = vst [vmem:[#allocation2] sm:$0xff] %v1098
      %1107 = vst [vmem:[#allocation2 + $0x8] sm:$0xff] %v1099
      %1108 = vst [vmem:[#allocation2 + $0x10] sm:$0xff] %v1100
      %1109 = vst [vmem:[#allocation2 + $0x18] sm:$0xff] %v1101
      %1110 = vst [vmem:[#allocation2 + $0x20] sm:$0xff] %v1102
      %1111 = vst [vmem:[#allocation2 + $0x28] sm:$0xff] %v1103
      %1112 = vst [vmem:[#allocation2 + $0x30] sm:$0xff] %v1104
      %1113 = vst [vmem:[#allocation2 + $0x38] sm:$0xff] %v1105
      %1114 = vrot.lane.b32.xlu0 %v1066, 16
      %v1115 = vpop.permute.xlu0 %1114
      %1116 = vrot.lane.b32.xlu0 %v1070, 16
      %v1117 = vpop.permute.xlu0 %1116
      %1118 = vrot.lane.b32.xlu0 %v1067, 16
      %v1119 = vpop.permute.xlu0 %1118
      %1120 = vrot.lane.b32.xlu0 %v1071, 16
      %v1121 = vpop.permute.xlu0 %1120
      %1122 = vrot.lane.b32.xlu0 %v1068, 16
      %v1123 = vpop.permute.xlu0 %1122
      %1124 = vrot.lane.b32.xlu0 %v1072, 16
      %v1125 = vpop.permute.xlu0 %1124
      %1126 = vrot.lane.b32.xlu0 %v1069, 16
      %v1127 = vpop.permute.xlu0 %1126
      %1128 = vrot.lane.b32.xlu0 %v1073, 16
      %v1129 = vpop.permute.xlu0 %1128
      %v1130 = vsel %vm470, %v1123, %v1127
      %v1131 = vsel %vm470, %v1125, %v1129
      %v1132 = vsel %vm470, %v1119, %v1123
      %v1133 = vsel %vm470, %v1121, %v1125
      %v1134 = vsel %vm470, %v1115, %v1119
      %v1135 = vsel %vm470, %v1117, %v1121
      %v1136 = vsel %vm470, %v1127, %v1115
      %v1137 = vsel %vm470, %v1129, %v1117
      %v1138 = vld [vmem:[%s475] ss:$8 sm:$0xf]
      %v1140 = vlaneseq
      %v1141 = vshrl.u32 %v1140, 7
      %v1142 = vsub.s32 0, %v1141
      %v1143 = vrot.slane %v1138, %v1142
      %v1144 = vlaneseq
      %v1145 = vshrl.u32 %v1144, 7
      %v1146 = vsub.s32 1, %v1145
      %v1147 = vrot.slane %v1138, %v1146
      %v1148 = vlaneseq
      %v1149 = vshrl.u32 %v1148, 7
      %v1150 = vsub.s32 2, %v1149
      %v1151 = vrot.slane %v1138, %v1150
      %v1152 = vlaneseq
      %v1153 = vshrl.u32 %v1152, 7
      %v1154 = vsub.s32 3, %v1153
      %v1155 = vrot.slane %v1138, %v1154
      %v1160 = vmul.f32 %v1136, %v1143
      %v1161 = vmul.f32 %v1134, %v1147
      %v1162 = vmul.f32 %v1132, %v1151
      %v1163 = vmul.f32 %v1130, %v1155
      %v1164 = vmul.f32 %v1137, %v1143
      %v1165 = vmul.f32 %v1135, %v1147
      %v1166 = vmul.f32 %v1133, %v1151
      %v1167 = vmul.f32 %v1131, %v1155
      %1168 = vst [vmem:[#allocation2 + $0x40] sm:$0xff] %v1160
      %1169 = vst [vmem:[#allocation2 + $0x48] sm:$0xff] %v1161
      %1170 = vst [vmem:[#allocation2 + $0x50] sm:$0xff] %v1162
      %1171 = vst [vmem:[#allocation2 + $0x58] sm:$0xff] %v1163
      %1172 = vst [vmem:[#allocation2 + $0x60] sm:$0xff] %v1164
      %1173 = vst [vmem:[#allocation2 + $0x68] sm:$0xff] %v1165
      %1174 = vst [vmem:[#allocation2 + $0x70] sm:$0xff] %v1166
      %1175 = vst [vmem:[#allocation2 + $0x78] sm:$0xff] %v1167
      %1176 = vrot.lane.b32.xlu0 %v1066, 15
      %v1177 = vpop.permute.xlu0 %1176
      %1178 = vrot.lane.b32.xlu0 %v1070, 15
      %v1179 = vpop.permute.xlu0 %1178
      %1180 = vrot.lane.b32.xlu0 %v1067, 15
      %v1181 = vpop.permute.xlu0 %1180
      %1182 = vrot.lane.b32.xlu0 %v1071, 15
      %v1183 = vpop.permute.xlu0 %1182
      %1184 = vrot.lane.b32.xlu0 %v1068, 15
      %v1185 = vpop.permute.xlu0 %1184
      %1186 = vrot.lane.b32.xlu0 %v1072, 15
      %v1187 = vpop.permute.xlu0 %1186
      %1188 = vrot.lane.b32.xlu0 %v1069, 15
      %v1189 = vpop.permute.xlu0 %1188
      %1190 = vrot.lane.b32.xlu0 %v1073, 15
      %v1191 = vpop.permute.xlu0 %1190
      %v1192 = vsel %vm550, %v1185, %v1189
      %v1193 = vsel %vm550, %v1187, %v1191
      %v1194 = vsel %vm550, %v1181, %v1185
      %v1195 = vsel %vm550, %v1183, %v1187
      %v1196 = vsel %vm550, %v1177, %v1181
      %v1197 = vsel %vm550, %v1179, %v1183
      %v1198 = vsel %vm550, %v1189, %v1177
      %v1199 = vsel %vm550, %v1191, %v1179
      %v1200 = vld [vmem:[%s555] ss:$8 sm:$0xf]
      %v1202 = vlaneseq
      %v1203 = vshrl.u32 %v1202, 7
      %v1204 = vsub.s32 0, %v1203
      %v1205 = vrot.slane %v1200, %v1204
      %v1206 = vlaneseq
      %v1207 = vshrl.u32 %v1206, 7
      %v1208 = vsub.s32 1, %v1207
      %v1209 = vrot.slane %v1200, %v1208
      %v1210 = vlaneseq
      %v1211 = vshrl.u32 %v1210, 7
      %v1212 = vsub.s32 2, %v1211
      %v1213 = vrot.slane %v1200, %v1212
      %v1214 = vlaneseq
      %v1215 = vshrl.u32 %v1214, 7
      %v1216 = vsub.s32 3, %v1215
      %v1217 = vrot.slane %v1200, %v1216
      %v1222 = vmul.f32 %v1198, %v1205
      %v1223 = vmul.f32 %v1196, %v1209
      %v1224 = vmul.f32 %v1194, %v1213
      %v1225 = vmul.f32 %v1192, %v1217
      %v1226 = vmul.f32 %v1199, %v1205
      %v1227 = vmul.f32 %v1197, %v1209
      %v1228 = vmul.f32 %v1195, %v1213
      %v1229 = vmul.f32 %v1193, %v1217
      %1230 = vst [vmem:[#allocation2 + $0x80] sm:$0xff] %v1222
      %1231 = vst [vmem:[#allocation2 + $0x88] sm:$0xff] %v1223
      %1232 = vst [vmem:[#allocation2 + $0x90] sm:$0xff] %v1224
      %1233 = vst [vmem:[#allocation2 + $0x98] sm:$0xff] %v1225
      %1234 = vst [vmem:[#allocation2 + $0xa0] sm:$0xff] %v1226
      %1235 = vst [vmem:[#allocation2 + $0xa8] sm:$0xff] %v1227
      %1236 = vst [vmem:[#allocation2 + $0xb0] sm:$0xff] %v1228
      %1237 = vst [vmem:[#allocation2 + $0xb8] sm:$0xff] %v1229
      %1238 = vrot.lane.b32.xlu0 %v1066, 1
      %v1239 = vpop.permute.xlu0 %1238
      %1240 = vrot.lane.b32.xlu0 %v1070, 1
      %v1241 = vpop.permute.xlu0 %1240
      %1242 = vrot.lane.b32.xlu0 %v1067, 1
      %v1243 = vpop.permute.xlu0 %1242
      %1244 = vrot.lane.b32.xlu0 %v1071, 1
      %v1245 = vpop.permute.xlu0 %1244
      %1246 = vrot.lane.b32.xlu0 %v1068, 1
      %v1247 = vpop.permute.xlu0 %1246
      %1248 = vrot.lane.b32.xlu0 %v1072, 1
      %v1249 = vpop.permute.xlu0 %1248
      %1250 = vrot.lane.b32.xlu0 %v1069, 1
      %v1251 = vpop.permute.xlu0 %1250
      %1252 = vrot.lane.b32.xlu0 %v1073, 1
      %v1253 = vpop.permute.xlu0 %1252
      %v1254 = vsel %vm630, %v1247, %v1251
      %v1255 = vsel %vm630, %v1249, %v1253
      %v1256 = vsel %vm630, %v1243, %v1247
      %v1257 = vsel %vm630, %v1245, %v1249
      %v1258 = vsel %vm630, %v1239, %v1243
      %v1259 = vsel %vm630, %v1241, %v1245
      %v1260 = vsel %vm630, %v1251, %v1239
      %v1261 = vsel %vm630, %v1253, %v1241
      %v1262 = vld [vmem:[%s635] ss:$8 sm:$0xf]
      %v1264 = vlaneseq
      %v1265 = vshrl.u32 %v1264, 7
      %v1266 = vsub.s32 0, %v1265
      %v1267 = vrot.slane %v1262, %v1266
      %v1268 = vlaneseq
      %v1269 = vshrl.u32 %v1268, 7
      %v1270 = vsub.s32 1, %v1269
      %v1271 = vrot.slane %v1262, %v1270
      %v1272 = vlaneseq
      %v1273 = vshrl.u32 %v1272, 7
      %v1274 = vsub.s32 2, %v1273
      %v1275 = vrot.slane %v1262, %v1274
      %v1276 = vlaneseq
      %v1277 = vshrl.u32 %v1276, 7
      %v1278 = vsub.s32 3, %v1277
      %v1279 = vrot.slane %v1262, %v1278
      %v1284 = vmul.f32 %v1260, %v1267
      %v1285 = vmul.f32 %v1258, %v1271
      %v1286 = vmul.f32 %v1256, %v1275
      %v1287 = vmul.f32 %v1254, %v1279
      %v1288 = vmul.f32 %v1261, %v1267
      %v1289 = vmul.f32 %v1259, %v1271
      %v1290 = vmul.f32 %v1257, %v1275
      %v1291 = vmul.f32 %v1255, %v1279
      %1292 = vst [vmem:[#allocation2 + $0xc0] sm:$0xff] %v1284
      %1293 = vst [vmem:[#allocation2 + $0xc8] sm:$0xff] %v1285
      %1294 = vst [vmem:[#allocation2 + $0xd0] sm:$0xff] %v1286
      %1295 = vst [vmem:[#allocation2 + $0xd8] sm:$0xff] %v1287
      %1296 = vst [vmem:[#allocation2 + $0xe0] sm:$0xff] %v1288
      %1297 = vst [vmem:[#allocation2 + $0xe8] sm:$0xff] %v1289
      %1298 = vst [vmem:[#allocation2 + $0xf0] sm:$0xff] %v1290
      %1299 = vst [vmem:[#allocation2 + $0xf8] sm:$0xff] %v1291
      %1300 = vst [vmem:[#allocation2 + $0x100] sm:$0xff] %v1066
      %1301 = vst [vmem:[#allocation2 + $0x108] sm:$0xff] %v1067
      %1302 = vst [vmem:[#allocation2 + $0x110] sm:$0xff] %v1068
      %1303 = vst [vmem:[#allocation2 + $0x118] sm:$0xff] %v1069
      %1304 = vst [vmem:[#allocation2 + $0x120] sm:$0xff] %v1070
      %1305 = vst [vmem:[#allocation2 + $0x128] sm:$0xff] %v1071
      %1306 = vst [vmem:[#allocation2 + $0x130] sm:$0xff] %v1072
      %1307 = vst [vmem:[#allocation2 + $0x138] sm:$0xff] %v1073
      %1308 = vrot.lane.b32.xlu0 %v1066, 127
      %v1309 = vpop.permute.xlu0 %1308
      %1310 = vrot.lane.b32.xlu0 %v1070, 127
      %v1311 = vpop.permute.xlu0 %1310
      %1312 = vrot.lane.b32.xlu0 %v1067, 127
      %v1313 = vpop.permute.xlu0 %1312
      %1314 = vrot.lane.b32.xlu0 %v1071, 127
      %v1315 = vpop.permute.xlu0 %1314
      %1316 = vrot.lane.b32.xlu0 %v1068, 127
      %v1317 = vpop.permute.xlu0 %1316
      %1318 = vrot.lane.b32.xlu0 %v1072, 127
      %v1319 = vpop.permute.xlu0 %1318
      %1320 = vrot.lane.b32.xlu0 %v1069, 127
      %v1321 = vpop.permute.xlu0 %1320
      %1322 = vrot.lane.b32.xlu0 %v1073, 127
      %v1323 = vpop.permute.xlu0 %1322
      %v1324 = vsel %vm734, %v1317, %v1321
      %v1325 = vsel %vm734, %v1319, %v1323
      %v1326 = vsel %vm734, %v1313, %v1317
      %v1327 = vsel %vm734, %v1315, %v1319
      %v1328 = vsel %vm734, %v1309, %v1313
      %v1329 = vsel %vm734, %v1311, %v1315
      %v1330 = vsel %vm734, %v1321, %v1309
      %v1331 = vsel %vm734, %v1323, %v1311
      %v1332 = vld [vmem:[%s739] ss:$8 sm:$0xf]
      %v1334 = vlaneseq
      %v1335 = vshrl.u32 %v1334, 7
      %v1336 = vsub.s32 0, %v1335
      %v1337 = vrot.slane %v1332, %v1336
      %v1338 = vlaneseq
      %v1339 = vshrl.u32 %v1338, 7
      %v1340 = vsub.s32 1, %v1339
      %v1341 = vrot.slane %v1332, %v1340
      %v1342 = vlaneseq
      %v1343 = vshrl.u32 %v1342, 7
      %v1344 = vsub.s32 2, %v1343
      %v1345 = vrot.slane %v1332, %v1344
      %v1346 = vlaneseq
      %v1347 = vshrl.u32 %v1346, 7
      %v1348 = vsub.s32 3, %v1347
      %v1349 = vrot.slane %v1332, %v1348
      %v1354 = vmul.f32 %v1328, %v1337
      %v1355 = vmul.f32 %v1326, %v1341
      %v1356 = vmul.f32 %v1324, %v1345
      %v1357 = vmul.f32 %v1330, %v1349
      %v1358 = vmul.f32 %v1329, %v1337
      %v1359 = vmul.f32 %v1327, %v1341
      %v1360 = vmul.f32 %v1325, %v1345
      %v1361 = vmul.f32 %v1331, %v1349
      %1362 = vst [vmem:[#allocation2 + $0x140] sm:$0xff] %v1354
      %1363 = vst [vmem:[#allocation2 + $0x148] sm:$0xff] %v1355
      %1364 = vst [vmem:[#allocation2 + $0x150] sm:$0xff] %v1356
      %1365 = vst [vmem:[#allocation2 + $0x158] sm:$0xff] %v1357
      %1366 = vst [vmem:[#allocation2 + $0x160] sm:$0xff] %v1358
      %1367 = vst [vmem:[#allocation2 + $0x168] sm:$0xff] %v1359
      %1368 = vst [vmem:[#allocation2 + $0x170] sm:$0xff] %v1360
      %1369 = vst [vmem:[#allocation2 + $0x178] sm:$0xff] %v1361
      %1370 = vrot.lane.b32.xlu0 %v1066, 113
      %v1371 = vpop.permute.xlu0 %1370
      %1372 = vrot.lane.b32.xlu0 %v1070, 113
      %v1373 = vpop.permute.xlu0 %1372
      %1374 = vrot.lane.b32.xlu0 %v1067, 113
      %v1375 = vpop.permute.xlu0 %1374
      %1376 = vrot.lane.b32.xlu0 %v1071, 113
      %v1377 = vpop.permute.xlu0 %1376
      %1378 = vrot.lane.b32.xlu0 %v1068, 113
      %v1379 = vpop.permute.xlu0 %1378
      %1380 = vrot.lane.b32.xlu0 %v1072, 113
      %v1381 = vpop.permute.xlu0 %1380
      %1382 = vrot.lane.b32.xlu0 %v1069, 113
      %v1383 = vpop.permute.xlu0 %1382
      %1384 = vrot.lane.b32.xlu0 %v1073, 113
      %v1385 = vpop.permute.xlu0 %1384
      %v1386 = vsel %vm814, %v1379, %v1383
      %v1387 = vsel %vm814, %v1381, %v1385
      %v1388 = vsel %vm814, %v1375, %v1379
      %v1389 = vsel %vm814, %v1377, %v1381
      %v1390 = vsel %vm814, %v1371, %v1375
      %v1391 = vsel %vm814, %v1373, %v1377
      %v1392 = vsel %vm814, %v1383, %v1371
      %v1393 = vsel %vm814, %v1385, %v1373
      %v1394 = vld [vmem:[%s819] ss:$8 sm:$0xf]
      %v1396 = vlaneseq
      %v1397 = vshrl.u32 %v1396, 7
      %v1398 = vsub.s32 0, %v1397
      %v1399 = vrot.slane %v1394, %v1398
      %v1400 = vlaneseq
      %v1401 = vshrl.u32 %v1400, 7
      %v1402 = vsub.s32 1, %v1401
      %v1403 = vrot.slane %v1394, %v1402
      %v1404 = vlaneseq
      %v1405 = vshrl.u32 %v1404, 7
      %v1406 = vsub.s32 2, %v1405
      %v1407 = vrot.slane %v1394, %v1406
      %v1408 = vlaneseq
      %v1409 = vshrl.u32 %v1408, 7
      %v1410 = vsub.s32 3, %v1409
      %v1411 = vrot.slane %v1394, %v1410
      %v1416 = vmul.f32 %v1390, %v1399
      %v1417 = vmul.f32 %v1388, %v1403
      %v1418 = vmul.f32 %v1386, %v1407
      %v1419 = vmul.f32 %v1392, %v1411
      %v1420 = vmul.f32 %v1391, %v1399
      %v1421 = vmul.f32 %v1389, %v1403
      %v1422 = vmul.f32 %v1387, %v1407
      %v1423 = vmul.f32 %v1393, %v1411
      %1424 = vst [vmem:[#allocation2 + $0x180] sm:$0xff] %v1416
      %1425 = vst [vmem:[#allocation2 + $0x188] sm:$0xff] %v1417
      %1426 = vst [vmem:[#allocation2 + $0x190] sm:$0xff] %v1418
      %1427 = vst [vmem:[#allocation2 + $0x198] sm:$0xff] %v1419
      %1428 = vst [vmem:[#allocation2 + $0x1a0] sm:$0xff] %v1420
      %1429 = vst [vmem:[#allocation2 + $0x1a8] sm:$0xff] %v1421
      %1430 = vst [vmem:[#allocation2 + $0x1b0] sm:$0xff] %v1422
      %1431 = vst [vmem:[#allocation2 + $0x1b8] sm:$0xff] %v1423
      %1432 = vrot.lane.b32.xlu0 %v1066, 112
      %v1433 = vpop.permute.xlu0 %1432
      %1434 = vrot.lane.b32.xlu0 %v1070, 112
      %v1435 = vpop.permute.xlu0 %1434
      %1436 = vrot.lane.b32.xlu0 %v1067, 112
      %v1437 = vpop.permute.xlu0 %1436
      %1438 = vrot.lane.b32.xlu0 %v1071, 112
      %v1439 = vpop.permute.xlu0 %1438
      %1440 = vrot.lane.b32.xlu0 %v1068, 112
      %v1441 = vpop.permute.xlu0 %1440
      %1442 = vrot.lane.b32.xlu0 %v1072, 112
      %v1443 = vpop.permute.xlu0 %1442
      %1444 = vrot.lane.b32.xlu0 %v1069, 112
      %v1445 = vpop.permute.xlu0 %1444
      %1446 = vrot.lane.b32.xlu0 %v1073, 112
      %v1447 = vpop.permute.xlu0 %1446
      %v1448 = vsel %vm894, %v1441, %v1445
      %v1449 = vsel %vm894, %v1443, %v1447
      %v1450 = vsel %vm894, %v1437, %v1441
      %v1451 = vsel %vm894, %v1439, %v1443
      %v1452 = vsel %vm894, %v1433, %v1437
      %v1453 = vsel %vm894, %v1435, %v1439
      %v1454 = vsel %vm894, %v1445, %v1433
      %v1455 = vsel %vm894, %v1447, %v1435
      %v1456 = vld [vmem:[%s899] ss:$8 sm:$0xf]
      %v1458 = vlaneseq
      %v1459 = vshrl.u32 %v1458, 7
      %v1460 = vsub.s32 0, %v1459
      %v1461 = vrot.slane %v1456, %v1460
      %v1462 = vlaneseq
      %v1463 = vshrl.u32 %v1462, 7
      %v1464 = vsub.s32 1, %v1463
      %v1465 = vrot.slane %v1456, %v1464
      %v1466 = vlaneseq
      %v1467 = vshrl.u32 %v1466, 7
      %v1468 = vsub.s32 2, %v1467
      %v1469 = vrot.slane %v1456, %v1468
      %v1470 = vlaneseq
      %v1471 = vshrl.u32 %v1470, 7
      %v1472 = vsub.s32 3, %v1471
      %v1473 = vrot.slane %v1456, %v1472
      %v1478 = vmul.f32 %v1452, %v1461
      %v1479 = vmul.f32 %v1450, %v1465
      %v1480 = vmul.f32 %v1448, %v1469
      %v1481 = vmul.f32 %v1454, %v1473
      %v1482 = vmul.f32 %v1453, %v1461
      %v1483 = vmul.f32 %v1451, %v1465
      %v1484 = vmul.f32 %v1449, %v1469
      %v1485 = vmul.f32 %v1455, %v1473
      %1486 = vst [vmem:[#allocation2 + $0x1c0] sm:$0xff] %v1478
      %1487 = vst [vmem:[#allocation2 + $0x1c8] sm:$0xff] %v1479
      %1488 = vst [vmem:[#allocation2 + $0x1d0] sm:$0xff] %v1480
      %1489 = vst [vmem:[#allocation2 + $0x1d8] sm:$0xff] %v1481
      %1490 = vst [vmem:[#allocation2 + $0x1e0] sm:$0xff] %v1482
      %1491 = vst [vmem:[#allocation2 + $0x1e8] sm:$0xff] %v1483
      %1492 = vst [vmem:[#allocation2 + $0x1f0] sm:$0xff] %v1484
      %1493 = vst [vmem:[#allocation2 + $0x1f8] sm:$0xff] %v1485
      %1494 = vrot.lane.b32.xlu0 %v1066, 111
      %v1495 = vpop.permute.xlu0 %1494
      %1496 = vrot.lane.b32.xlu0 %v1070, 111
      %v1497 = vpop.permute.xlu0 %1496
      %1498 = vrot.lane.b32.xlu0 %v1067, 111
      %v1499 = vpop.permute.xlu0 %1498
      %1500 = vrot.lane.b32.xlu0 %v1071, 111
      %v1501 = vpop.permute.xlu0 %1500
      %1502 = vrot.lane.b32.xlu0 %v1068, 111
      %v1503 = vpop.permute.xlu0 %1502
      %1504 = vrot.lane.b32.xlu0 %v1072, 111
      %v1505 = vpop.permute.xlu0 %1504
      %1506 = vrot.lane.b32.xlu0 %v1069, 111
      %v1507 = vpop.permute.xlu0 %1506
      %1508 = vrot.lane.b32.xlu0 %v1073, 111
      %v1509 = vpop.permute.xlu0 %1508
      %v1510 = vsel %vm974, %v1503, %v1507
      %v1511 = vsel %vm974, %v1505, %v1509
      %v1512 = vsel %vm974, %v1499, %v1503
      %v1513 = vsel %vm974, %v1501, %v1505
      %v1514 = vsel %vm974, %v1495, %v1499
      %v1515 = vsel %vm974, %v1497, %v1501
      %v1516 = vsel %vm974, %v1507, %v1495
      %v1517 = vsel %vm974, %v1509, %v1497
      %v1518 = vld [vmem:[%s979] ss:$8 sm:$0xf]
      %v1520 = vlaneseq
      %v1521 = vshrl.u32 %v1520, 7
      %v1522 = vsub.s32 0, %v1521
      %v1523 = vrot.slane %v1518, %v1522
      %v1524 = vlaneseq
      %v1525 = vshrl.u32 %v1524, 7
      %v1526 = vsub.s32 1, %v1525
      %v1527 = vrot.slane %v1518, %v1526
      %v1528 = vlaneseq
      %v1529 = vshrl.u32 %v1528, 7
      %v1530 = vsub.s32 2, %v1529
      %v1531 = vrot.slane %v1518, %v1530
      %v1532 = vlaneseq
      %v1533 = vshrl.u32 %v1532, 7
      %v1534 = vsub.s32 3, %v1533
      %v1535 = vrot.slane %v1518, %v1534
      %v1540 = vmul.f32 %v1514, %v1523
      %v1541 = vmul.f32 %v1512, %v1527
      %v1542 = vmul.f32 %v1510, %v1531
      %v1543 = vmul.f32 %v1516, %v1535
      %v1544 = vmul.f32 %v1515, %v1523
      %v1545 = vmul.f32 %v1513, %v1527
      %v1546 = vmul.f32 %v1511, %v1531
      %v1547 = vmul.f32 %v1517, %v1535
      %1548 = vst [vmem:[#allocation2 + $0x200] sm:$0xff] %v1540
      %1549 = vst [vmem:[#allocation2 + $0x208] sm:$0xff] %v1541
      %1550 = vst [vmem:[#allocation2 + $0x210] sm:$0xff] %v1542
      %1551 = vst [vmem:[#allocation2 + $0x218] sm:$0xff] %v1543
      %1552 = vst [vmem:[#allocation2 + $0x220] sm:$0xff] %v1544
      %1553 = vst [vmem:[#allocation2 + $0x228] sm:$0xff] %v1545
      %1554 = vst [vmem:[#allocation2 + $0x230] sm:$0xff] %v1546
      %1555 = vst [vmem:[#allocation2 + $0x238] sm:$0xff] %v1547
      %v1556 = vld [vmem:[%s4] sm:$0xff]
      %v1557 = vld [vmem:[%s4 + $0x8] sm:$0xff]
      %v1558 = vld [vmem:[%s4 + $0x10] sm:$0xff]
      %v1559 = vld [vmem:[%s4 + $0x18] sm:$0xff]
      %v1560 = vld [vmem:[%s4 + $0x20] sm:$0xff]
      %v1561 = vld [vmem:[%s4 + $0x28] sm:$0xff]
      %v1562 = vld [vmem:[%s4 + $0x30] sm:$0xff]
      %v1563 = vld [vmem:[%s4 + $0x38] sm:$0xff]
      %v1564 = vld [vmem:[#allocation2] sm:$0xff]
      %v1565 = vld [vmem:[#allocation2 + $0x8] sm:$0xff]
      %v1566 = vld [vmem:[#allocation2 + $0x10] sm:$0xff]
      %v1567 = vld [vmem:[#allocation2 + $0x18] sm:$0xff]
      %v1568 = vld [vmem:[#allocation2 + $0x20] sm:$0xff]
      %v1569 = vld [vmem:[#allocation2 + $0x28] sm:$0xff]
      %v1570 = vld [vmem:[#allocation2 + $0x30] sm:$0xff]
      %v1571 = vld [vmem:[#allocation2 + $0x38] sm:$0xff]
      %v1572 = vld [vmem:[#allocation2 + $0x40] sm:$0xff]
      %v1573 = vld [vmem:[#allocation2 + $0x48] sm:$0xff]
      %v1574 = vld [vmem:[#allocation2 + $0x50] sm:$0xff]
      %v1575 = vld [vmem:[#allocation2 + $0x58] sm:$0xff]
      %v1576 = vld [vmem:[#allocation2 + $0x60] sm:$0xff]
      %v1577 = vld [vmem:[#allocation2 + $0x68] sm:$0xff]
      %v1578 = vld [vmem:[#allocation2 + $0x70] sm:$0xff]
      %v1579 = vld [vmem:[#allocation2 + $0x78] sm:$0xff]
      %v1580 = vld [vmem:[#allocation2 + $0x80] sm:$0xff]
      %v1581 = vld [vmem:[#allocation2 + $0x88] sm:$0xff]
      %v1582 = vld [vmem:[#allocation2 + $0x90] sm:$0xff]
      %v1583 = vld [vmem:[#allocation2 + $0x98] sm:$0xff]
      %v1584 = vld [vmem:[#allocation2 + $0xa0] sm:$0xff]
      %v1585 = vld [vmem:[#allocation2 + $0xa8] sm:$0xff]
      %v1586 = vld [vmem:[#allocation2 + $0xb0] sm:$0xff]
      %v1587 = vld [vmem:[#allocation2 + $0xb8] sm:$0xff]
      %v1588 = vld [vmem:[#allocation2 + $0xc0] sm:$0xff]
      %v1589 = vld [vmem:[#allocation2 + $0xc8] sm:$0xff]
      %v1590 = vld [vmem:[#allocation2 + $0xd0] sm:$0xff]
      %v1591 = vld [vmem:[#allocation2 + $0xd8] sm:$0xff]
      %v1592 = vld [vmem:[#allocation2 + $0xe0] sm:$0xff]
      %v1593 = vld [vmem:[#allocation2 + $0xe8] sm:$0xff]
      %v1594 = vld [vmem:[#allocation2 + $0xf0] sm:$0xff]
      %v1595 = vld [vmem:[#allocation2 + $0xf8] sm:$0xff]
      %v1596 = vld [vmem:[#allocation2 + $0x100] sm:$0xff]
      %v1597 = vld [vmem:[#allocation2 + $0x108] sm:$0xff]
      %v1598 = vld [vmem:[#allocation2 + $0x110] sm:$0xff]
      %v1599 = vld [vmem:[#allocation2 + $0x118] sm:$0xff]
      %v1600 = vld [vmem:[#allocation2 + $0x120] sm:$0xff]
      %v1601 = vld [vmem:[#allocation2 + $0x128] sm:$0xff]
      %v1602 = vld [vmem:[#allocation2 + $0x130] sm:$0xff]
      %v1603 = vld [vmem:[#allocation2 + $0x138] sm:$0xff]
      %v1604 = vld [vmem:[#allocation2 + $0x140] sm:$0xff]
      %v1605 = vld [vmem:[#allocation2 + $0x148] sm:$0xff]
      %v1606 = vld [vmem:[#allocation2 + $0x150] sm:$0xff]
      %v1607 = vld [vmem:[#allocation2 + $0x158] sm:$0xff]
      %v1608 = vld [vmem:[#allocation2 + $0x160] sm:$0xff]
      %v1609 = vld [vmem:[#allocation2 + $0x168] sm:$0xff]
      %v1610 = vld [vmem:[#allocation2 + $0x170] sm:$0xff]
      %v1611 = vld [vmem:[#allocation2 + $0x178] sm:$0xff]
      %v1612 = vld [vmem:[#allocation2 + $0x180] sm:$0xff]
      %v1613 = vld [vmem:[#allocation2 + $0x188] sm:$0xff]
      %v1614 = vld [vmem:[#allocation2 + $0x190] sm:$0xff]
      %v1615 = vld [vmem:[#allocation2 + $0x198] sm:$0xff]
      %v1616 = vld [vmem:[#allocation2 + $0x1a0] sm:$0xff]
      %v1617 = vld [vmem:[#allocation2 + $0x1a8] sm:$0xff]
      %v1618 = vld [vmem:[#allocation2 + $0x1b0] sm:$0xff]
      %v1619 = vld [vmem:[#allocation2 + $0x1b8] sm:$0xff]
      %v1620 = vld [vmem:[#allocation2 + $0x1c0] sm:$0xff]
      %v1621 = vld [vmem:[#allocation2 + $0x1c8] sm:$0xff]
      %v1622 = vld [vmem:[#allocation2 + $0x1d0] sm:$0xff]
      %v1623 = vld [vmem:[#allocation2 + $0x1d8] sm:$0xff]
      %v1624 = vld [vmem:[#allocation2 + $0x1e0] sm:$0xff]
      %v1625 = vld [vmem:[#allocation2 + $0x1e8] sm:$0xff]
      %v1626 = vld [vmem:[#allocation2 + $0x1f0] sm:$0xff]
      %v1627 = vld [vmem:[#allocation2 + $0x1f8] sm:$0xff]
      %v1628 = vld [vmem:[#allocation2 + $0x200] sm:$0xff]
      %v1629 = vld [vmem:[#allocation2 + $0x208] sm:$0xff]
      %v1630 = vld [vmem:[#allocation2 + $0x210] sm:$0xff]
      %v1631 = vld [vmem:[#allocation2 + $0x218] sm:$0xff]
      %v1632 = vld [vmem:[#allocation2 + $0x220] sm:$0xff]
      %v1633 = vld [vmem:[#allocation2 + $0x228] sm:$0xff]
      %v1634 = vld [vmem:[#allocation2 + $0x230] sm:$0xff]
      %v1635 = vld [vmem:[#allocation2 + $0x238] sm:$0xff]
      %v1636 = vld [vmem:[%s5] sm:$0xff]
      %v1637 = vld [vmem:[%s5 + $0x8] sm:$0xff]
      %v1638 = vld [vmem:[%s5 + $0x10] sm:$0xff]
      %v1639 = vld [vmem:[%s5 + $0x18] sm:$0xff]
      %1641 = vset.pattern.permute.xlu0 0
      %1642 = vperm.xlu0 %1641, %v1636
      %v1643 = vpop.permute.xlu0 %1642
      %1646 = vset.pattern.permute.xlu0 0
      %1647 = vperm.xlu0 %1646, %v1637
      %v1648 = vpop.permute.xlu0 %1647
      %1651 = vset.pattern.permute.xlu0 0
      %1652 = vperm.xlu0 %1651, %v1638
      %v1653 = vpop.permute.xlu0 %1652
      %1656 = vset.pattern.permute.xlu0 0
      %1657 = vperm.xlu0 %1656, %v1639
      %v1658 = vpop.permute.xlu0 %1657
      %vm1660 = vcmask 130048
      %v1662 = vsel %vm1660, %v1557, 0
      %v1665 = vsel %vm1660, %v1559, 0
      %v1668 = vsel %vm1660, %v1561, 0
      %v1671 = vsel %vm1660, %v1563, 0
      %1673 = vmatprep.subr.mxu0 %v1625
      %1674 = vmatpush1.msra.mxu0 %v1624
      %1675 = vmatprep.subr.mxu0 %v1621
      %1676 = vmatpush1.msra.mxu0 %v1620
      %1677 = vmatprep.subr.mxu0 %v1617
      %1678 = vmatpush1.msra.mxu0 %v1616
      %1679 = vmatprep.subr.mxu0 %v1613
      %1680 = vmatpush1.msra.mxu0 %v1612
      %1681 = vmatprep.subr.mxu0 %v1609
      %1682 = vmatpush1.msra.mxu0 %v1608
      %1683 = vmatprep.subr.mxu0 %v1605
      %1684 = vmatpush1.msra.mxu0 %v1604
      %1685 = vmatprep.subr.mxu0 %v1601
      %1686 = vmatpush1.msra.mxu0 %v1600
      %1687 = vmatprep.subr.mxu0 %v1597
      %1688 = vmatpush1.msra.mxu0 %v1596
      %1689 = vmatprep.subr.mxu0 %v1593
      %1690 = vmatpush1.msra.mxu0 %v1592
      %1691 = vmatprep.subr.mxu0 %v1589
      %1692 = vmatpush1.msra.mxu0 %v1588
      %1693 = vmatprep.subr.mxu0 %v1585
      %1694 = vmatpush1.msra.mxu0 %v1584
      %1695 = vmatprep.subr.mxu0 %v1581
      %1696 = vmatpush1.msra.mxu0 %v1580
      %1697 = vmatprep.subr.mxu0 %v1577
      %1698 = vmatpush1.msra.mxu0 %v1576
      %1699 = vmatprep.subr.mxu0 %v1573
      %1700 = vmatpush1.msra.mxu0 %v1572
      %1701 = vmatprep.subr.mxu0 %v1569
      %1702 = vmatpush1.msra.mxu0 %v1568
      %1703 = vmatprep.subr.mxu0 %v1565
      %1704 = vmatpush1.msra.mxu0 %v1564
      %1705 = vmatprep.subr.mxu0 0.0
      %1706 = vmatpush2.msra.mxu0 0.0
      %1707 = vmatprep.subr.mxu0 0.0
      %1708 = vmatpush2.msra.mxu0 0.0
      %1709 = vmatprep.subr.mxu0 0.0
      %1710 = vmatpush2.msra.mxu0 0.0
      %1711 = vmatprep.subr.mxu0 0.0
      %1712 = vmatpush2.msra.mxu0 0.0
      %1713 = vmatprep.subr.mxu0 0.0
      %1714 = vmatpush2.msra.mxu0 0.0
      %1715 = vmatprep.subr.mxu0 0.0
      %1716 = vmatpush2.msra.mxu0 0.0
      %1717 = vmatprep.subr.mxu0 0.0
      %1718 = vmatpush2.msra.mxu0 0.0
      %1719 = vmatprep.subr.mxu0 0.0
      %1720 = vmatpush2.msra.mxu0 0.0
      %1721 = vmatprep.subr.mxu0 0.0
      %1722 = vmatpush2.msra.mxu0 0.0
      %1723 = vmatprep.subr.mxu0 0.0
      %1724 = vmatpush2.msra.mxu0 0.0
      %1725 = vmatprep.subr.mxu0 0.0
      %1726 = vmatpush2.msra.mxu0 0.0
      %1727 = vmatprep.subr.mxu0 0.0
      %1728 = vmatpush2.msra.mxu0 0.0
      %1729 = vmatprep.subr.mxu0 0.0
      %1730 = vmatpush2.msra.mxu0 0.0
      %1731 = vmatprep.subr.mxu0 0.0
      %1732 = vmatpush2.msra.mxu0 0.0
      %1733 = vmatprep.subr.mxu0 %v1633
      %1734 = vmatpush2.msra.mxu0 %v1632
      %1735 = vmatprep.subr.mxu0 %v1629
      %1736 = vmatpush2.msra.mxu0 %v1628
      %1737 = vmatprep.mubr.f32.mxu0 %v1662
      %1738 = vmatmul.mubr.f32.gmra.mxu0 %v1556
      %v1739 = vpop.f32.mrf.mxu0
      %v1740 = vadd.f32 %v1643, %v1739
      %v1741 = vpop.f32.mrf.mxu0
      %v1742 = vadd.f32 %v1643, %v1741
      %1743 = vmatprep.mubr.f32.mxu0 %v1665
      %1744 = vmatmul.mubr.f32.gmra.mxu0 %v1558
      %v1745 = vpop.f32.mrf.mxu0
      %v1746 = vadd.f32 %v1648, %v1745
      %v1747 = vpop.f32.mrf.mxu0
      %v1748 = vadd.f32 %v1648, %v1747
      %1749 = vmatprep.mubr.f32.mxu0 %v1668
      %1750 = vmatmul.mubr.f32.gmra.mxu0 %v1560
      %v1751 = vpop.f32.mrf.mxu0
      %v1752 = vadd.f32 %v1653, %v1751
      %v1753 = vpop.f32.mrf.mxu0
      %v1754 = vadd.f32 %v1653, %v1753
      %1755 = vmatprep.mubr.f32.mxu0 %v1671
      %1756 = vmatmul.mubr.f32.gmra.mxu0 %v1562
      %v1757 = vpop.f32.mrf.mxu0
      %v1758 = vadd.f32 %v1658, %v1757
      %v1759 = vpop.f32.mrf.mxu0
      %v1760 = vadd.f32 %v1658, %v1759
      %1761 = vdwg.mxu0
      %1762 = vmatprep.subr.mxu0 %v1627
      %1763 = vmatpush1.msra.mxu0 %v1626
      %1764 = vmatprep.subr.mxu0 %v1623
      %1765 = vmatpush1.msra.mxu0 %v1622
      %1766 = vmatprep.subr.mxu0 %v1619
      %1767 = vmatpush1.msra.mxu0 %v1618
      %1768 = vmatprep.subr.mxu0 %v1615
      %1769 = vmatpush1.msra.mxu0 %v1614
      %1770 = vmatprep.subr.mxu0 %v1611
      %1771 = vmatpush1.msra.mxu0 %v1610
      %1772 = vmatprep.subr.mxu0 %v1607
      %1773 = vmatpush1.msra.mxu0 %v1606
      %1774 = vmatprep.subr.mxu0 %v1603
      %1775 = vmatpush1.msra.mxu0 %v1602
      %1776 = vmatprep.subr.mxu0 %v1599
      %1777 = vmatpush1.msra.mxu0 %v1598
      %1778 = vmatprep.subr.mxu0 %v1595
      %1779 = vmatpush1.msra.mxu0 %v1594
      %1780 = vmatprep.subr.mxu0 %v1591
      %1781 = vmatpush1.msra.mxu0 %v1590
      %1782 = vmatprep.subr.mxu0 %v1587
      %1783 = vmatpush1.msra.mxu0 %v1586
      %1784 = vmatprep.subr.mxu0 %v1583
      %1785 = vmatpush1.msra.mxu0 %v1582
      %1786 = vmatprep.subr.mxu0 %v1579
      %1787 = vmatpush1.msra.mxu0 %v1578
      %1788 = vmatprep.subr.mxu0 %v1575
      %1789 = vmatpush1.msra.mxu0 %v1574
      %1790 = vmatprep.subr.mxu0 %v1571
      %1791 = vmatpush1.msra.mxu0 %v1570
      %1792 = vmatprep.subr.mxu0 %v1567
      %1793 = vmatpush1.msra.mxu0 %v1566
      %1794 = vmatprep.subr.mxu0 0.0
      %1795 = vmatpush2.msra.mxu0 0.0
      %1796 = vmatprep.subr.mxu0 0.0
      %1797 = vmatpush2.msra.mxu0 0.0
      %1798 = vmatprep.subr.mxu0 0.0
      %1799 = vmatpush2.msra.mxu0 0.0
      %1800 = vmatprep.subr.mxu0 0.0
      %1801 = vmatpush2.msra.mxu0 0.0
      %1802 = vmatprep.subr.mxu0 0.0
      %1803 = vmatpush2.msra.mxu0 0.0
      %1804 = vmatprep.subr.mxu0 0.0
      %1805 = vmatpush2.msra.mxu0 0.0
      %1806 = vmatprep.subr.mxu0 0.0
      %1807 = vmatpush2.msra.mxu0 0.0
      %1808 = vmatprep.subr.mxu0 0.0
      %1809 = vmatpush2.msra.mxu0 0.0
      %1810 = vmatprep.subr.mxu0 0.0
      %1811 = vmatpush2.msra.mxu0 0.0
      %1812 = vmatprep.subr.mxu0 0.0
      %1813 = vmatpush2.msra.mxu0 0.0
      %1814 = vmatprep.subr.mxu0 0.0
      %1815 = vmatpush2.msra.mxu0 0.0
      %1816 = vmatprep.subr.mxu0 0.0
      %1817 = vmatpush2.msra.mxu0 0.0
      %1818 = vmatprep.subr.mxu0 0.0
      %1819 = vmatpush2.msra.mxu0 0.0
      %1820 = vmatprep.subr.mxu0 0.0
      %1821 = vmatpush2.msra.mxu0 0.0
      %1822 = vmatprep.subr.mxu0 %v1635
      %1823 = vmatpush2.msra.mxu0 %v1634
      %1824 = vmatprep.subr.mxu0 %v1631
      %1825 = vmatpush2.msra.mxu0 %v1630
      %1826 = vmatprep.mubr.f32.mxu0 %v1662
      %1827 = vmatmul.mubr.f32.gmra.mxu0 %v1556
      %v1828 = vpop.f32.mrf.mxu0
      %v1829 = vadd.f32 %v1643, %v1828
      %v1830 = vpop.f32.mrf.mxu0
      %v1831 = vadd.f32 %v1643, %v1830
      %1832 = vmatprep.mubr.f32.mxu0 %v1665
      %1833 = vmatmul.mubr.f32.gmra.mxu0 %v1558
      %v1834 = vpop.f32.mrf.mxu0
      %v1835 = vadd.f32 %v1648, %v1834
      %v1836 = vpop.f32.mrf.mxu0
      %v1837 = vadd.f32 %v1648, %v1836
      %1838 = vmatprep.mubr.f32.mxu0 %v1668
      %1839 = vmatmul.mubr.f32.gmra.mxu0 %v1560
      %v1840 = vpop.f32.mrf.mxu0
      %v1841 = vadd.f32 %v1653, %v1840
      %v1842 = vpop.f32.mrf.mxu0
      %v1843 = vadd.f32 %v1653, %v1842
      %1844 = vmatprep.mubr.f32.mxu0 %v1671
      %1845 = vmatmul.mubr.f32.gmra.mxu0 %v1562
      %v1846 = vpop.f32.mrf.mxu0
      %v1847 = vadd.f32 %v1658, %v1846
      %v1848 = vpop.f32.mrf.mxu0
      %v1849 = vadd.f32 %v1658, %v1848
      %1850 = vdwg.mxu0
      %v1851 = vmax.f32 %v1740, 0.0
      %v1852 = vmax.f32 %v1742, 0.0
      %v1853 = vmax.f32 %v1829, 0.0
      %v1854 = vmax.f32 %v1831, 0.0
      %v1855 = vmax.f32 %v1746, 0.0
      %v1856 = vmax.f32 %v1748, 0.0
      %v1857 = vmax.f32 %v1835, 0.0
      %v1858 = vmax.f32 %v1837, 0.0
      %v1859 = vmax.f32 %v1752, 0.0
      %v1860 = vmax.f32 %v1754, 0.0
      %v1861 = vmax.f32 %v1841, 0.0
      %v1862 = vmax.f32 %v1843, 0.0
      %v1863 = vmax.f32 %v1758, 0.0
      %v1864 = vmax.f32 %v1760, 0.0
      %v1865 = vmax.f32 %v1847, 0.0
      %v1866 = vmax.f32 %v1849, 0.0
      %1867 = vrot.lane.b32.xlu0 %v1851, 17
      %v1868 = vpop.permute.xlu0 %1867
      %1869 = vrot.lane.b32.xlu0 %v1855, 17
      %v1870 = vpop.permute.xlu0 %1869
      %1871 = vrot.lane.b32.xlu0 %v1859, 17
      %v1872 = vpop.permute.xlu0 %1871
      %1873 = vrot.lane.b32.xlu0 %v1863, 17
      %v1874 = vpop.permute.xlu0 %1873
      %1875 = vrot.lane.b32.xlu0 %v1852, 17
      %v1876 = vpop.permute.xlu0 %1875
      %1877 = vrot.lane.b32.xlu0 %v1856, 17
      %v1878 = vpop.permute.xlu0 %1877
      %1879 = vrot.lane.b32.xlu0 %v1860, 17
      %v1880 = vpop.permute.xlu0 %1879
      %1881 = vrot.lane.b32.xlu0 %v1864, 17
      %v1882 = vpop.permute.xlu0 %1881
      %1883 = vrot.lane.b32.xlu0 %v1853, 17
      %v1884 = vpop.permute.xlu0 %1883
      %1885 = vrot.lane.b32.xlu0 %v1857, 17
      %v1886 = vpop.permute.xlu0 %1885
      %1887 = vrot.lane.b32.xlu0 %v1861, 17
      %v1888 = vpop.permute.xlu0 %1887
      %1889 = vrot.lane.b32.xlu0 %v1865, 17
      %v1890 = vpop.permute.xlu0 %1889
      %1891 = vrot.lane.b32.xlu0 %v1854, 17
      %v1892 = vpop.permute.xlu0 %1891
      %1893 = vrot.lane.b32.xlu0 %v1858, 17
      %v1894 = vpop.permute.xlu0 %1893
      %1895 = vrot.lane.b32.xlu0 %v1862, 17
      %v1896 = vpop.permute.xlu0 %1895
      %1897 = vrot.lane.b32.xlu0 %v1866, 17
      %v1898 = vpop.permute.xlu0 %1897
      %v1899 = vsel %vm389, %v1884, %v1892
      %v1900 = vsel %vm389, %v1886, %v1894
      %v1901 = vsel %vm389, %v1888, %v1896
      %v1902 = vsel %vm389, %v1890, %v1898
      %v1903 = vsel %vm389, %v1876, %v1884
      %v1904 = vsel %vm389, %v1878, %v1886
      %v1905 = vsel %vm389, %v1880, %v1888
      %v1906 = vsel %vm389, %v1882, %v1890
      %v1907 = vsel %vm389, %v1868, %v1876
      %v1908 = vsel %vm389, %v1870, %v1878
      %v1909 = vsel %vm389, %v1872, %v1880
      %v1910 = vsel %vm389, %v1874, %v1882
      %v1911 = vsel %vm389, %v1892, %v1868
      %v1912 = vsel %vm389, %v1894, %v1870
      %v1913 = vsel %vm389, %v1896, %v1872
      %v1914 = vsel %vm389, %v1898, %v1874
      %v1915 = vld [vmem:[%s1] ss:$8 sm:$0xf]
      %v1917 = vlaneseq
      %v1918 = vshrl.u32 %v1917, 7
      %v1919 = vsub.s32 0, %v1918
      %v1920 = vrot.slane %v1915, %v1919
      %v1921 = vlaneseq
      %v1922 = vshrl.u32 %v1921, 7
      %v1923 = vsub.s32 1, %v1922
      %v1924 = vrot.slane %v1915, %v1923
      %v1925 = vlaneseq
      %v1926 = vshrl.u32 %v1925, 7
      %v1927 = vsub.s32 2, %v1926
      %v1928 = vrot.slane %v1915, %v1927
      %v1929 = vlaneseq
      %v1930 = vshrl.u32 %v1929, 7
      %v1931 = vsub.s32 3, %v1930
      %v1932 = vrot.slane %v1915, %v1931
      %v1937 = vmul.f32 %v1911, %v1920
      %v1938 = vmul.f32 %v1907, %v1924
      %v1939 = vmul.f32 %v1903, %v1928
      %v1940 = vmul.f32 %v1899, %v1932
      %v1941 = vmul.f32 %v1912, %v1920
      %v1942 = vmul.f32 %v1908, %v1924
      %v1943 = vmul.f32 %v1904, %v1928
      %v1944 = vmul.f32 %v1900, %v1932
      %v1945 = vmul.f32 %v1913, %v1920
      %v1946 = vmul.f32 %v1909, %v1924
      %v1947 = vmul.f32 %v1905, %v1928
      %v1948 = vmul.f32 %v1901, %v1932
      %v1949 = vmul.f32 %v1914, %v1920
      %v1950 = vmul.f32 %v1910, %v1924
      %v1951 = vmul.f32 %v1906, %v1928
      %v1952 = vmul.f32 %v1902, %v1932
      %1953 = vst [vmem:[#allocation2] sm:$0xff] %v1937
      %1954 = vst [vmem:[#allocation2 + $0x8] sm:$0xff] %v1938
      %1955 = vst [vmem:[#allocation2 + $0x10] sm:$0xff] %v1939
      %1956 = vst [vmem:[#allocation2 + $0x18] sm:$0xff] %v1940
      %1957 = vst [vmem:[#allocation2 + $0x20] sm:$0xff] %v1941
      %1958 = vst [vmem:[#allocation2 + $0x28] sm:$0xff] %v1942
      %1959 = vst [vmem:[#allocation2 + $0x30] sm:$0xff] %v1943
      %1960 = vst [vmem:[#allocation2 + $0x38] sm:$0xff] %v1944
      %1961 = vst [vmem:[#allocation2 + $0x40] sm:$0xff] %v1945
      %1962 = vst [vmem:[#allocation2 + $0x48] sm:$0xff] %v1946
      %1963 = vst [vmem:[#allocation2 + $0x50] sm:$0xff] %v1947
      %1964 = vst [vmem:[#allocation2 + $0x58] sm:$0xff] %v1948
      %1965 = vst [vmem:[#allocation2 + $0x60] sm:$0xff] %v1949
      %1966 = vst [vmem:[#allocation2 + $0x68] sm:$0xff] %v1950
      %1967 = vst [vmem:[#allocation2 + $0x70] sm:$0xff] %v1951
      %1968 = vst [vmem:[#allocation2 + $0x78] sm:$0xff] %v1952
      %1969 = vrot.lane.b32.xlu0 %v1851, 16
      %v1970 = vpop.permute.xlu0 %1969
      %1971 = vrot.lane.b32.xlu0 %v1855, 16
      %v1972 = vpop.permute.xlu0 %1971
      %1973 = vrot.lane.b32.xlu0 %v1859, 16
      %v1974 = vpop.permute.xlu0 %1973
      %1975 = vrot.lane.b32.xlu0 %v1863, 16
      %v1976 = vpop.permute.xlu0 %1975
      %1977 = vrot.lane.b32.xlu0 %v1852, 16
      %v1978 = vpop.permute.xlu0 %1977
      %1979 = vrot.lane.b32.xlu0 %v1856, 16
      %v1980 = vpop.permute.xlu0 %1979
      %1981 = vrot.lane.b32.xlu0 %v1860, 16
      %v1982 = vpop.permute.xlu0 %1981
      %1983 = vrot.lane.b32.xlu0 %v1864, 16
      %v1984 = vpop.permute.xlu0 %1983
      %1985 = vrot.lane.b32.xlu0 %v1853, 16
      %v1986 = vpop.permute.xlu0 %1985
      %1987 = vrot.lane.b32.xlu0 %v1857, 16
      %v1988 = vpop.permute.xlu0 %1987
      %1989 = vrot.lane.b32.xlu0 %v1861, 16
      %v1990 = vpop.permute.xlu0 %1989
      %1991 = vrot.lane.b32.xlu0 %v1865, 16
      %v1992 = vpop.permute.xlu0 %1991
      %1993 = vrot.lane.b32.xlu0 %v1854, 16
      %v1994 = vpop.permute.xlu0 %1993
      %1995 = vrot.lane.b32.xlu0 %v1858, 16
      %v1996 = vpop.permute.xlu0 %1995
      %1997 = vrot.lane.b32.xlu0 %v1862, 16
      %v1998 = vpop.permute.xlu0 %1997
      %1999 = vrot.lane.b32.xlu0 %v1866, 16
      %v2000 = vpop.permute.xlu0 %1999
      %v2001 = vsel %vm470, %v1986, %v1994
      %v2002 = vsel %vm470, %v1988, %v1996
      %v2003 = vsel %vm470, %v1990, %v1998
      %v2004 = vsel %vm470, %v1992, %v2000
      %v2005 = vsel %vm470, %v1978, %v1986
      %v2006 = vsel %vm470, %v1980, %v1988
      %v2007 = vsel %vm470, %v1982, %v1990
      %v2008 = vsel %vm470, %v1984, %v1992
      %v2009 = vsel %vm470, %v1970, %v1978
      %v2010 = vsel %vm470, %v1972, %v1980
      %v2011 = vsel %vm470, %v1974, %v1982
      %v2012 = vsel %vm470, %v1976, %v1984
      %v2013 = vsel %vm470, %v1994, %v1970
      %v2014 = vsel %vm470, %v1996, %v1972
      %v2015 = vsel %vm470, %v1998, %v1974
      %v2016 = vsel %vm470, %v2000, %v1976
      %v2017 = vld [vmem:[%s475] ss:$8 sm:$0xf]
      %v2019 = vlaneseq
      %v2020 = vshrl.u32 %v2019, 7
      %v2021 = vsub.s32 0, %v2020
      %v2022 = vrot.slane %v2017, %v2021
      %v2023 = vlaneseq
      %v2024 = vshrl.u32 %v2023, 7
      %v2025 = vsub.s32 1, %v2024
      %v2026 = vrot.slane %v2017, %v2025
      %v2027 = vlaneseq
      %v2028 = vshrl.u32 %v2027, 7
      %v2029 = vsub.s32 2, %v2028
      %v2030 = vrot.slane %v2017, %v2029
      %v2031 = vlaneseq
      %v2032 = vshrl.u32 %v2031, 7
      %v2033 = vsub.s32 3, %v2032
      %v2034 = vrot.slane %v2017, %v2033
      %v2039 = vmul.f32 %v2013, %v2022
      %v2040 = vmul.f32 %v2009, %v2026
      %v2041 = vmul.f32 %v2005, %v2030
      %v2042 = vmul.f32 %v2001, %v2034
      %v2043 = vmul.f32 %v2014, %v2022
      %v2044 = vmul.f32 %v2010, %v2026
      %v2045 = vmul.f32 %v2006, %v2030
      %v2046 = vmul.f32 %v2002, %v2034
      %v2047 = vmul.f32 %v2015, %v2022
      %v2048 = vmul.f32 %v2011, %v2026
      %v2049 = vmul.f32 %v2007, %v2030
      %v2050 = vmul.f32 %v2003, %v2034
      %v2051 = vmul.f32 %v2016, %v2022
      %v2052 = vmul.f32 %v2012, %v2026
      %v2053 = vmul.f32 %v2008, %v2030
      %v2054 = vmul.f32 %v2004, %v2034
      %2055 = vst [vmem:[#allocation2 + $0x80] sm:$0xff] %v2039
      %2056 = vst [vmem:[#allocation2 + $0x88] sm:$0xff] %v2040
      %2057 = vst [vmem:[#allocation2 + $0x90] sm:$0xff] %v2041
      %2058 = vst [vmem:[#allocation2 + $0x98] sm:$0xff] %v2042
      %2059 = vst [vmem:[#allocation2 + $0xa0] sm:$0xff] %v2043
      %2060 = vst [vmem:[#allocation2 + $0xa8] sm:$0xff] %v2044
      %2061 = vst [vmem:[#allocation2 + $0xb0] sm:$0xff] %v2045
      %2062 = vst [vmem:[#allocation2 + $0xb8] sm:$0xff] %v2046
      %2063 = vst [vmem:[#allocation2 + $0xc0] sm:$0xff] %v2047
      %2064 = vst [vmem:[#allocation2 + $0xc8] sm:$0xff] %v2048
      %2065 = vst [vmem:[#allocation2 + $0xd0] sm:$0xff] %v2049
      %2066 = vst [vmem:[#allocation2 + $0xd8] sm:$0xff] %v2050
      %2067 = vst [vmem:[#allocation2 + $0xe0] sm:$0xff] %v2051
      %2068 = vst [vmem:[#allocation2 + $0xe8] sm:$0xff] %v2052
      %2069 = vst [vmem:[#allocation2 + $0xf0] sm:$0xff] %v2053
      %2070 = vst [vmem:[#allocation2 + $0xf8] sm:$0xff] %v2054
      %2071 = vrot.lane.b32.xlu0 %v1851, 15
      %v2072 = vpop.permute.xlu0 %2071
      %2073 = vrot.lane.b32.xlu0 %v1855, 15
      %v2074 = vpop.permute.xlu0 %2073
      %2075 = vrot.lane.b32.xlu0 %v1859, 15
      %v2076 = vpop.permute.xlu0 %2075
      %2077 = vrot.lane.b32.xlu0 %v1863, 15
      %v2078 = vpop.permute.xlu0 %2077
      %2079 = vrot.lane.b32.xlu0 %v1852, 15
      %v2080 = vpop.permute.xlu0 %2079
      %2081 = vrot.lane.b32.xlu0 %v1856, 15
      %v2082 = vpop.permute.xlu0 %2081
      %2083 = vrot.lane.b32.xlu0 %v1860, 15
      %v2084 = vpop.permute.xlu0 %2083
      %2085 = vrot.lane.b32.xlu0 %v1864, 15
      %v2086 = vpop.permute.xlu0 %2085
      %2087 = vrot.lane.b32.xlu0 %v1853, 15
      %v2088 = vpop.permute.xlu0 %2087
      %2089 = vrot.lane.b32.xlu0 %v1857, 15
      %v2090 = vpop.permute.xlu0 %2089
      %2091 = vrot.lane.b32.xlu0 %v1861, 15
      %v2092 = vpop.permute.xlu0 %2091
      %2093 = vrot.lane.b32.xlu0 %v1865, 15
      %v2094 = vpop.permute.xlu0 %2093
      %2095 = vrot.lane.b32.xlu0 %v1854, 15
      %v2096 = vpop.permute.xlu0 %2095
      %2097 = vrot.lane.b32.xlu0 %v1858, 15
      %v2098 = vpop.permute.xlu0 %2097
      %2099 = vrot.lane.b32.xlu0 %v1862, 15
      %v2100 = vpop.permute.xlu0 %2099
      %2101 = vrot.lane.b32.xlu0 %v1866, 15
      %v2102 = vpop.permute.xlu0 %2101
      %v2103 = vsel %vm550, %v2088, %v2096
      %v2104 = vsel %vm550, %v2090, %v2098
      %v2105 = vsel %vm550, %v2092, %v2100
      %v2106 = vsel %vm550, %v2094, %v2102
      %v2107 = vsel %vm550, %v2080, %v2088
      %v2108 = vsel %vm550, %v2082, %v2090
      %v2109 = vsel %vm550, %v2084, %v2092
      %v2110 = vsel %vm550, %v2086, %v2094
      %v2111 = vsel %vm550, %v2072, %v2080
      %v2112 = vsel %vm550, %v2074, %v2082
      %v2113 = vsel %vm550, %v2076, %v2084
      %v2114 = vsel %vm550, %v2078, %v2086
      %v2115 = vsel %vm550, %v2096, %v2072
      %v2116 = vsel %vm550, %v2098, %v2074
      %v2117 = vsel %vm550, %v2100, %v2076
      %v2118 = vsel %vm550, %v2102, %v2078
      %v2119 = vld [vmem:[%s555] ss:$8 sm:$0xf]
      %v2121 = vlaneseq
      %v2122 = vshrl.u32 %v2121, 7
      %v2123 = vsub.s32 0, %v2122
      %v2124 = vrot.slane %v2119, %v2123
      %v2125 = vlaneseq
      %v2126 = vshrl.u32 %v2125, 7
      %v2127 = vsub.s32 1, %v2126
      %v2128 = vrot.slane %v2119, %v2127
      %v2129 = vlaneseq
      %v2130 = vshrl.u32 %v2129, 7
      %v2131 = vsub.s32 2, %v2130
      %v2132 = vrot.slane %v2119, %v2131
      %v2133 = vlaneseq
      %v2134 = vshrl.u32 %v2133, 7
      %v2135 = vsub.s32 3, %v2134
      %v2136 = vrot.slane %v2119, %v2135
      %v2141 = vmul.f32 %v2115, %v2124
      %v2142 = vmul.f32 %v2111, %v2128
      %v2143 = vmul.f32 %v2107, %v2132
      %v2144 = vmul.f32 %v2103, %v2136
      %v2145 = vmul.f32 %v2116, %v2124
      %v2146 = vmul.f32 %v2112, %v2128
      %v2147 = vmul.f32 %v2108, %v2132
      %v2148 = vmul.f32 %v2104, %v2136
      %v2149 = vmul.f32 %v2117, %v2124
      %v2150 = vmul.f32 %v2113, %v2128
      %v2151 = vmul.f32 %v2109, %v2132
      %v2152 = vmul.f32 %v2105, %v2136
      %v2153 = vmul.f32 %v2118, %v2124
      %v2154 = vmul.f32 %v2114, %v2128
      %v2155 = vmul.f32 %v2110, %v2132
      %v2156 = vmul.f32 %v2106, %v2136
      %2157 = vst [vmem:[#allocation2 + $0x100] sm:$0xff] %v2141
      %2158 = vst [vmem:[#allocation2 + $0x108] sm:$0xff] %v2142
      %2159 = vst [vmem:[#allocation2 + $0x110] sm:$0xff] %v2143
      %2160 = vst [vmem:[#allocation2 + $0x118] sm:$0xff] %v2144
      %2161 = vst [vmem:[#allocation2 + $0x120] sm:$0xff] %v2145
      %2162 = vst [vmem:[#allocation2 + $0x128] sm:$0xff] %v2146
      %2163 = vst [vmem:[#allocation2 + $0x130] sm:$0xff] %v2147
      %2164 = vst [vmem:[#allocation2 + $0x138] sm:$0xff] %v2148
      %2165 = vst [vmem:[#allocation2 + $0x140] sm:$0xff] %v2149
      %2166 = vst [vmem:[#allocation2 + $0x148] sm:$0xff] %v2150
      %2167 = vst [vmem:[#allocation2 + $0x150] sm:$0xff] %v2151
      %2168 = vst [vmem:[#allocation2 + $0x158] sm:$0xff] %v2152
      %2169 = vst [vmem:[#allocation2 + $0x160] sm:$0xff] %v2153
      %2170 = vst [vmem:[#allocation2 + $0x168] sm:$0xff] %v2154
      %2171 = vst [vmem:[#allocation2 + $0x170] sm:$0xff] %v2155
      %2172 = vst [vmem:[#allocation2 + $0x178] sm:$0xff] %v2156
      %2173 = vrot.lane.b32.xlu0 %v1851, 1
      %v2174 = vpop.permute.xlu0 %2173
      %2175 = vrot.lane.b32.xlu0 %v1855, 1
      %v2176 = vpop.permute.xlu0 %2175
      %2177 = vrot.lane.b32.xlu0 %v1859, 1
      %v2178 = vpop.permute.xlu0 %2177
      %2179 = vrot.lane.b32.xlu0 %v1863, 1
      %v2180 = vpop.permute.xlu0 %2179
      %2181 = vrot.lane.b32.xlu0 %v1852, 1
      %v2182 = vpop.permute.xlu0 %2181
      %2183 = vrot.lane.b32.xlu0 %v1856, 1
      %v2184 = vpop.permute.xlu0 %2183
      %2185 = vrot.lane.b32.xlu0 %v1860, 1
      %v2186 = vpop.permute.xlu0 %2185
      %2187 = vrot.lane.b32.xlu0 %v1864, 1
      %v2188 = vpop.permute.xlu0 %2187
      %2189 = vrot.lane.b32.xlu0 %v1853, 1
      %v2190 = vpop.permute.xlu0 %2189
      %2191 = vrot.lane.b32.xlu0 %v1857, 1
      %v2192 = vpop.permute.xlu0 %2191
      %2193 = vrot.lane.b32.xlu0 %v1861, 1
      %v2194 = vpop.permute.xlu0 %2193
      %2195 = vrot.lane.b32.xlu0 %v1865, 1
      %v2196 = vpop.permute.xlu0 %2195
      %2197 = vrot.lane.b32.xlu0 %v1854, 1
      %v2198 = vpop.permute.xlu0 %2197
      %2199 = vrot.lane.b32.xlu0 %v1858, 1
      %v2200 = vpop.permute.xlu0 %2199
      %2201 = vrot.lane.b32.xlu0 %v1862, 1
      %v2202 = vpop.permute.xlu0 %2201
      %2203 = vrot.lane.b32.xlu0 %v1866, 1
      %v2204 = vpop.permute.xlu0 %2203
      %v2205 = vsel %vm630, %v2190, %v2198
      %v2206 = vsel %vm630, %v2192, %v2200
      %v2207 = vsel %vm630, %v2194, %v2202
      %v2208 = vsel %vm630, %v2196, %v2204
      %v2209 = vsel %vm630, %v2182, %v2190
      %v2210 = vsel %vm630, %v2184, %v2192
      %v2211 = vsel %vm630, %v2186, %v2194
      %v2212 = vsel %vm630, %v2188, %v2196
      %v2213 = vsel %vm630, %v2174, %v2182
      %v2214 = vsel %vm630, %v2176, %v2184
      %v2215 = vsel %vm630, %v2178, %v2186
      %v2216 = vsel %vm630, %v2180, %v2188
      %v2217 = vsel %vm630, %v2198, %v2174
      %v2218 = vsel %vm630, %v2200, %v2176
      %v2219 = vsel %vm630, %v2202, %v2178
      %v2220 = vsel %vm630, %v2204, %v2180
      %v2221 = vld [vmem:[%s635] ss:$8 sm:$0xf]
      %v2223 = vlaneseq
      %v2224 = vshrl.u32 %v2223, 7
      %v2225 = vsub.s32 0, %v2224
      %v2226 = vrot.slane %v2221, %v2225
      %v2227 = vlaneseq
      %v2228 = vshrl.u32 %v2227, 7
      %v2229 = vsub.s32 1, %v2228
      %v2230 = vrot.slane %v2221, %v2229
      %v2231 = vlaneseq
      %v2232 = vshrl.u32 %v2231, 7
      %v2233 = vsub.s32 2, %v2232
      %v2234 = vrot.slane %v2221, %v2233
      %v2235 = vlaneseq
      %v2236 = vshrl.u32 %v2235, 7
      %v2237 = vsub.s32 3, %v2236
      %v2238 = vrot.slane %v2221, %v2237
      %v2243 = vmul.f32 %v2217, %v2226
      %v2244 = vmul.f32 %v2213, %v2230
      %v2245 = vmul.f32 %v2209, %v2234
      %v2246 = vmul.f32 %v2205, %v2238
      %v2247 = vmul.f32 %v2218, %v2226
      %v2248 = vmul.f32 %v2214, %v2230
      %v2249 = vmul.f32 %v2210, %v2234
      %v2250 = vmul.f32 %v2206, %v2238
      %v2251 = vmul.f32 %v2219, %v2226
      %v2252 = vmul.f32 %v2215, %v2230
      %v2253 = vmul.f32 %v2211, %v2234
      %v2254 = vmul.f32 %v2207, %v2238
      %v2255 = vmul.f32 %v2220, %v2226
      %v2256 = vmul.f32 %v2216, %v2230
      %v2257 = vmul.f32 %v2212, %v2234
      %v2258 = vmul.f32 %v2208, %v2238
      %2259 = vst [vmem:[#allocation2 + $0x180] sm:$0xff] %v2243
      %2260 = vst [vmem:[#allocation2 + $0x188] sm:$0xff] %v2244
      %2261 = vst [vmem:[#allocation2 + $0x190] sm:$0xff] %v2245
      %2262 = vst [vmem:[#allocation2 + $0x198] sm:$0xff] %v2246
      %2263 = vst [vmem:[#allocation2 + $0x1a0] sm:$0xff] %v2247
      %2264 = vst [vmem:[#allocation2 + $0x1a8] sm:$0xff] %v2248
      %2265 = vst [vmem:[#allocation2 + $0x1b0] sm:$0xff] %v2249
      %2266 = vst [vmem:[#allocation2 + $0x1b8] sm:$0xff] %v2250
      %2267 = vst [vmem:[#allocation2 + $0x1c0] sm:$0xff] %v2251
      %2268 = vst [vmem:[#allocation2 + $0x1c8] sm:$0xff] %v2252
      %2269 = vst [vmem:[#allocation2 + $0x1d0] sm:$0xff] %v2253
      %2270 = vst [vmem:[#allocation2 + $0x1d8] sm:$0xff] %v2254
      %2271 = vst [vmem:[#allocation2 + $0x1e0] sm:$0xff] %v2255
      %2272 = vst [vmem:[#allocation2 + $0x1e8] sm:$0xff] %v2256
      %2273 = vst [vmem:[#allocation2 + $0x1f0] sm:$0xff] %v2257
      %2274 = vst [vmem:[#allocation2 + $0x1f8] sm:$0xff] %v2258
      %2275 = vst [vmem:[#allocation2 + $0x200] sm:$0xff] %v1851
      %2276 = vst [vmem:[#allocation2 + $0x208] sm:$0xff] %v1852
      %2277 = vst [vmem:[#allocation2 + $0x210] sm:$0xff] %v1853
      %2278 = vst [vmem:[#allocation2 + $0x218] sm:$0xff] %v1854
      %2279 = vst [vmem:[#allocation2 + $0x220] sm:$0xff] %v1855
      %2280 = vst [vmem:[#allocation2 + $0x228] sm:$0xff] %v1856
      %2281 = vst [vmem:[#allocation2 + $0x230] sm:$0xff] %v1857
      %2282 = vst [vmem:[#allocation2 + $0x238] sm:$0xff] %v1858
      %2283 = vst [vmem:[#allocation2 + $0x240] sm:$0xff] %v1859
      %2284 = vst [vmem:[#allocation2 + $0x248] sm:$0xff] %v1860
      %2285 = vst [vmem:[#allocation2 + $0x250] sm:$0xff] %v1861
      %2286 = vst [vmem:[#allocation2 + $0x258] sm:$0xff] %v1862
      %2287 = vst [vmem:[#allocation2 + $0x260] sm:$0xff] %v1863
      %2288 = vst [vmem:[#allocation2 + $0x268] sm:$0xff] %v1864
      %2289 = vst [vmem:[#allocation2 + $0x270] sm:$0xff] %v1865
      %2290 = vst [vmem:[#allocation2 + $0x278] sm:$0xff] %v1866
      %2291 = vrot.lane.b32.xlu0 %v1851, 127
      %v2292 = vpop.permute.xlu0 %2291
      %2293 = vrot.lane.b32.xlu0 %v1855, 127
      %v2294 = vpop.permute.xlu0 %2293
      %2295 = vrot.lane.b32.xlu0 %v1859, 127
      %v2296 = vpop.permute.xlu0 %2295
      %2297 = vrot.lane.b32.xlu0 %v1863, 127
      %v2298 = vpop.permute.xlu0 %2297
      %2299 = vrot.lane.b32.xlu0 %v1852, 127
      %v2300 = vpop.permute.xlu0 %2299
      %2301 = vrot.lane.b32.xlu0 %v1856, 127
      %v2302 = vpop.permute.xlu0 %2301
      %2303 = vrot.lane.b32.xlu0 %v1860, 127
      %v2304 = vpop.permute.xlu0 %2303
      %2305 = vrot.lane.b32.xlu0 %v1864, 127
      %v2306 = vpop.permute.xlu0 %2305
      %2307 = vrot.lane.b32.xlu0 %v1853, 127
      %v2308 = vpop.permute.xlu0 %2307
      %2309 = vrot.lane.b32.xlu0 %v1857, 127
      %v2310 = vpop.permute.xlu0 %2309
      %2311 = vrot.lane.b32.xlu0 %v1861, 127
      %v2312 = vpop.permute.xlu0 %2311
      %2313 = vrot.lane.b32.xlu0 %v1865, 127
      %v2314 = vpop.permute.xlu0 %2313
      %2315 = vrot.lane.b32.xlu0 %v1854, 127
      %v2316 = vpop.permute.xlu0 %2315
      %2317 = vrot.lane.b32.xlu0 %v1858, 127
      %v2318 = vpop.permute.xlu0 %2317
      %2319 = vrot.lane.b32.xlu0 %v1862, 127
      %v2320 = vpop.permute.xlu0 %2319
      %2321 = vrot.lane.b32.xlu0 %v1866, 127
      %v2322 = vpop.permute.xlu0 %2321
      %v2323 = vsel %vm734, %v2308, %v2316
      %v2324 = vsel %vm734, %v2310, %v2318
      %v2325 = vsel %vm734, %v2312, %v2320
      %v2326 = vsel %vm734, %v2314, %v2322
      %v2327 = vsel %vm734, %v2300, %v2308
      %v2328 = vsel %vm734, %v2302, %v2310
      %v2329 = vsel %vm734, %v2304, %v2312
      %v2330 = vsel %vm734, %v2306, %v2314
      %v2331 = vsel %vm734, %v2292, %v2300
      %v2332 = vsel %vm734, %v2294, %v2302
      %v2333 = vsel %vm734, %v2296, %v2304
      %v2334 = vsel %vm734, %v2298, %v2306
      %v2335 = vsel %vm734, %v2316, %v2292
      %v2336 = vsel %vm734, %v2318, %v2294
      %v2337 = vsel %vm734, %v2320, %v2296
      %v2338 = vsel %vm734, %v2322, %v2298
      %v2339 = vld [vmem:[%s739] ss:$8 sm:$0xf]
      %v2341 = vlaneseq
      %v2342 = vshrl.u32 %v2341, 7
      %v2343 = vsub.s32 0, %v2342
      %v2344 = vrot.slane %v2339, %v2343
      %v2345 = vlaneseq
      %v2346 = vshrl.u32 %v2345, 7
      %v2347 = vsub.s32 1, %v2346
      %v2348 = vrot.slane %v2339, %v2347
      %v2349 = vlaneseq
      %v2350 = vshrl.u32 %v2349, 7
      %v2351 = vsub.s32 2, %v2350
      %v2352 = vrot.slane %v2339, %v2351
      %v2353 = vlaneseq
      %v2354 = vshrl.u32 %v2353, 7
      %v2355 = vsub.s32 3, %v2354
      %v2356 = vrot.slane %v2339, %v2355
      %v2361 = vmul.f32 %v2331, %v2344
      %v2362 = vmul.f32 %v2327, %v2348
      %v2363 = vmul.f32 %v2323, %v2352
      %v2364 = vmul.f32 %v2335, %v2356
      %v2365 = vmul.f32 %v2332, %v2344
      %v2366 = vmul.f32 %v2328, %v2348
      %v2367 = vmul.f32 %v2324, %v2352
      %v2368 = vmul.f32 %v2336, %v2356
      %v2369 = vmul.f32 %v2333, %v2344
      %v2370 = vmul.f32 %v2329, %v2348
      %v2371 = vmul.f32 %v2325, %v2352
      %v2372 = vmul.f32 %v2337, %v2356
      %v2373 = vmul.f32 %v2334, %v2344
      %v2374 = vmul.f32 %v2330, %v2348
      %v2375 = vmul.f32 %v2326, %v2352
      %v2376 = vmul.f32 %v2338, %v2356
      %2377 = vst [vmem:[#allocation2 + $0x280] sm:$0xff] %v2361
      %2378 = vst [vmem:[#allocation2 + $0x288] sm:$0xff] %v2362
      %2379 = vst [vmem:[#allocation2 + $0x290] sm:$0xff] %v2363
      %2380 = vst [vmem:[#allocation2 + $0x298] sm:$0xff] %v2364
      %2381 = vst [vmem:[#allocation2 + $0x2a0] sm:$0xff] %v2365
      %2382 = vst [vmem:[#allocation2 + $0x2a8] sm:$0xff] %v2366
      %2383 = vst [vmem:[#allocation2 + $0x2b0] sm:$0xff] %v2367
      %2384 = vst [vmem:[#allocation2 + $0x2b8] sm:$0xff] %v2368
      %2385 = vst [vmem:[#allocation2 + $0x2c0] sm:$0xff] %v2369
      %2386 = vst [vmem:[#allocation2 + $0x2c8] sm:$0xff] %v2370
      %2387 = vst [vmem:[#allocation2 + $0x2d0] sm:$0xff] %v2371
      %2388 = vst [vmem:[#allocation2 + $0x2d8] sm:$0xff] %v2372
      %2389 = vst [vmem:[#allocation2 + $0x2e0] sm:$0xff] %v2373
      %2390 = vst [vmem:[#allocation2 + $0x2e8] sm:$0xff] %v2374
      %2391 = vst [vmem:[#allocation2 + $0x2f0] sm:$0xff] %v2375
      %2392 = vst [vmem:[#allocation2 + $0x2f8] sm:$0xff] %v2376
      %2393 = vrot.lane.b32.xlu0 %v1851, 113
      %v2394 = vpop.permute.xlu0 %2393
      %2395 = vrot.lane.b32.xlu0 %v1855, 113
      %v2396 = vpop.permute.xlu0 %2395
      %2397 = vrot.lane.b32.xlu0 %v1859, 113
      %v2398 = vpop.permute.xlu0 %2397
      %2399 = vrot.lane.b32.xlu0 %v1863, 113
      %v2400 = vpop.permute.xlu0 %2399
      %2401 = vrot.lane.b32.xlu0 %v1852, 113
      %v2402 = vpop.permute.xlu0 %2401
      %2403 = vrot.lane.b32.xlu0 %v1856, 113
      %v2404 = vpop.permute.xlu0 %2403
      %2405 = vrot.lane.b32.xlu0 %v1860, 113
      %v2406 = vpop.permute.xlu0 %2405
      %2407 = vrot.lane.b32.xlu0 %v1864, 113
      %v2408 = vpop.permute.xlu0 %2407
      %2409 = vrot.lane.b32.xlu0 %v1853, 113
      %v2410 = vpop.permute.xlu0 %2409
      %2411 = vrot.lane.b32.xlu0 %v1857, 113
      %v2412 = vpop.permute.xlu0 %2411
      %2413 = vrot.lane.b32.xlu0 %v1861, 113
      %v2414 = vpop.permute.xlu0 %2413
      %2415 = vrot.lane.b32.xlu0 %v1865, 113
      %v2416 = vpop.permute.xlu0 %2415
      %2417 = vrot.lane.b32.xlu0 %v1854, 113
      %v2418 = vpop.permute.xlu0 %2417
      %2419 = vrot.lane.b32.xlu0 %v1858, 113
      %v2420 = vpop.permute.xlu0 %2419
      %2421 = vrot.lane.b32.xlu0 %v1862, 113
      %v2422 = vpop.permute.xlu0 %2421
      %2423 = vrot.lane.b32.xlu0 %v1866, 113
      %v2424 = vpop.permute.xlu0 %2423
      %v2425 = vsel %vm814, %v2410, %v2418
      %v2426 = vsel %vm814, %v2412, %v2420
      %v2427 = vsel %vm814, %v2414, %v2422
      %v2428 = vsel %vm814, %v2416, %v2424
      %v2429 = vsel %vm814, %v2402, %v2410
      %v2430 = vsel %vm814, %v2404, %v2412
      %v2431 = vsel %vm814, %v2406, %v2414
      %v2432 = vsel %vm814, %v2408, %v2416
      %v2433 = vsel %vm814, %v2394, %v2402
      %v2434 = vsel %vm814, %v2396, %v2404
      %v2435 = vsel %vm814, %v2398, %v2406
      %v2436 = vsel %vm814, %v2400, %v2408
      %v2437 = vsel %vm814, %v2418, %v2394
      %v2438 = vsel %vm814, %v2420, %v2396
      %v2439 = vsel %vm814, %v2422, %v2398
      %v2440 = vsel %vm814, %v2424, %v2400
      %v2441 = vld [vmem:[%s819] ss:$8 sm:$0xf]
      %v2443 = vlaneseq
      %v2444 = vshrl.u32 %v2443, 7
      %v2445 = vsub.s32 0, %v2444
      %v2446 = vrot.slane %v2441, %v2445
      %v2447 = vlaneseq
      %v2448 = vshrl.u32 %v2447, 7
      %v2449 = vsub.s32 1, %v2448
      %v2450 = vrot.slane %v2441, %v2449
      %v2451 = vlaneseq
      %v2452 = vshrl.u32 %v2451, 7
      %v2453 = vsub.s32 2, %v2452
      %v2454 = vrot.slane %v2441, %v2453
      %v2455 = vlaneseq
      %v2456 = vshrl.u32 %v2455, 7
      %v2457 = vsub.s32 3, %v2456
      %v2458 = vrot.slane %v2441, %v2457
      %v2463 = vmul.f32 %v2433, %v2446
      %v2464 = vmul.f32 %v2429, %v2450
      %v2465 = vmul.f32 %v2425, %v2454
      %v2466 = vmul.f32 %v2437, %v2458
      %v2467 = vmul.f32 %v2434, %v2446
      %v2468 = vmul.f32 %v2430, %v2450
      %v2469 = vmul.f32 %v2426, %v2454
      %v2470 = vmul.f32 %v2438, %v2458
      %v2471 = vmul.f32 %v2435, %v2446
      %v2472 = vmul.f32 %v2431, %v2450
      %v2473 = vmul.f32 %v2427, %v2454
      %v2474 = vmul.f32 %v2439, %v2458
      %v2475 = vmul.f32 %v2436, %v2446
      %v2476 = vmul.f32 %v2432, %v2450
      %v2477 = vmul.f32 %v2428, %v2454
      %v2478 = vmul.f32 %v2440, %v2458
      %2479 = vst [vmem:[#allocation2 + $0x300] sm:$0xff] %v2463
      %2480 = vst [vmem:[#allocation2 + $0x308] sm:$0xff] %v2464
      %2481 = vst [vmem:[#allocation2 + $0x310] sm:$0xff] %v2465
      %2482 = vst [vmem:[#allocation2 + $0x318] sm:$0xff] %v2466
      %2483 = vst [vmem:[#allocation2 + $0x320] sm:$0xff] %v2467
      %2484 = vst [vmem:[#allocation2 + $0x328] sm:$0xff] %v2468
      %2485 = vst [vmem:[#allocation2 + $0x330] sm:$0xff] %v2469
      %2486 = vst [vmem:[#allocation2 + $0x338] sm:$0xff] %v2470
      %2487 = vst [vmem:[#allocation2 + $0x340] sm:$0xff] %v2471
      %2488 = vst [vmem:[#allocation2 + $0x348] sm:$0xff] %v2472
      %2489 = vst [vmem:[#allocation2 + $0x350] sm:$0xff] %v2473
      %2490 = vst [vmem:[#allocation2 + $0x358] sm:$0xff] %v2474
      %2491 = vst [vmem:[#allocation2 + $0x360] sm:$0xff] %v2475
      %2492 = vst [vmem:[#allocation2 + $0x368] sm:$0xff] %v2476
      %2493 = vst [vmem:[#allocation2 + $0x370] sm:$0xff] %v2477
      %2494 = vst [vmem:[#allocation2 + $0x378] sm:$0xff] %v2478
      %2495 = vrot.lane.b32.xlu0 %v1851, 112
      %v2496 = vpop.permute.xlu0 %2495
      %2497 = vrot.lane.b32.xlu0 %v1855, 112
      %v2498 = vpop.permute.xlu0 %2497
      %2499 = vrot.lane.b32.xlu0 %v1859, 112
      %v2500 = vpop.permute.xlu0 %2499
      %2501 = vrot.lane.b32.xlu0 %v1863, 112
      %v2502 = vpop.permute.xlu0 %2501
      %2503 = vrot.lane.b32.xlu0 %v1852, 112
      %v2504 = vpop.permute.xlu0 %2503
      %2505 = vrot.lane.b32.xlu0 %v1856, 112
      %v2506 = vpop.permute.xlu0 %2505
      %2507 = vrot.lane.b32.xlu0 %v1860, 112
      %v2508 = vpop.permute.xlu0 %2507
      %2509 = vrot.lane.b32.xlu0 %v1864, 112
      %v2510 = vpop.permute.xlu0 %2509
      %2511 = vrot.lane.b32.xlu0 %v1853, 112
      %v2512 = vpop.permute.xlu0 %2511
      %2513 = vrot.lane.b32.xlu0 %v1857, 112
      %v2514 = vpop.permute.xlu0 %2513
      %2515 = vrot.lane.b32.xlu0 %v1861, 112
      %v2516 = vpop.permute.xlu0 %2515
      %2517 = vrot.lane.b32.xlu0 %v1865, 112
      %v2518 = vpop.permute.xlu0 %2517
      %2519 = vrot.lane.b32.xlu0 %v1854, 112
      %v2520 = vpop.permute.xlu0 %2519
      %2521 = vrot.lane.b32.xlu0 %v1858, 112
      %v2522 = vpop.permute.xlu0 %2521
      %2523 = vrot.lane.b32.xlu0 %v1862, 112
      %v2524 = vpop.permute.xlu0 %2523
      %2525 = vrot.lane.b32.xlu0 %v1866, 112
      %v2526 = vpop.permute.xlu0 %2525
      %v2527 = vsel %vm894, %v2512, %v2520
      %v2528 = vsel %vm894, %v2514, %v2522
      %v2529 = vsel %vm894, %v2516, %v2524
      %v2530 = vsel %vm894, %v2518, %v2526
      %v2531 = vsel %vm894, %v2504, %v2512
      %v2532 = vsel %vm894, %v2506, %v2514
      %v2533 = vsel %vm894, %v2508, %v2516
      %v2534 = vsel %vm894, %v2510, %v2518
      %v2535 = vsel %vm894, %v2496, %v2504
      %v2536 = vsel %vm894, %v2498, %v2506
      %v2537 = vsel %vm894, %v2500, %v2508
      %v2538 = vsel %vm894, %v2502, %v2510
      %v2539 = vsel %vm894, %v2520, %v2496
      %v2540 = vsel %vm894, %v2522, %v2498
      %v2541 = vsel %vm894, %v2524, %v2500
      %v2542 = vsel %vm894, %v2526, %v2502
      %v2543 = vld [vmem:[%s899] ss:$8 sm:$0xf]
      %v2545 = vlaneseq
      %v2546 = vshrl.u32 %v2545, 7
      %v2547 = vsub.s32 0, %v2546
      %v2548 = vrot.slane %v2543, %v2547
      %v2549 = vlaneseq
      %v2550 = vshrl.u32 %v2549, 7
      %v2551 = vsub.s32 1, %v2550
      %v2552 = vrot.slane %v2543, %v2551
      %v2553 = vlaneseq
      %v2554 = vshrl.u32 %v2553, 7
      %v2555 = vsub.s32 2, %v2554
      %v2556 = vrot.slane %v2543, %v2555
      %v2557 = vlaneseq
      %v2558 = vshrl.u32 %v2557, 7
      %v2559 = vsub.s32 3, %v2558
      %v2560 = vrot.slane %v2543, %v2559
      %v2565 = vmul.f32 %v2535, %v2548
      %v2566 = vmul.f32 %v2531, %v2552
      %v2567 = vmul.f32 %v2527, %v2556
      %v2568 = vmul.f32 %v2539, %v2560
      %v2569 = vmul.f32 %v2536, %v2548
      %v2570 = vmul.f32 %v2532, %v2552
      %v2571 = vmul.f32 %v2528, %v2556
      %v2572 = vmul.f32 %v2540, %v2560
      %v2573 = vmul.f32 %v2537, %v2548
      %v2574 = vmul.f32 %v2533, %v2552
      %v2575 = vmul.f32 %v2529, %v2556
      %v2576 = vmul.f32 %v2541, %v2560
      %v2577 = vmul.f32 %v2538, %v2548
      %v2578 = vmul.f32 %v2534, %v2552
      %v2579 = vmul.f32 %v2530, %v2556
      %v2580 = vmul.f32 %v2542, %v2560
      %2581 = vst [vmem:[#allocation2 + $0x380] sm:$0xff] %v2565
      %2582 = vst [vmem:[#allocation2 + $0x388] sm:$0xff] %v2566
      %2583 = vst [vmem:[#allocation2 + $0x390] sm:$0xff] %v2567
      %2584 = vst [vmem:[#allocation2 + $0x398] sm:$0xff] %v2568
      %2585 = vst [vmem:[#allocation2 + $0x3a0] sm:$0xff] %v2569
      %2586 = vst [vmem:[#allocation2 + $0x3a8] sm:$0xff] %v2570
      %2587 = vst [vmem:[#allocation2 + $0x3b0] sm:$0xff] %v2571
      %2588 = vst [vmem:[#allocation2 + $0x3b8] sm:$0xff] %v2572
      %2589 = vst [vmem:[#allocation2 + $0x3c0] sm:$0xff] %v2573
      %2590 = vst [vmem:[#allocation2 + $0x3c8] sm:$0xff] %v2574
      %2591 = vst [vmem:[#allocation2 + $0x3d0] sm:$0xff] %v2575
      %2592 = vst [vmem:[#allocation2 + $0x3d8] sm:$0xff] %v2576
      %2593 = vst [vmem:[#allocation2 + $0x3e0] sm:$0xff] %v2577
      %2594 = vst [vmem:[#allocation2 + $0x3e8] sm:$0xff] %v2578
      %2595 = vst [vmem:[#allocation2 + $0x3f0] sm:$0xff] %v2579
      %2596 = vst [vmem:[#allocation2 + $0x3f8] sm:$0xff] %v2580
      %2597 = vrot.lane.b32.xlu0 %v1851, 111
      %v2598 = vpop.permute.xlu0 %2597
      %2599 = vrot.lane.b32.xlu0 %v1855, 111
      %v2600 = vpop.permute.xlu0 %2599
      %2601 = vrot.lane.b32.xlu0 %v1859, 111
      %v2602 = vpop.permute.xlu0 %2601
      %2603 = vrot.lane.b32.xlu0 %v1863, 111
      %v2604 = vpop.permute.xlu0 %2603
      %2605 = vrot.lane.b32.xlu0 %v1852, 111
      %v2606 = vpop.permute.xlu0 %2605
      %2607 = vrot.lane.b32.xlu0 %v1856, 111
      %v2608 = vpop.permute.xlu0 %2607
      %2609 = vrot.lane.b32.xlu0 %v1860, 111
      %v2610 = vpop.permute.xlu0 %2609
      %2611 = vrot.lane.b32.xlu0 %v1864, 111
      %v2612 = vpop.permute.xlu0 %2611
      %2613 = vrot.lane.b32.xlu0 %v1853, 111
      %v2614 = vpop.permute.xlu0 %2613
      %2615 = vrot.lane.b32.xlu0 %v1857, 111
      %v2616 = vpop.permute.xlu0 %2615
      %2617 = vrot.lane.b32.xlu0 %v1861, 111
      %v2618 = vpop.permute.xlu0 %2617
      %2619 = vrot.lane.b32.xlu0 %v1865, 111
      %v2620 = vpop.permute.xlu0 %2619
      %2621 = vrot.lane.b32.xlu0 %v1854, 111
      %v2622 = vpop.permute.xlu0 %2621
      %2623 = vrot.lane.b32.xlu0 %v1858, 111
      %v2624 = vpop.permute.xlu0 %2623
      %2625 = vrot.lane.b32.xlu0 %v1862, 111
      %v2626 = vpop.permute.xlu0 %2625
      %2627 = vrot.lane.b32.xlu0 %v1866, 111
      %v2628 = vpop.permute.xlu0 %2627
      %v2629 = vsel %vm974, %v2614, %v2622
      %v2630 = vsel %vm974, %v2616, %v2624
      %v2631 = vsel %vm974, %v2618, %v2626
      %v2632 = vsel %vm974, %v2620, %v2628
      %v2633 = vsel %vm974, %v2606, %v2614
      %v2634 = vsel %vm974, %v2608, %v2616
      %v2635 = vsel %vm974, %v2610, %v2618
      %v2636 = vsel %vm974, %v2612, %v2620
      %v2637 = vsel %vm974, %v2598, %v2606
      %v2638 = vsel %vm974, %v2600, %v2608
      %v2639 = vsel %vm974, %v2602, %v2610
      %v2640 = vsel %vm974, %v2604, %v2612
      %v2641 = vsel %vm974, %v2622, %v2598
      %v2642 = vsel %vm974, %v2624, %v2600
      %v2643 = vsel %vm974, %v2626, %v2602
      %v2644 = vsel %vm974, %v2628, %v2604
      %v2645 = vld [vmem:[%s979] ss:$8 sm:$0xf]
      %v2647 = vlaneseq
      %v2648 = vshrl.u32 %v2647, 7
      %v2649 = vsub.s32 0, %v2648
      %v2650 = vrot.slane %v2645, %v2649
      %v2651 = vlaneseq
      %v2652 = vshrl.u32 %v2651, 7
      %v2653 = vsub.s32 1, %v2652
      %v2654 = vrot.slane %v2645, %v2653
      %v2655 = vlaneseq
      %v2656 = vshrl.u32 %v2655, 7
      %v2657 = vsub.s32 2, %v2656
      %v2658 = vrot.slane %v2645, %v2657
      %v2659 = vlaneseq
      %v2660 = vshrl.u32 %v2659, 7
      %v2661 = vsub.s32 3, %v2660
      %v2662 = vrot.slane %v2645, %v2661
      %v2667 = vmul.f32 %v2637, %v2650
      %v2668 = vmul.f32 %v2633, %v2654
      %v2669 = vmul.f32 %v2629, %v2658
      %v2670 = vmul.f32 %v2641, %v2662
      %v2671 = vmul.f32 %v2638, %v2650
      %v2672 = vmul.f32 %v2634, %v2654
      %v2673 = vmul.f32 %v2630, %v2658
      %v2674 = vmul.f32 %v2642, %v2662
      %v2675 = vmul.f32 %v2639, %v2650
      %v2676 = vmul.f32 %v2635, %v2654
      %v2677 = vmul.f32 %v2631, %v2658
      %v2678 = vmul.f32 %v2643, %v2662
      %v2679 = vmul.f32 %v2640, %v2650
      %v2680 = vmul.f32 %v2636, %v2654
      %v2681 = vmul.f32 %v2632, %v2658
      %v2682 = vmul.f32 %v2644, %v2662
      %2683 = vst [vmem:[#allocation2 + $0x400] sm:$0xff] %v2667
      %2684 = vst [vmem:[#allocation2 + $0x408] sm:$0xff] %v2668
      %2685 = vst [vmem:[#allocation2 + $0x410] sm:$0xff] %v2669
      %2686 = vst [vmem:[#allocation2 + $0x418] sm:$0xff] %v2670
      %2687 = vst [vmem:[#allocation2 + $0x420] sm:$0xff] %v2671
      %2688 = vst [vmem:[#allocation2 + $0x428] sm:$0xff] %v2672
      %2689 = vst [vmem:[#allocation2 + $0x430] sm:$0xff] %v2673
      %2690 = vst [vmem:[#allocation2 + $0x438] sm:$0xff] %v2674
      %2691 = vst [vmem:[#allocation2 + $0x440] sm:$0xff] %v2675
      %2692 = vst [vmem:[#allocation2 + $0x448] sm:$0xff] %v2676
      %2693 = vst [vmem:[#allocation2 + $0x450] sm:$0xff] %v2677
      %2694 = vst [vmem:[#allocation2 + $0x458] sm:$0xff] %v2678
      %2695 = vst [vmem:[#allocation2 + $0x460] sm:$0xff] %v2679
      %2696 = vst [vmem:[#allocation2 + $0x468] sm:$0xff] %v2680
      %2697 = vst [vmem:[#allocation2 + $0x470] sm:$0xff] %v2681
      %2698 = vst [vmem:[#allocation2 + $0x478] sm:$0xff] %v2682
      %v2699 = vld [vmem:[%s6] sm:$0xff]
      %v2700 = vld [vmem:[%s6 + $0x8] sm:$0xff]
      %v2701 = vld [vmem:[%s6 + $0x10] sm:$0xff]
      %v2702 = vld [vmem:[%s6 + $0x18] sm:$0xff]
      %v2703 = vld [vmem:[%s6 + $0x20] sm:$0xff]
      %v2704 = vld [vmem:[%s6 + $0x28] sm:$0xff]
      %v2705 = vld [vmem:[#allocation2] sm:$0xff]
      %v2706 = vld [vmem:[#allocation2 + $0x8] sm:$0xff]
      %v2707 = vld [vmem:[#allocation2 + $0x10] sm:$0xff]
      %v2708 = vld [vmem:[#allocation2 + $0x18] sm:$0xff]
      %v2709 = vld [vmem:[#allocation2 + $0x20] sm:$0xff]
      %v2710 = vld [vmem:[#allocation2 + $0x28] sm:$0xff]
      %v2711 = vld [vmem:[#allocation2 + $0x30] sm:$0xff]
      %v2712 = vld [vmem:[#allocation2 + $0x38] sm:$0xff]
      %v2713 = vld [vmem:[#allocation2 + $0x40] sm:$0xff]
      %v2714 = vld [vmem:[#allocation2 + $0x48] sm:$0xff]
      %v2715 = vld [vmem:[#allocation2 + $0x50] sm:$0xff]
      %v2716 = vld [vmem:[#allocation2 + $0x58] sm:$0xff]
      %v2717 = vld [vmem:[#allocation2 + $0x60] sm:$0xff]
      %v2718 = vld [vmem:[#allocation2 + $0x68] sm:$0xff]
      %v2719 = vld [vmem:[#allocation2 + $0x70] sm:$0xff]
      %v2720 = vld [vmem:[#allocation2 + $0x78] sm:$0xff]
      %v2721 = vld [vmem:[#allocation2 + $0x80] sm:$0xff]
      %v2722 = vld [vmem:[#allocation2 + $0x88] sm:$0xff]
      %v2723 = vld [vmem:[#allocation2 + $0x90] sm:$0xff]
      %v2724 = vld [vmem:[#allocation2 + $0x98] sm:$0xff]
      %v2725 = vld [vmem:[#allocation2 + $0xa0] sm:$0xff]
      %v2726 = vld [vmem:[#allocation2 + $0xa8] sm:$0xff]
      %v2727 = vld [vmem:[#allocation2 + $0xb0] sm:$0xff]
      %v2728 = vld [vmem:[#allocation2 + $0xb8] sm:$0xff]
      %v2729 = vld [vmem:[#allocation2 + $0xc0] sm:$0xff]
      %v2730 = vld [vmem:[#allocation2 + $0xc8] sm:$0xff]
      %v2731 = vld [vmem:[#allocation2 + $0xd0] sm:$0xff]
      %v2732 = vld [vmem:[#allocation2 + $0xd8] sm:$0xff]
      %v2733 = vld [vmem:[#allocation2 + $0xe0] sm:$0xff]
      %v2734 = vld [vmem:[#allocation2 + $0xe8] sm:$0xff]
      %v2735 = vld [vmem:[#allocation2 + $0xf0] sm:$0xff]
      %v2736 = vld [vmem:[#allocation2 + $0xf8] sm:$0xff]
      %v2737 = vld [vmem:[#allocation2 + $0x100] sm:$0xff]
      %v2738 = vld [vmem:[#allocation2 + $0x108] sm:$0xff]
      %v2739 = vld [vmem:[#allocation2 + $0x110] sm:$0xff]
      %v2740 = vld [vmem:[#allocation2 + $0x118] sm:$0xff]
      %v2741 = vld [vmem:[#allocation2 + $0x120] sm:$0xff]
      %v2742 = vld [vmem:[#allocation2 + $0x128] sm:$0xff]
      %v2743 = vld [vmem:[#allocation2 + $0x130] sm:$0xff]
      %v2744 = vld [vmem:[#allocation2 + $0x138] sm:$0xff]
      %v2745 = vld [vmem:[#allocation2 + $0x140] sm:$0xff]
      %v2746 = vld [vmem:[#allocation2 + $0x148] sm:$0xff]
      %v2747 = vld [vmem:[#allocation2 + $0x150] sm:$0xff]
      %v2748 = vld [vmem:[#allocation2 + $0x158] sm:$0xff]
      %v2749 = vld [vmem:[#allocation2 + $0x160] sm:$0xff]
      %v2750 = vld [vmem:[#allocation2 + $0x168] sm:$0xff]
      %v2751 = vld [vmem:[#allocation2 + $0x170] sm:$0xff]
      %v2752 = vld [vmem:[#allocation2 + $0x178] sm:$0xff]
      %v2753 = vld [vmem:[#allocation2 + $0x180] sm:$0xff]
      %v2754 = vld [vmem:[#allocation2 + $0x188] sm:$0xff]
      %v2755 = vld [vmem:[#allocation2 + $0x190] sm:$0xff]
      %v2756 = vld [vmem:[#allocation2 + $0x198] sm:$0xff]
      %v2757 = vld [vmem:[#allocation2 + $0x1a0] sm:$0xff]
      %v2758 = vld [vmem:[#allocation2 + $0x1a8] sm:$0xff]
      %v2759 = vld [vmem:[#allocation2 + $0x1b0] sm:$0xff]
      %v2760 = vld [vmem:[#allocation2 + $0x1b8] sm:$0xff]
      %v2761 = vld [vmem:[#allocation2 + $0x1c0] sm:$0xff]
      %v2762 = vld [vmem:[#allocation2 + $0x1c8] sm:$0xff]
      %v2763 = vld [vmem:[#allocation2 + $0x1d0] sm:$0xff]
      %v2764 = vld [vmem:[#allocation2 + $0x1d8] sm:$0xff]
      %v2765 = vld [vmem:[#allocation2 + $0x1e0] sm:$0xff]
      %v2766 = vld [vmem:[#allocation2 + $0x1e8] sm:$0xff]
      %v2767 = vld [vmem:[#allocation2 + $0x1f0] sm:$0xff]
      %v2768 = vld [vmem:[#allocation2 + $0x1f8] sm:$0xff]
      %v2769 = vld [vmem:[#allocation2 + $0x200] sm:$0xff]
      %v2770 = vld [vmem:[#allocation2 + $0x208] sm:$0xff]
      %v2771 = vld [vmem:[#allocation2 + $0x210] sm:$0xff]
      %v2772 = vld [vmem:[#allocation2 + $0x218] sm:$0xff]
      %v2773 = vld [vmem:[#allocation2 + $0x220] sm:$0xff]
      %v2774 = vld [vmem:[#allocation2 + $0x228] sm:$0xff]
      %v2775 = vld [vmem:[#allocation2 + $0x230] sm:$0xff]
      %v2776 = vld [vmem:[#allocation2 + $0x238] sm:$0xff]
      %v2777 = vld [vmem:[#allocation2 + $0x240] sm:$0xff]
      %v2778 = vld [vmem:[#allocation2 + $0x248] sm:$0xff]
      %v2779 = vld [vmem:[#allocation2 + $0x250] sm:$0xff]
      %v2780 = vld [vmem:[#allocation2 + $0x258] sm:$0xff]
      %v2781 = vld [vmem:[#allocation2 + $0x260] sm:$0xff]
      %v2782 = vld [vmem:[#allocation2 + $0x268] sm:$0xff]
      %v2783 = vld [vmem:[#allocation2 + $0x270] sm:$0xff]
      %v2784 = vld [vmem:[#allocation2 + $0x278] sm:$0xff]
      %v2785 = vld [vmem:[#allocation2 + $0x280] sm:$0xff]
      %v2786 = vld [vmem:[#allocation2 + $0x288] sm:$0xff]
      %v2787 = vld [vmem:[#allocation2 + $0x290] sm:$0xff]
      %v2788 = vld [vmem:[#allocation2 + $0x298] sm:$0xff]
      %v2789 = vld [vmem:[#allocation2 + $0x2a0] sm:$0xff]
      %v2790 = vld [vmem:[#allocation2 + $0x2a8] sm:$0xff]
      %v2791 = vld [vmem:[#allocation2 + $0x2b0] sm:$0xff]
      %v2792 = vld [vmem:[#allocation2 + $0x2b8] sm:$0xff]
      %v2793 = vld [vmem:[#allocation2 + $0x2c0] sm:$0xff]
      %v2794 = vld [vmem:[#allocation2 + $0x2c8] sm:$0xff]
      %v2795 = vld [vmem:[#allocation2 + $0x2d0] sm:$0xff]
      %v2796 = vld [vmem:[#allocation2 + $0x2d8] sm:$0xff]
      %v2797 = vld [vmem:[#allocation2 + $0x2e0] sm:$0xff]
      %v2798 = vld [vmem:[#allocation2 + $0x2e8] sm:$0xff]
      %v2799 = vld [vmem:[#allocation2 + $0x2f0] sm:$0xff]
      %v2800 = vld [vmem:[#allocation2 + $0x2f8] sm:$0xff]
      %v2801 = vld [vmem:[#allocation2 + $0x300] sm:$0xff]
      %v2802 = vld [vmem:[#allocation2 + $0x308] sm:$0xff]
      %v2803 = vld [vmem:[#allocation2 + $0x310] sm:$0xff]
      %v2804 = vld [vmem:[#allocation2 + $0x318] sm:$0xff]
      %v2805 = vld [vmem:[#allocation2 + $0x320] sm:$0xff]
      %v2806 = vld [vmem:[#allocation2 + $0x328] sm:$0xff]
      %v2807 = vld [vmem:[#allocation2 + $0x330] sm:$0xff]
      %v2808 = vld [vmem:[#allocation2 + $0x338] sm:$0xff]
      %v2809 = vld [vmem:[#allocation2 + $0x340] sm:$0xff]
      %v2810 = vld [vmem:[#allocation2 + $0x348] sm:$0xff]
      %v2811 = vld [vmem:[#allocation2 + $0x350] sm:$0xff]
      %v2812 = vld [vmem:[#allocation2 + $0x358] sm:$0xff]
      %v2813 = vld [vmem:[#allocation2 + $0x360] sm:$0xff]
      %v2814 = vld [vmem:[#allocation2 + $0x368] sm:$0xff]
      %v2815 = vld [vmem:[#allocation2 + $0x370] sm:$0xff]
      %v2816 = vld [vmem:[#allocation2 + $0x378] sm:$0xff]
      %v2817 = vld [vmem:[#allocation2 + $0x380] sm:$0xff]
      %v2818 = vld [vmem:[#allocation2 + $0x388] sm:$0xff]
      %v2819 = vld [vmem:[#allocation2 + $0x390] sm:$0xff]
      %v2820 = vld [vmem:[#allocation2 + $0x398] sm:$0xff]
      %v2821 = vld [vmem:[#allocation2 + $0x3a0] sm:$0xff]
      %v2822 = vld [vmem:[#allocation2 + $0x3a8] sm:$0xff]
      %v2823 = vld [vmem:[#allocation2 + $0x3b0] sm:$0xff]
      %v2824 = vld [vmem:[#allocation2 + $0x3b8] sm:$0xff]
      %v2825 = vld [vmem:[#allocation2 + $0x3c0] sm:$0xff]
      %v2826 = vld [vmem:[#allocation2 + $0x3c8] sm:$0xff]
      %v2827 = vld [vmem:[#allocation2 + $0x3d0] sm:$0xff]
      %v2828 = vld [vmem:[#allocation2 + $0x3d8] sm:$0xff]
      %v2829 = vld [vmem:[#allocation2 + $0x3e0] sm:$0xff]
      %v2830 = vld [vmem:[#allocation2 + $0x3e8] sm:$0xff]
      %v2831 = vld [vmem:[#allocation2 + $0x3f0] sm:$0xff]
      %v2832 = vld [vmem:[#allocation2 + $0x3f8] sm:$0xff]
      %v2833 = vld [vmem:[#allocation2 + $0x400] sm:$0xff]
      %v2834 = vld [vmem:[#allocation2 + $0x408] sm:$0xff]
      %v2835 = vld [vmem:[#allocation2 + $0x410] sm:$0xff]
      %v2836 = vld [vmem:[#allocation2 + $0x418] sm:$0xff]
      %v2837 = vld [vmem:[#allocation2 + $0x420] sm:$0xff]
      %v2838 = vld [vmem:[#allocation2 + $0x428] sm:$0xff]
      %v2839 = vld [vmem:[#allocation2 + $0x430] sm:$0xff]
      %v2840 = vld [vmem:[#allocation2 + $0x438] sm:$0xff]
      %v2841 = vld [vmem:[#allocation2 + $0x440] sm:$0xff]
      %v2842 = vld [vmem:[#allocation2 + $0x448] sm:$0xff]
      %v2843 = vld [vmem:[#allocation2 + $0x450] sm:$0xff]
      %v2844 = vld [vmem:[#allocation2 + $0x458] sm:$0xff]
      %v2845 = vld [vmem:[#allocation2 + $0x460] sm:$0xff]
      %v2846 = vld [vmem:[#allocation2 + $0x468] sm:$0xff]
      %v2847 = vld [vmem:[#allocation2 + $0x470] sm:$0xff]
      %v2848 = vld [vmem:[#allocation2 + $0x478] sm:$0xff]
      %v2849 = vld [vmem:[%s7] sm:$0xff]
      %v2850 = vld [vmem:[%s7 + $0x8] sm:$0xff]
      %2852 = vset.pattern.permute.xlu0 0
      %2853 = vperm.xlu0 %2852, %v2849
      %v2854 = vpop.permute.xlu0 %2853
      %2857 = vset.pattern.permute.xlu0 0
      %2858 = vperm.xlu0 %2857, %v2850
      %v2859 = vpop.permute.xlu0 %2858
      %vm2861 = vcmask 261120
      %v2863 = vsel %vm2861, %v2701, 0
      %v2866 = vsel %vm2861, %v2704, 0
      %2868 = vmatprep.subr.mxu0 %v2766
      %2869 = vmatpush1.msra.mxu0 %v2765
      %2870 = vmatprep.subr.mxu0 %v2762
      %2871 = vmatpush1.msra.mxu0 %v2761
      %2872 = vmatprep.subr.mxu0 %v2758
      %2873 = vmatpush1.msra.mxu0 %v2757
      %2874 = vmatprep.subr.mxu0 %v2754
      %2875 = vmatpush1.msra.mxu0 %v2753
      %2876 = vmatprep.subr.mxu0 %v2750
      %2877 = vmatpush1.msra.mxu0 %v2749
      %2878 = vmatprep.subr.mxu0 %v2746
      %2879 = vmatpush1.msra.mxu0 %v2745
      %2880 = vmatprep.subr.mxu0 %v2742
      %2881 = vmatpush1.msra.mxu0 %v2741
      %2882 = vmatprep.subr.mxu0 %v2738
      %2883 = vmatpush1.msra.mxu0 %v2737
      %2884 = vmatprep.subr.mxu0 %v2734
      %2885 = vmatpush1.msra.mxu0 %v2733
      %2886 = vmatprep.subr.mxu0 %v2730
      %2887 = vmatpush1.msra.mxu0 %v2729
      %2888 = vmatprep.subr.mxu0 %v2726
      %2889 = vmatpush1.msra.mxu0 %v2725
      %2890 = vmatprep.subr.mxu0 %v2722
      %2891 = vmatpush1.msra.mxu0 %v2721
      %2892 = vmatprep.subr.mxu0 %v2718
      %2893 = vmatpush1.msra.mxu0 %v2717
      %2894 = vmatprep.subr.mxu0 %v2714
      %2895 = vmatpush1.msra.mxu0 %v2713
      %2896 = vmatprep.subr.mxu0 %v2710
      %2897 = vmatpush1.msra.mxu0 %v2709
      %2898 = vmatprep.subr.mxu0 %v2706
      %2899 = vmatpush1.msra.mxu0 %v2705
      %2900 = vmatprep.subr.mxu0 %v2830
      %2901 = vmatpush2.msra.mxu0 %v2829
      %2902 = vmatprep.subr.mxu0 %v2826
      %2903 = vmatpush2.msra.mxu0 %v2825
      %2904 = vmatprep.subr.mxu0 %v2822
      %2905 = vmatpush2.msra.mxu0 %v2821
      %2906 = vmatprep.subr.mxu0 %v2818
      %2907 = vmatpush2.msra.mxu0 %v2817
      %2908 = vmatprep.subr.mxu0 %v2814
      %2909 = vmatpush2.msra.mxu0 %v2813
      %2910 = vmatprep.subr.mxu0 %v2810
      %2911 = vmatpush2.msra.mxu0 %v2809
      %2912 = vmatprep.subr.mxu0 %v2806
      %2913 = vmatpush2.msra.mxu0 %v2805
      %2914 = vmatprep.subr.mxu0 %v2802
      %2915 = vmatpush2.msra.mxu0 %v2801
      %2916 = vmatprep.subr.mxu0 %v2798
      %2917 = vmatpush2.msra.mxu0 %v2797
      %2918 = vmatprep.subr.mxu0 %v2794
      %2919 = vmatpush2.msra.mxu0 %v2793
      %2920 = vmatprep.subr.mxu0 %v2790
      %2921 = vmatpush2.msra.mxu0 %v2789
      %2922 = vmatprep.subr.mxu0 %v2786
      %2923 = vmatpush2.msra.mxu0 %v2785
      %2924 = vmatprep.subr.mxu0 %v2782
      %2925 = vmatpush2.msra.mxu0 %v2781
      %2926 = vmatprep.subr.mxu0 %v2778
      %2927 = vmatpush2.msra.mxu0 %v2777
      %2928 = vmatprep.subr.mxu0 %v2774
      %2929 = vmatpush2.msra.mxu0 %v2773
      %2930 = vmatprep.subr.mxu0 %v2770
      %2931 = vmatpush2.msra.mxu0 %v2769
      %2932 = vmatprep.mubr.f32.mxu0 %v2700
      %2933 = vmatmul.mubr.f32.gmra.mxu0 %v2699
      %v2934 = vpop.f32.mrf.mxu0
      %v2935 = vadd.f32 %v2854, %v2934
      %v2936 = vpop.f32.mrf.mxu0
      %v2937 = vadd.f32 %v2854, %v2936
      %2938 = vmatprep.mubr.f32.mxu0 %v2703
      %2939 = vmatmul.mubr.f32.gmra.mxu0 %v2702
      %v2940 = vpop.f32.mrf.mxu0
      %v2941 = vadd.f32 %v2859, %v2940
      %v2942 = vpop.f32.mrf.mxu0
      %v2943 = vadd.f32 %v2859, %v2942
      %2944 = vdwg.mxu0
      %2945 = vmatprep.subr.mxu0 0.0
      %2946 = vmatpush1.msra.mxu0 0.0
      %2947 = vmatprep.subr.mxu0 0.0
      %2948 = vmatpush1.msra.mxu0 0.0
      %2949 = vmatprep.subr.mxu0 0.0
      %2950 = vmatpush1.msra.mxu0 0.0
      %2951 = vmatprep.subr.mxu0 0.0
      %2952 = vmatpush1.msra.mxu0 0.0
      %2953 = vmatprep.subr.mxu0 0.0
      %2954 = vmatpush1.msra.mxu0 0.0
      %2955 = vmatprep.subr.mxu0 0.0
      %2956 = vmatpush1.msra.mxu0 0.0
      %2957 = vmatprep.subr.mxu0 0.0
      %2958 = vmatpush1.msra.mxu0 0.0
      %2959 = vmatprep.subr.mxu0 0.0
      %2960 = vmatpush1.msra.mxu0 0.0
      %2961 = vmatprep.subr.mxu0 0.0
      %2962 = vmatpush1.msra.mxu0 0.0
      %2963 = vmatprep.subr.mxu0 0.0
      %2964 = vmatpush1.msra.mxu0 0.0
      %2965 = vmatprep.subr.mxu0 0.0
      %2966 = vmatpush1.msra.mxu0 0.0
      %2967 = vmatprep.subr.mxu0 0.0
      %2968 = vmatpush1.msra.mxu0 0.0
      %2969 = vmatprep.subr.mxu0 %v2846
      %2970 = vmatpush1.msra.mxu0 %v2845
      %2971 = vmatprep.subr.mxu0 %v2842
      %2972 = vmatpush1.msra.mxu0 %v2841
      %2973 = vmatprep.subr.mxu0 %v2838
      %2974 = vmatpush1.msra.mxu0 %v2837
      %2975 = vmatprep.subr.mxu0 %v2834
      %2976 = vmatpush1.msra.mxu0 %v2833
      %2977 = vmatprep.subr.mxu0 0.0
      %2978 = vmatpush2.msra.mxu0 0.0
      %2979 = vmatprep.subr.mxu0 0.0
      %2980 = vmatpush2.msra.mxu0 0.0
      %2981 = vmatprep.subr.mxu0 0.0
      %2982 = vmatpush2.msra.mxu0 0.0
      %2983 = vmatprep.subr.mxu0 0.0
      %2984 = vmatpush2.msra.mxu0 0.0
      %2985 = vmatprep.subr.mxu0 0.0
      %2986 = vmatpush2.msra.mxu0 0.0
      %2987 = vmatprep.subr.mxu0 0.0
      %2988 = vmatpush2.msra.mxu0 0.0
      %2989 = vmatprep.subr.mxu0 0.0
      %2990 = vmatpush2.msra.mxu0 0.0
      %2991 = vmatprep.subr.mxu0 0.0
      %2992 = vmatpush2.msra.mxu0 0.0
      %2993 = vmatprep.subr.mxu0 0.0
      %2994 = vmatpush2.msra.mxu0 0.0
      %2995 = vmatprep.subr.mxu0 0.0
      %2996 = vmatpush2.msra.mxu0 0.0
      %2997 = vmatprep.subr.mxu0 0.0
      %2998 = vmatpush2.msra.mxu0 0.0
      %2999 = vmatprep.subr.mxu0 0.0
      %3000 = vmatpush2.msra.mxu0 0.0
      %3001 = vmatprep.subr.mxu0 0.0
      %3002 = vmatpush2.msra.mxu0 0.0
      %3003 = vmatprep.subr.mxu0 0.0
      %3004 = vmatpush2.msra.mxu0 0.0
      %3005 = vmatprep.subr.mxu0 0.0
      %3006 = vmatpush2.msra.mxu0 0.0
      %3007 = vmatprep.subr.mxu0 0.0
      %3008 = vmatpush2.msra.mxu0 0.0
      %3009 = vmatprep.mubr.f32.mxu0 0.0
      %3010 = vmatmul.mubr.f32.gmra.mxu0 %v2863
      %v3011 = vpop.f32.mrf.mxu0
      %v3012 = vadd.f32 %v2935, %v3011
      %v3013 = vpop.f32.mrf.mxu0
      %v3014 = vadd.f32 %v2937, %v3013
      %3015 = vmatprep.mubr.f32.mxu0 0.0
      %3016 = vmatmul.mubr.f32.gmra.mxu0 %v2866
      %v3017 = vpop.f32.mrf.mxu0
      %v3018 = vadd.f32 %v2941, %v3017
      %v3019 = vpop.f32.mrf.mxu0
      %v3020 = vadd.f32 %v2943, %v3019
      %3021 = vdwg.mxu0
      %3022 = vmatprep.subr.mxu0 %v2768
      %3023 = vmatpush1.msra.mxu0 %v2767
      %3024 = vmatprep.subr.mxu0 %v2764
      %3025 = vmatpush1.msra.mxu0 %v2763
      %3026 = vmatprep.subr.mxu0 %v2760
      %3027 = vmatpush1.msra.mxu0 %v2759
      %3028 = vmatprep.subr.mxu0 %v2756
      %3029 = vmatpush1.msra.mxu0 %v2755
      %3030 = vmatprep.subr.mxu0 %v2752
      %3031 = vmatpush1.msra.mxu0 %v2751
      %3032 = vmatprep.subr.mxu0 %v2748
      %3033 = vmatpush1.msra.mxu0 %v2747
      %3034 = vmatprep.subr.mxu0 %v2744
      %3035 = vmatpush1.msra.mxu0 %v2743
      %3036 = vmatprep.subr.mxu0 %v2740
      %3037 = vmatpush1.msra.mxu0 %v2739
      %3038 = vmatprep.subr.mxu0 %v2736
      %3039 = vmatpush1.msra.mxu0 %v2735
      %3040 = vmatprep.subr.mxu0 %v2732
      %3041 = vmatpush1.msra.mxu0 %v2731
      %3042 = vmatprep.subr.mxu0 %v2728
      %3043 = vmatpush1.msra.mxu0 %v2727
      %3044 = vmatprep.subr.mxu0 %v2724
      %3045 = vmatpush1.msra.mxu0 %v2723
      %3046 = vmatprep.subr.mxu0 %v2720
      %3047 = vmatpush1.msra.mxu0 %v2719
      %3048 = vmatprep.subr.mxu0 %v2716
      %3049 = vmatpush1.msra.mxu0 %v2715
      %3050 = vmatprep.subr.mxu0 %v2712
      %3051 = vmatpush1.msra.mxu0 %v2711
      %3052 = vmatprep.subr.mxu0 %v2708
      %3053 = vmatpush1.msra.mxu0 %v2707
      %3054 = vmatprep.subr.mxu0 %v2832
      %3055 = vmatpush2.msra.mxu0 %v2831
      %3056 = vmatprep.subr.mxu0 %v2828
      %3057 = vmatpush2.msra.mxu0 %v2827
      %3058 = vmatprep.subr.mxu0 %v2824
      %3059 = vmatpush2.msra.mxu0 %v2823
      %3060 = vmatprep.subr.mxu0 %v2820
      %3061 = vmatpush2.msra.mxu0 %v2819
      %3062 = vmatprep.subr.mxu0 %v2816
      %3063 = vmatpush2.msra.mxu0 %v2815
      %3064 = vmatprep.subr.mxu0 %v2812
      %3065 = vmatpush2.msra.mxu0 %v2811
      %3066 = vmatprep.subr.mxu0 %v2808
      %3067 = vmatpush2.msra.mxu0 %v2807
      %3068 = vmatprep.subr.mxu0 %v2804
      %3069 = vmatpush2.msra.mxu0 %v2803
      %3070 = vmatprep.subr.mxu0 %v2800
      %3071 = vmatpush2.msra.mxu0 %v2799
      %3072 = vmatprep.subr.mxu0 %v2796
      %3073 = vmatpush2.msra.mxu0 %v2795
      %3074 = vmatprep.subr.mxu0 %v2792
      %3075 = vmatpush2.msra.mxu0 %v2791
      %3076 = vmatprep.subr.mxu0 %v2788
      %3077 = vmatpush2.msra.mxu0 %v2787
      %3078 = vmatprep.subr.mxu0 %v2784
      %3079 = vmatpush2.msra.mxu0 %v2783
      %3080 = vmatprep.subr.mxu0 %v2780
      %3081 = vmatpush2.msra.mxu0 %v2779
      %3082 = vmatprep.subr.mxu0 %v2776
      %3083 = vmatpush2.msra.mxu0 %v2775
      %3084 = vmatprep.subr.mxu0 %v2772
      %3085 = vmatpush2.msra.mxu0 %v2771
      %3086 = vmatprep.mubr.f32.mxu0 %v2700
      %3087 = vmatmul.mubr.f32.gmra.mxu0 %v2699
      %v3088 = vpop.f32.mrf.mxu0
      %v3089 = vadd.f32 %v2854, %v3088
      %v3090 = vpop.f32.mrf.mxu0
      %v3091 = vadd.f32 %v2854, %v3090
      %3092 = vmatprep.mubr.f32.mxu0 %v2703
      %3093 = vmatmul.mubr.f32.gmra.mxu0 %v2702
      %v3094 = vpop.f32.mrf.mxu0
      %v3095 = vadd.f32 %v2859, %v3094
      %v3096 = vpop.f32.mrf.mxu0
      %v3097 = vadd.f32 %v2859, %v3096
      %3098 = vdwg.mxu0
      %3099 = vmatprep.subr.mxu0 0.0
      %3100 = vmatpush1.msra.mxu0 0.0
      %3101 = vmatprep.subr.mxu0 0.0
      %3102 = vmatpush1.msra.mxu0 0.0
      %3103 = vmatprep.subr.mxu0 0.0
      %3104 = vmatpush1.msra.mxu0 0.0
      %3105 = vmatprep.subr.mxu0 0.0
      %3106 = vmatpush1.msra.mxu0 0.0
      %3107 = vmatprep.subr.mxu0 0.0
      %3108 = vmatpush1.msra.mxu0 0.0
      %3109 = vmatprep.subr.mxu0 0.0
      %3110 = vmatpush1.msra.mxu0 0.0
      %3111 = vmatprep.subr.mxu0 0.0
      %3112 = vmatpush1.msra.mxu0 0.0
      %3113 = vmatprep.subr.mxu0 0.0
      %3114 = vmatpush1.msra.mxu0 0.0
      %3115 = vmatprep.subr.mxu0 0.0
      %3116 = vmatpush1.msra.mxu0 0.0
      %3117 = vmatprep.subr.mxu0 0.0
      %3118 = vmatpush1.msra.mxu0 0.0
      %3119 = vmatprep.subr.mxu0 0.0
      %3120 = vmatpush1.msra.mxu0 0.0
      %3121 = vmatprep.subr.mxu0 0.0
      %3122 = vmatpush1.msra.mxu0 0.0
      %3123 = vmatprep.subr.mxu0 %v2848
      %3124 = vmatpush1.msra.mxu0 %v2847
      %3125 = vmatprep.subr.mxu0 %v2844
      %3126 = vmatpush1.msra.mxu0 %v2843
      %3127 = vmatprep.subr.mxu0 %v2840
      %3128 = vmatpush1.msra.mxu0 %v2839
      %3129 = vmatprep.subr.mxu0 %v2836
      %3130 = vmatpush1.msra.mxu0 %v2835
      %3131 = vmatprep.subr.mxu0 0.0
      %3132 = vmatpush2.msra.mxu0 0.0
      %3133 = vmatprep.subr.mxu0 0.0
      %3134 = vmatpush2.msra.mxu0 0.0
      %3135 = vmatprep.subr.mxu0 0.0
      %3136 = vmatpush2.msra.mxu0 0.0
      %3137 = vmatprep.subr.mxu0 0.0
      %3138 = vmatpush2.msra.mxu0 0.0
      %3139 = vmatprep.subr.mxu0 0.0
      %3140 = vmatpush2.msra.mxu0 0.0
      %3141 = vmatprep.subr.mxu0 0.0
      %3142 = vmatpush2.msra.mxu0 0.0
      %3143 = vmatprep.subr.mxu0 0.0
      %3144 = vmatpush2.msra.mxu0 0.0
      %3145 = vmatprep.subr.mxu0 0.0
      %3146 = vmatpush2.msra.mxu0 0.0
      %3147 = vmatprep.subr.mxu0 0.0
      %3148 = vmatpush2.msra.mxu0 0.0
      %3149 = vmatprep.subr.mxu0 0.0
      %3150 = vmatpush2.msra.mxu0 0.0
      %3151 = vmatprep.subr.mxu0 0.0
      %3152 = vmatpush2.msra.mxu0 0.0
      %3153 = vmatprep.subr.mxu0 0.0
      %3154 = vmatpush2.msra.mxu0 0.0
      %3155 = vmatprep.subr.mxu0 0.0
      %3156 = vmatpush2.msra.mxu0 0.0
      %3157 = vmatprep.subr.mxu0 0.0
      %3158 = vmatpush2.msra.mxu0 0.0
      %3159 = vmatprep.subr.mxu0 0.0
      %3160 = vmatpush2.msra.mxu0 0.0
      %3161 = vmatprep.subr.mxu0 0.0
      %3162 = vmatpush2.msra.mxu0 0.0
      %3163 = vmatprep.mubr.f32.mxu0 0.0
      %3164 = vmatmul.mubr.f32.gmra.mxu0 %v2863
      %v3165 = vpop.f32.mrf.mxu0
      %v3166 = vadd.f32 %v3089, %v3165
      %v3167 = vpop.f32.mrf.mxu0
      %v3168 = vadd.f32 %v3091, %v3167
      %3169 = vmatprep.mubr.f32.mxu0 0.0
      %3170 = vmatmul.mubr.f32.gmra.mxu0 %v2866
      %v3171 = vpop.f32.mrf.mxu0
      %v3172 = vadd.f32 %v3095, %v3171
      %v3173 = vpop.f32.mrf.mxu0
      %v3174 = vadd.f32 %v3097, %v3173
      %3175 = vdwg.mxu0
      %v3176 = vmax.f32 %v3012, 0.0
      %v3177 = vmax.f32 %v3014, 0.0
      %v3178 = vmax.f32 %v3166, 0.0
      %v3179 = vmax.f32 %v3168, 0.0
      %v3180 = vmax.f32 %v3018, 0.0
      %v3181 = vmax.f32 %v3020, 0.0
      %v3182 = vmax.f32 %v3172, 0.0
      %v3183 = vmax.f32 %v3174, 0.0
      %3184 = vrot.lane.b32.xlu0 %v3176, 17
      %v3185 = vpop.permute.xlu0 %3184
      %3186 = vrot.lane.b32.xlu0 %v3180, 17
      %v3187 = vpop.permute.xlu0 %3186
      %3188 = vrot.lane.b32.xlu0 %v3177, 17
      %v3189 = vpop.permute.xlu0 %3188
      %3190 = vrot.lane.b32.xlu0 %v3181, 17
      %v3191 = vpop.permute.xlu0 %3190
      %3192 = vrot.lane.b32.xlu0 %v3178, 17
      %v3193 = vpop.permute.xlu0 %3192
      %3194 = vrot.lane.b32.xlu0 %v3182, 17
      %v3195 = vpop.permute.xlu0 %3194
      %3196 = vrot.lane.b32.xlu0 %v3179, 17
      %v3197 = vpop.permute.xlu0 %3196
      %3198 = vrot.lane.b32.xlu0 %v3183, 17
      %v3199 = vpop.permute.xlu0 %3198
      %v3200 = vsel %vm389, %v3193, %v3197
      %v3201 = vsel %vm389, %v3195, %v3199
      %v3202 = vsel %vm389, %v3189, %v3193
      %v3203 = vsel %vm389, %v3191, %v3195
      %v3204 = vsel %vm389, %v3185, %v3189
      %v3205 = vsel %vm389, %v3187, %v3191
      %v3206 = vsel %vm389, %v3197, %v3185
      %v3207 = vsel %vm389, %v3199, %v3187
      %v3208 = vld [vmem:[%s1] ss:$8 sm:$0xf]
      %v3210 = vlaneseq
      %v3211 = vshrl.u32 %v3210, 7
      %v3212 = vsub.s32 0, %v3211
      %v3213 = vrot.slane %v3208, %v3212
      %v3214 = vlaneseq
      %v3215 = vshrl.u32 %v3214, 7
      %v3216 = vsub.s32 1, %v3215
      %v3217 = vrot.slane %v3208, %v3216
      %v3218 = vlaneseq
      %v3219 = vshrl.u32 %v3218, 7
      %v3220 = vsub.s32 2, %v3219
      %v3221 = vrot.slane %v3208, %v3220
      %v3222 = vlaneseq
      %v3223 = vshrl.u32 %v3222, 7
      %v3224 = vsub.s32 3, %v3223
      %v3225 = vrot.slane %v3208, %v3224
      %v3230 = vmul.f32 %v3206, %v3213
      %v3231 = vmul.f32 %v3204, %v3217
      %v3232 = vmul.f32 %v3202, %v3221
      %v3233 = vmul.f32 %v3200, %v3225
      %v3234 = vmul.f32 %v3207, %v3213
      %v3235 = vmul.f32 %v3205, %v3217
      %v3236 = vmul.f32 %v3203, %v3221
      %v3237 = vmul.f32 %v3201, %v3225
      %3238 = vst [vmem:[#allocation2] sm:$0xff] %v3230
      %3239 = vst [vmem:[#allocation2 + $0x8] sm:$0xff] %v3231
      %3240 = vst [vmem:[#allocation2 + $0x10] sm:$0xff] %v3232
      %3241 = vst [vmem:[#allocation2 + $0x18] sm:$0xff] %v3233
      %3242 = vst [vmem:[#allocation2 + $0x20] sm:$0xff] %v3234
      %3243 = vst [vmem:[#allocation2 + $0x28] sm:$0xff] %v3235
      %3244 = vst [vmem:[#allocation2 + $0x30] sm:$0xff] %v3236
      %3245 = vst [vmem:[#allocation2 + $0x38] sm:$0xff] %v3237
      %3246 = vrot.lane.b32.xlu0 %v3176, 16
      %v3247 = vpop.permute.xlu0 %3246
      %3248 = vrot.lane.b32.xlu0 %v3180, 16
      %v3249 = vpop.permute.xlu0 %3248
      %3250 = vrot.lane.b32.xlu0 %v3177, 16
      %v3251 = vpop.permute.xlu0 %3250
      %3252 = vrot.lane.b32.xlu0 %v3181, 16
      %v3253 = vpop.permute.xlu0 %3252
      %3254 = vrot.lane.b32.xlu0 %v3178, 16
      %v3255 = vpop.permute.xlu0 %3254
      %3256 = vrot.lane.b32.xlu0 %v3182, 16
      %v3257 = vpop.permute.xlu0 %3256
      %3258 = vrot.lane.b32.xlu0 %v3179, 16
      %v3259 = vpop.permute.xlu0 %3258
      %3260 = vrot.lane.b32.xlu0 %v3183, 16
      %v3261 = vpop.permute.xlu0 %3260
      %v3262 = vsel %vm470, %v3255, %v3259
      %v3263 = vsel %vm470, %v3257, %v3261
      %v3264 = vsel %vm470, %v3251, %v3255
      %v3265 = vsel %vm470, %v3253, %v3257
      %v3266 = vsel %vm470, %v3247, %v3251
      %v3267 = vsel %vm470, %v3249, %v3253
      %v3268 = vsel %vm470, %v3259, %v3247
      %v3269 = vsel %vm470, %v3261, %v3249
      %v3270 = vld [vmem:[%s475] ss:$8 sm:$0xf]
      %v3272 = vlaneseq
      %v3273 = vshrl.u32 %v3272, 7
      %v3274 = vsub.s32 0, %v3273
      %v3275 = vrot.slane %v3270, %v3274
      %v3276 = vlaneseq
      %v3277 = vshrl.u32 %v3276, 7
      %v3278 = vsub.s32 1, %v3277
      %v3279 = vrot.slane %v3270, %v3278
      %v3280 = vlaneseq
      %v3281 = vshrl.u32 %v3280, 7
      %v3282 = vsub.s32 2, %v3281
      %v3283 = vrot.slane %v3270, %v3282
      %v3284 = vlaneseq
      %v3285 = vshrl.u32 %v3284, 7
      %v3286 = vsub.s32 3, %v3285
      %v3287 = vrot.slane %v3270, %v3286
      %v3292 = vmul.f32 %v3268, %v3275
      %v3293 = vmul.f32 %v3266, %v3279
      %v3294 = vmul.f32 %v3264, %v3283
      %v3295 = vmul.f32 %v3262, %v3287
      %v3296 = vmul.f32 %v3269, %v3275
      %v3297 = vmul.f32 %v3267, %v3279
      %v3298 = vmul.f32 %v3265, %v3283
      %v3299 = vmul.f32 %v3263, %v3287
      %3300 = vst [vmem:[#allocation2 + $0x40] sm:$0xff] %v3292
      %3301 = vst [vmem:[#allocation2 + $0x48] sm:$0xff] %v3293
      %3302 = vst [vmem:[#allocation2 + $0x50] sm:$0xff] %v3294
      %3303 = vst [vmem:[#allocation2 + $0x58] sm:$0xff] %v3295
      %3304 = vst [vmem:[#allocation2 + $0x60] sm:$0xff] %v3296
      %3305 = vst [vmem:[#allocation2 + $0x68] sm:$0xff] %v3297
      %3306 = vst [vmem:[#allocation2 + $0x70] sm:$0xff] %v3298
      %3307 = vst [vmem:[#allocation2 + $0x78] sm:$0xff] %v3299
      %3308 = vrot.lane.b32.xlu0 %v3176, 15
      %v3309 = vpop.permute.xlu0 %3308
      %3310 = vrot.lane.b32.xlu0 %v3180, 15
      %v3311 = vpop.permute.xlu0 %3310
      %3312 = vrot.lane.b32.xlu0 %v3177, 15
      %v3313 = vpop.permute.xlu0 %3312
      %3314 = vrot.lane.b32.xlu0 %v3181, 15
      %v3315 = vpop.permute.xlu0 %3314
      %3316 = vrot.lane.b32.xlu0 %v3178, 15
      %v3317 = vpop.permute.xlu0 %3316
      %3318 = vrot.lane.b32.xlu0 %v3182, 15
      %v3319 = vpop.permute.xlu0 %3318
      %3320 = vrot.lane.b32.xlu0 %v3179, 15
      %v3321 = vpop.permute.xlu0 %3320
      %3322 = vrot.lane.b32.xlu0 %v3183, 15
      %v3323 = vpop.permute.xlu0 %3322
      %v3324 = vsel %vm550, %v3317, %v3321
      %v3325 = vsel %vm550, %v3319, %v3323
      %v3326 = vsel %vm550, %v3313, %v3317
      %v3327 = vsel %vm550, %v3315, %v3319
      %v3328 = vsel %vm550, %v3309, %v3313
      %v3329 = vsel %vm550, %v3311, %v3315
      %v3330 = vsel %vm550, %v3321, %v3309
      %v3331 = vsel %vm550, %v3323, %v3311
      %v3332 = vld [vmem:[%s555] ss:$8 sm:$0xf]
      %v3334 = vlaneseq
      %v3335 = vshrl.u32 %v3334, 7
      %v3336 = vsub.s32 0, %v3335
      %v3337 = vrot.slane %v3332, %v3336
      %v3338 = vlaneseq
      %v3339 = vshrl.u32 %v3338, 7
      %v3340 = vsub.s32 1, %v3339
      %v3341 = vrot.slane %v3332, %v3340
      %v3342 = vlaneseq
      %v3343 = vshrl.u32 %v3342, 7
      %v3344 = vsub.s32 2, %v3343
      %v3345 = vrot.slane %v3332, %v3344
      %v3346 = vlaneseq
      %v3347 = vshrl.u32 %v3346, 7
      %v3348 = vsub.s32 3, %v3347
      %v3349 = vrot.slane %v3332, %v3348
      %v3354 = vmul.f32 %v3330, %v3337
      %v3355 = vmul.f32 %v3328, %v3341
      %v3356 = vmul.f32 %v3326, %v3345
      %v3357 = vmul.f32 %v3324, %v3349
      %v3358 = vmul.f32 %v3331, %v3337
      %v3359 = vmul.f32 %v3329, %v3341
      %v3360 = vmul.f32 %v3327, %v3345
      %v3361 = vmul.f32 %v3325, %v3349
      %3362 = vst [vmem:[#allocation2 + $0x80] sm:$0xff] %v3354
      %3363 = vst [vmem:[#allocation2 + $0x88] sm:$0xff] %v3355
      %3364 = vst [vmem:[#allocation2 + $0x90] sm:$0xff] %v3356
      %3365 = vst [vmem:[#allocation2 + $0x98] sm:$0xff] %v3357
      %3366 = vst [vmem:[#allocation2 + $0xa0] sm:$0xff] %v3358
      %3367 = vst [vmem:[#allocation2 + $0xa8] sm:$0xff] %v3359
      %3368 = vst [vmem:[#allocation2 + $0xb0] sm:$0xff] %v3360
      %3369 = vst [vmem:[#allocation2 + $0xb8] sm:$0xff] %v3361
      %3370 = vrot.lane.b32.xlu0 %v3176, 1
      %v3371 = vpop.permute.xlu0 %3370
      %3372 = vrot.lane.b32.xlu0 %v3180, 1
      %v3373 = vpop.permute.xlu0 %3372
      %3374 = vrot.lane.b32.xlu0 %v3177, 1
      %v3375 = vpop.permute.xlu0 %3374
      %3376 = vrot.lane.b32.xlu0 %v3181, 1
      %v3377 = vpop.permute.xlu0 %3376
      %3378 = vrot.lane.b32.xlu0 %v3178, 1
      %v3379 = vpop.permute.xlu0 %3378
      %3380 = vrot.lane.b32.xlu0 %v3182, 1
      %v3381 = vpop.permute.xlu0 %3380
      %3382 = vrot.lane.b32.xlu0 %v3179, 1
      %v3383 = vpop.permute.xlu0 %3382
      %3384 = vrot.lane.b32.xlu0 %v3183, 1
      %v3385 = vpop.permute.xlu0 %3384
      %v3386 = vsel %vm630, %v3379, %v3383
      %v3387 = vsel %vm630, %v3381, %v3385
      %v3388 = vsel %vm630, %v3375, %v3379
      %v3389 = vsel %vm630, %v3377, %v3381
      %v3390 = vsel %vm630, %v3371, %v3375
      %v3391 = vsel %vm630, %v3373, %v3377
      %v3392 = vsel %vm630, %v3383, %v3371
      %v3393 = vsel %vm630, %v3385, %v3373
      %v3394 = vld [vmem:[%s635] ss:$8 sm:$0xf]
      %v3396 = vlaneseq
      %v3397 = vshrl.u32 %v3396, 7
      %v3398 = vsub.s32 0, %v3397
      %v3399 = vrot.slane %v3394, %v3398
      %v3400 = vlaneseq
      %v3401 = vshrl.u32 %v3400, 7
      %v3402 = vsub.s32 1, %v3401
      %v3403 = vrot.slane %v3394, %v3402
      %v3404 = vlaneseq
      %v3405 = vshrl.u32 %v3404, 7
      %v3406 = vsub.s32 2, %v3405
      %v3407 = vrot.slane %v3394, %v3406
      %v3408 = vlaneseq
      %v3409 = vshrl.u32 %v3408, 7
      %v3410 = vsub.s32 3, %v3409
      %v3411 = vrot.slane %v3394, %v3410
      %v3416 = vmul.f32 %v3392, %v3399
      %v3417 = vmul.f32 %v3390, %v3403
      %v3418 = vmul.f32 %v3388, %v3407
      %v3419 = vmul.f32 %v3386, %v3411
      %v3420 = vmul.f32 %v3393, %v3399
      %v3421 = vmul.f32 %v3391, %v3403
      %v3422 = vmul.f32 %v3389, %v3407
      %v3423 = vmul.f32 %v3387, %v3411
      %3424 = vst [vmem:[#allocation2 + $0xc0] sm:$0xff] %v3416
      %3425 = vst [vmem:[#allocation2 + $0xc8] sm:$0xff] %v3417
      %3426 = vst [vmem:[#allocation2 + $0xd0] sm:$0xff] %v3418
      %3427 = vst [vmem:[#allocation2 + $0xd8] sm:$0xff] %v3419
      %3428 = vst [vmem:[#allocation2 + $0xe0] sm:$0xff] %v3420
      %3429 = vst [vmem:[#allocation2 + $0xe8] sm:$0xff] %v3421
      %3430 = vst [vmem:[#allocation2 + $0xf0] sm:$0xff] %v3422
      %3431 = vst [vmem:[#allocation2 + $0xf8] sm:$0xff] %v3423
      %3432 = vst [vmem:[#allocation2 + $0x100] sm:$0xff] %v3176
      %3433 = vst [vmem:[#allocation2 + $0x108] sm:$0xff] %v3177
      %3434 = vst [vmem:[#allocation2 + $0x110] sm:$0xff] %v3178
      %3435 = vst [vmem:[#allocation2 + $0x118] sm:$0xff] %v3179
      %3436 = vst [vmem:[#allocation2 + $0x120] sm:$0xff] %v3180
      %3437 = vst [vmem:[#allocation2 + $0x128] sm:$0xff] %v3181
      %3438 = vst [vmem:[#allocation2 + $0x130] sm:$0xff] %v3182
      %3439 = vst [vmem:[#allocation2 + $0x138] sm:$0xff] %v3183
      %3440 = vrot.lane.b32.xlu0 %v3176, 127
      %v3441 = vpop.permute.xlu0 %3440
      %3442 = vrot.lane.b32.xlu0 %v3180, 127
      %v3443 = vpop.permute.xlu0 %3442
      %3444 = vrot.lane.b32.xlu0 %v3177, 127
      %v3445 = vpop.permute.xlu0 %3444
      %3446 = vrot.lane.b32.xlu0 %v3181, 127
      %v3447 = vpop.permute.xlu0 %3446
      %3448 = vrot.lane.b32.xlu0 %v3178, 127
      %v3449 = vpop.permute.xlu0 %3448
      %3450 = vrot.lane.b32.xlu0 %v3182, 127
      %v3451 = vpop.permute.xlu0 %3450
      %3452 = vrot.lane.b32.xlu0 %v3179, 127
      %v3453 = vpop.permute.xlu0 %3452
      %3454 = vrot.lane.b32.xlu0 %v3183, 127
      %v3455 = vpop.permute.xlu0 %3454
      %v3456 = vsel %vm734, %v3449, %v3453
      %v3457 = vsel %vm734, %v3451, %v3455
      %v3458 = vsel %vm734, %v3445, %v3449
      %v3459 = vsel %vm734, %v3447, %v3451
      %v3460 = vsel %vm734, %v3441, %v3445
      %v3461 = vsel %vm734, %v3443, %v3447
      %v3462 = vsel %vm734, %v3453, %v3441
      %v3463 = vsel %vm734, %v3455, %v3443
      %v3464 = vld [vmem:[%s739] ss:$8 sm:$0xf]
      %v3466 = vlaneseq
      %v3467 = vshrl.u32 %v3466, 7
      %v3468 = vsub.s32 0, %v3467
      %v3469 = vrot.slane %v3464, %v3468
      %v3470 = vlaneseq
      %v3471 = vshrl.u32 %v3470, 7
      %v3472 = vsub.s32 1, %v3471
      %v3473 = vrot.slane %v3464, %v3472
      %v3474 = vlaneseq
      %v3475 = vshrl.u32 %v3474, 7
      %v3476 = vsub.s32 2, %v3475
      %v3477 = vrot.slane %v3464, %v3476
      %v3478 = vlaneseq
      %v3479 = vshrl.u32 %v3478, 7
      %v3480 = vsub.s32 3, %v3479
      %v3481 = vrot.slane %v3464, %v3480
      %v3486 = vmul.f32 %v3460, %v3469
      %v3487 = vmul.f32 %v3458, %v3473
      %v3488 = vmul.f32 %v3456, %v3477
      %v3489 = vmul.f32 %v3462, %v3481
      %v3490 = vmul.f32 %v3461, %v3469
      %v3491 = vmul.f32 %v3459, %v3473
      %v3492 = vmul.f32 %v3457, %v3477
      %v3493 = vmul.f32 %v3463, %v3481
      %3494 = vst [vmem:[#allocation2 + $0x140] sm:$0xff] %v3486
      %3495 = vst [vmem:[#allocation2 + $0x148] sm:$0xff] %v3487
      %3496 = vst [vmem:[#allocation2 + $0x150] sm:$0xff] %v3488
      %3497 = vst [vmem:[#allocation2 + $0x158] sm:$0xff] %v3489
      %3498 = vst [vmem:[#allocation2 + $0x160] sm:$0xff] %v3490
      %3499 = vst [vmem:[#allocation2 + $0x168] sm:$0xff] %v3491
      %3500 = vst [vmem:[#allocation2 + $0x170] sm:$0xff] %v3492
      %3501 = vst [vmem:[#allocation2 + $0x178] sm:$0xff] %v3493
      %3502 = vrot.lane.b32.xlu0 %v3176, 113
      %v3503 = vpop.permute.xlu0 %3502
      %3504 = vrot.lane.b32.xlu0 %v3180, 113
      %v3505 = vpop.permute.xlu0 %3504
      %3506 = vrot.lane.b32.xlu0 %v3177, 113
      %v3507 = vpop.permute.xlu0 %3506
      %3508 = vrot.lane.b32.xlu0 %v3181, 113
      %v3509 = vpop.permute.xlu0 %3508
      %3510 = vrot.lane.b32.xlu0 %v3178, 113
      %v3511 = vpop.permute.xlu0 %3510
      %3512 = vrot.lane.b32.xlu0 %v3182, 113
      %v3513 = vpop.permute.xlu0 %3512
      %3514 = vrot.lane.b32.xlu0 %v3179, 113
      %v3515 = vpop.permute.xlu0 %3514
      %3516 = vrot.lane.b32.xlu0 %v3183, 113
      %v3517 = vpop.permute.xlu0 %3516
      %v3518 = vsel %vm814, %v3511, %v3515
      %v3519 = vsel %vm814, %v3513, %v3517
      %v3520 = vsel %vm814, %v3507, %v3511
      %v3521 = vsel %vm814, %v3509, %v3513
      %v3522 = vsel %vm814, %v3503, %v3507
      %v3523 = vsel %vm814, %v3505, %v3509
      %v3524 = vsel %vm814, %v3515, %v3503
      %v3525 = vsel %vm814, %v3517, %v3505
      %v3526 = vld [vmem:[%s819] ss:$8 sm:$0xf]
      %v3528 = vlaneseq
      %v3529 = vshrl.u32 %v3528, 7
      %v3530 = vsub.s32 0, %v3529
      %v3531 = vrot.slane %v3526, %v3530
      %v3532 = vlaneseq
      %v3533 = vshrl.u32 %v3532, 7
      %v3534 = vsub.s32 1, %v3533
      %v3535 = vrot.slane %v3526, %v3534
      %v3536 = vlaneseq
      %v3537 = vshrl.u32 %v3536, 7
      %v3538 = vsub.s32 2, %v3537
      %v3539 = vrot.slane %v3526, %v3538
      %v3540 = vlaneseq
      %v3541 = vshrl.u32 %v3540, 7
      %v3542 = vsub.s32 3, %v3541
      %v3543 = vrot.slane %v3526, %v3542
      %v3548 = vmul.f32 %v3522, %v3531
      %v3549 = vmul.f32 %v3520, %v3535
      %v3550 = vmul.f32 %v3518, %v3539
      %v3551 = vmul.f32 %v3524, %v3543
      %v3552 = vmul.f32 %v3523, %v3531
      %v3553 = vmul.f32 %v3521, %v3535
      %v3554 = vmul.f32 %v3519, %v3539
      %v3555 = vmul.f32 %v3525, %v3543
      %3556 = vst [vmem:[#allocation2 + $0x180] sm:$0xff] %v3548
      %3557 = vst [vmem:[#allocation2 + $0x188] sm:$0xff] %v3549
      %3558 = vst [vmem:[#allocation2 + $0x190] sm:$0xff] %v3550
      %3559 = vst [vmem:[#allocation2 + $0x198] sm:$0xff] %v3551
      %3560 = vst [vmem:[#allocation2 + $0x1a0] sm:$0xff] %v3552
      %3561 = vst [vmem:[#allocation2 + $0x1a8] sm:$0xff] %v3553
      %3562 = vst [vmem:[#allocation2 + $0x1b0] sm:$0xff] %v3554
      %3563 = vst [vmem:[#allocation2 + $0x1b8] sm:$0xff] %v3555
      %3564 = vrot.lane.b32.xlu0 %v3176, 112
      %v3565 = vpop.permute.xlu0 %3564
      %3566 = vrot.lane.b32.xlu0 %v3180, 112
      %v3567 = vpop.permute.xlu0 %3566
      %3568 = vrot.lane.b32.xlu0 %v3177, 112
      %v3569 = vpop.permute.xlu0 %3568
      %3570 = vrot.lane.b32.xlu0 %v3181, 112
      %v3571 = vpop.permute.xlu0 %3570
      %3572 = vrot.lane.b32.xlu0 %v3178, 112
      %v3573 = vpop.permute.xlu0 %3572
      %3574 = vrot.lane.b32.xlu0 %v3182, 112
      %v3575 = vpop.permute.xlu0 %3574
      %3576 = vrot.lane.b32.xlu0 %v3179, 112
      %v3577 = vpop.permute.xlu0 %3576
      %3578 = vrot.lane.b32.xlu0 %v3183, 112
      %v3579 = vpop.permute.xlu0 %3578
      %v3580 = vsel %vm894, %v3573, %v3577
      %v3581 = vsel %vm894, %v3575, %v3579
      %v3582 = vsel %vm894, %v3569, %v3573
      %v3583 = vsel %vm894, %v3571, %v3575
      %v3584 = vsel %vm894, %v3565, %v3569
      %v3585 = vsel %vm894, %v3567, %v3571
      %v3586 = vsel %vm894, %v3577, %v3565
      %v3587 = vsel %vm894, %v3579, %v3567
      %v3588 = vld [vmem:[%s899] ss:$8 sm:$0xf]
      %v3590 = vlaneseq
      %v3591 = vshrl.u32 %v3590, 7
      %v3592 = vsub.s32 0, %v3591
      %v3593 = vrot.slane %v3588, %v3592
      %v3594 = vlaneseq
      %v3595 = vshrl.u32 %v3594, 7
      %v3596 = vsub.s32 1, %v3595
      %v3597 = vrot.slane %v3588, %v3596
      %v3598 = vlaneseq
      %v3599 = vshrl.u32 %v3598, 7
      %v3600 = vsub.s32 2, %v3599
      %v3601 = vrot.slane %v3588, %v3600
      %v3602 = vlaneseq
      %v3603 = vshrl.u32 %v3602, 7
      %v3604 = vsub.s32 3, %v3603
      %v3605 = vrot.slane %v3588, %v3604
      %v3610 = vmul.f32 %v3584, %v3593
      %v3611 = vmul.f32 %v3582, %v3597
      %v3612 = vmul.f32 %v3580, %v3601
      %v3613 = vmul.f32 %v3586, %v3605
      %v3614 = vmul.f32 %v3585, %v3593
      %v3615 = vmul.f32 %v3583, %v3597
      %v3616 = vmul.f32 %v3581, %v3601
      %v3617 = vmul.f32 %v3587, %v3605
      %3618 = vst [vmem:[#allocation2 + $0x1c0] sm:$0xff] %v3610
      %3619 = vst [vmem:[#allocation2 + $0x1c8] sm:$0xff] %v3611
      %3620 = vst [vmem:[#allocation2 + $0x1d0] sm:$0xff] %v3612
      %3621 = vst [vmem:[#allocation2 + $0x1d8] sm:$0xff] %v3613
      %3622 = vst [vmem:[#allocation2 + $0x1e0] sm:$0xff] %v3614
      %3623 = vst [vmem:[#allocation2 + $0x1e8] sm:$0xff] %v3615
      %3624 = vst [vmem:[#allocation2 + $0x1f0] sm:$0xff] %v3616
      %3625 = vst [vmem:[#allocation2 + $0x1f8] sm:$0xff] %v3617
      %3626 = vrot.lane.b32.xlu0 %v3176, 111
      %v3627 = vpop.permute.xlu0 %3626
      %3628 = vrot.lane.b32.xlu0 %v3180, 111
      %v3629 = vpop.permute.xlu0 %3628
      %3630 = vrot.lane.b32.xlu0 %v3177, 111
      %v3631 = vpop.permute.xlu0 %3630
      %3632 = vrot.lane.b32.xlu0 %v3181, 111
      %v3633 = vpop.permute.xlu0 %3632
      %3634 = vrot.lane.b32.xlu0 %v3178, 111
      %v3635 = vpop.permute.xlu0 %3634
      %3636 = vrot.lane.b32.xlu0 %v3182, 111
      %v3637 = vpop.permute.xlu0 %3636
      %3638 = vrot.lane.b32.xlu0 %v3179, 111
      %v3639 = vpop.permute.xlu0 %3638
      %3640 = vrot.lane.b32.xlu0 %v3183, 111
      %v3641 = vpop.permute.xlu0 %3640
      %v3642 = vsel %vm974, %v3635, %v3639
      %v3643 = vsel %vm974, %v3637, %v3641
      %v3644 = vsel %vm974, %v3631, %v3635
      %v3645 = vsel %vm974, %v3633, %v3637
      %v3646 = vsel %vm974, %v3627, %v3631
      %v3647 = vsel %vm974, %v3629, %v3633
      %v3648 = vsel %vm974, %v3639, %v3627
      %v3649 = vsel %vm974, %v3641, %v3629
      %v3650 = vld [vmem:[%s979] ss:$8 sm:$0xf]
      %v3652 = vlaneseq
      %v3653 = vshrl.u32 %v3652, 7
      %v3654 = vsub.s32 0, %v3653
      %v3655 = vrot.slane %v3650, %v3654
      %v3656 = vlaneseq
      %v3657 = vshrl.u32 %v3656, 7
      %v3658 = vsub.s32 1, %v3657
      %v3659 = vrot.slane %v3650, %v3658
      %v3660 = vlaneseq
      %v3661 = vshrl.u32 %v3660, 7
      %v3662 = vsub.s32 2, %v3661
      %v3663 = vrot.slane %v3650, %v3662
      %v3664 = vlaneseq
      %v3665 = vshrl.u32 %v3664, 7
      %v3666 = vsub.s32 3, %v3665
      %v3667 = vrot.slane %v3650, %v3666
      %v3672 = vmul.f32 %v3646, %v3655
      %v3673 = vmul.f32 %v3644, %v3659
      %v3674 = vmul.f32 %v3642, %v3663
      %v3675 = vmul.f32 %v3648, %v3667
      %v3676 = vmul.f32 %v3647, %v3655
      %v3677 = vmul.f32 %v3645, %v3659
      %v3678 = vmul.f32 %v3643, %v3663
      %v3679 = vmul.f32 %v3649, %v3667
      %3680 = vst [vmem:[#allocation2 + $0x200] sm:$0xff] %v3672
      %3681 = vst [vmem:[#allocation2 + $0x208] sm:$0xff] %v3673
      %3682 = vst [vmem:[#allocation2 + $0x210] sm:$0xff] %v3674
      %3683 = vst [vmem:[#allocation2 + $0x218] sm:$0xff] %v3675
      %3684 = vst [vmem:[#allocation2 + $0x220] sm:$0xff] %v3676
      %3685 = vst [vmem:[#allocation2 + $0x228] sm:$0xff] %v3677
      %3686 = vst [vmem:[#allocation2 + $0x230] sm:$0xff] %v3678
      %3687 = vst [vmem:[#allocation2 + $0x238] sm:$0xff] %v3679
      %v3688 = vld [vmem:[%s8] sm:$0xff]
      %v3689 = vld [vmem:[%s8 + $0x8] sm:$0xff]
      %v3690 = vld [vmem:[#allocation2] sm:$0xff]
      %v3691 = vld [vmem:[#allocation2 + $0x8] sm:$0xff]
      %v3692 = vld [vmem:[#allocation2 + $0x10] sm:$0xff]
      %v3693 = vld [vmem:[#allocation2 + $0x18] sm:$0xff]
      %v3694 = vld [vmem:[#allocation2 + $0x20] sm:$0xff]
      %v3695 = vld [vmem:[#allocation2 + $0x28] sm:$0xff]
      %v3696 = vld [vmem:[#allocation2 + $0x30] sm:$0xff]
      %v3697 = vld [vmem:[#allocation2 + $0x38] sm:$0xff]
      %v3698 = vld [vmem:[#allocation2 + $0x40] sm:$0xff]
      %v3699 = vld [vmem:[#allocation2 + $0x48] sm:$0xff]
      %v3700 = vld [vmem:[#allocation2 + $0x50] sm:$0xff]
      %v3701 = vld [vmem:[#allocation2 + $0x58] sm:$0xff]
      %v3702 = vld [vmem:[#allocation2 + $0x60] sm:$0xff]
      %v3703 = vld [vmem:[#allocation2 + $0x68] sm:$0xff]
      %v3704 = vld [vmem:[#allocation2 + $0x70] sm:$0xff]
      %v3705 = vld [vmem:[#allocation2 + $0x78] sm:$0xff]
      %v3706 = vld [vmem:[#allocation2 + $0x80] sm:$0xff]
      %v3707 = vld [vmem:[#allocation2 + $0x88] sm:$0xff]
      %v3708 = vld [vmem:[#allocation2 + $0x90] sm:$0xff]
      %v3709 = vld [vmem:[#allocation2 + $0x98] sm:$0xff]
      %v3710 = vld [vmem:[#allocation2 + $0xa0] sm:$0xff]
      %v3711 = vld [vmem:[#allocation2 + $0xa8] sm:$0xff]
      %v3712 = vld [vmem:[#allocation2 + $0xb0] sm:$0xff]
      %v3713 = vld [vmem:[#allocation2 + $0xb8] sm:$0xff]
      %v3714 = vld [vmem:[#allocation2 + $0xc0] sm:$0xff]
      %v3715 = vld [vmem:[#allocation2 + $0xc8] sm:$0xff]
      %v3716 = vld [vmem:[#allocation2 + $0xd0] sm:$0xff]
      %v3717 = vld [vmem:[#allocation2 + $0xd8] sm:$0xff]
      %v3718 = vld [vmem:[#allocation2 + $0xe0] sm:$0xff]
      %v3719 = vld [vmem:[#allocation2 + $0xe8] sm:$0xff]
      %v3720 = vld [vmem:[#allocation2 + $0xf0] sm:$0xff]
      %v3721 = vld [vmem:[#allocation2 + $0xf8] sm:$0xff]
      %v3722 = vld [vmem:[#allocation2 + $0x100] sm:$0xff]
      %v3723 = vld [vmem:[#allocation2 + $0x108] sm:$0xff]
      %v3724 = vld [vmem:[#allocation2 + $0x110] sm:$0xff]
      %v3725 = vld [vmem:[#allocation2 + $0x118] sm:$0xff]
      %v3726 = vld [vmem:[#allocation2 + $0x120] sm:$0xff]
      %v3727 = vld [vmem:[#allocation2 + $0x128] sm:$0xff]
      %v3728 = vld [vmem:[#allocation2 + $0x130] sm:$0xff]
      %v3729 = vld [vmem:[#allocation2 + $0x138] sm:$0xff]
      %v3730 = vld [vmem:[#allocation2 + $0x140] sm:$0xff]
      %v3731 = vld [vmem:[#allocation2 + $0x148] sm:$0xff]
      %v3732 = vld [vmem:[#allocation2 + $0x150] sm:$0xff]
      %v3733 = vld [vmem:[#allocation2 + $0x158] sm:$0xff]
      %v3734 = vld [vmem:[#allocation2 + $0x160] sm:$0xff]
      %v3735 = vld [vmem:[#allocation2 + $0x168] sm:$0xff]
      %v3736 = vld [vmem:[#allocation2 + $0x170] sm:$0xff]
      %v3737 = vld [vmem:[#allocation2 + $0x178] sm:$0xff]
      %v3738 = vld [vmem:[#allocation2 + $0x180] sm:$0xff]
      %v3739 = vld [vmem:[#allocation2 + $0x188] sm:$0xff]
      %v3740 = vld [vmem:[#allocation2 + $0x190] sm:$0xff]
      %v3741 = vld [vmem:[#allocation2 + $0x198] sm:$0xff]
      %v3742 = vld [vmem:[#allocation2 + $0x1a0] sm:$0xff]
      %v3743 = vld [vmem:[#allocation2 + $0x1a8] sm:$0xff]
      %v3744 = vld [vmem:[#allocation2 + $0x1b0] sm:$0xff]
      %v3745 = vld [vmem:[#allocation2 + $0x1b8] sm:$0xff]
      %v3746 = vld [vmem:[#allocation2 + $0x1c0] sm:$0xff]
      %v3747 = vld [vmem:[#allocation2 + $0x1c8] sm:$0xff]
      %v3748 = vld [vmem:[#allocation2 + $0x1d0] sm:$0xff]
      %v3749 = vld [vmem:[#allocation2 + $0x1d8] sm:$0xff]
      %v3750 = vld [vmem:[#allocation2 + $0x1e0] sm:$0xff]
      %v3751 = vld [vmem:[#allocation2 + $0x1e8] sm:$0xff]
      %v3752 = vld [vmem:[#allocation2 + $0x1f0] sm:$0xff]
      %v3753 = vld [vmem:[#allocation2 + $0x1f8] sm:$0xff]
      %v3754 = vld [vmem:[#allocation2 + $0x200] sm:$0xff]
      %v3755 = vld [vmem:[#allocation2 + $0x208] sm:$0xff]
      %v3756 = vld [vmem:[#allocation2 + $0x210] sm:$0xff]
      %v3757 = vld [vmem:[#allocation2 + $0x218] sm:$0xff]
      %v3758 = vld [vmem:[#allocation2 + $0x220] sm:$0xff]
      %v3759 = vld [vmem:[#allocation2 + $0x228] sm:$0xff]
      %v3760 = vld [vmem:[#allocation2 + $0x230] sm:$0xff]
      %v3761 = vld [vmem:[#allocation2 + $0x238] sm:$0xff]
      %v3762 = vld [vmem:[%s9] sm:$0xff]
      %3764 = vset.pattern.permute.xlu0 0
      %3765 = vperm.xlu0 %3764, %v3762
      %v3766 = vpop.permute.xlu0 %3765
      %v3769 = vsel %vm1660, %v3689, 0
      %3771 = vmatprep.subr.mxu0 %v3751
      %3772 = vmatpush1.msra.mxu0 %v3750
      %3773 = vmatprep.subr.mxu0 %v3747
      %3774 = vmatpush1.msra.mxu0 %v3746
      %3775 = vmatprep.subr.mxu0 %v3743
      %3776 = vmatpush1.msra.mxu0 %v3742
      %3777 = vmatprep.subr.mxu0 %v3739
      %3778 = vmatpush1.msra.mxu0 %v3738
      %3779 = vmatprep.subr.mxu0 %v3735
      %3780 = vmatpush1.msra.mxu0 %v3734
      %3781 = vmatprep.subr.mxu0 %v3731
      %3782 = vmatpush1.msra.mxu0 %v3730
      %3783 = vmatprep.subr.mxu0 %v3727
      %3784 = vmatpush1.msra.mxu0 %v3726
      %3785 = vmatprep.subr.mxu0 %v3723
      %3786 = vmatpush1.msra.mxu0 %v3722
      %3787 = vmatprep.subr.mxu0 %v3719
      %3788 = vmatpush1.msra.mxu0 %v3718
      %3789 = vmatprep.subr.mxu0 %v3715
      %3790 = vmatpush1.msra.mxu0 %v3714
      %3791 = vmatprep.subr.mxu0 %v3711
      %3792 = vmatpush1.msra.mxu0 %v3710
      %3793 = vmatprep.subr.mxu0 %v3707
      %3794 = vmatpush1.msra.mxu0 %v3706
      %3795 = vmatprep.subr.mxu0 %v3703
      %3796 = vmatpush1.msra.mxu0 %v3702
      %3797 = vmatprep.subr.mxu0 %v3699
      %3798 = vmatpush1.msra.mxu0 %v3698
      %3799 = vmatprep.subr.mxu0 %v3695
      %3800 = vmatpush1.msra.mxu0 %v3694
      %3801 = vmatprep.subr.mxu0 %v3691
      %3802 = vmatpush1.msra.mxu0 %v3690
      %3803 = vmatprep.subr.mxu0 0.0
      %3804 = vmatpush2.msra.mxu0 0.0
      %3805 = vmatprep.subr.mxu0 0.0
      %3806 = vmatpush2.msra.mxu0 0.0
      %3807 = vmatprep.subr.mxu0 0.0
      %3808 = vmatpush2.msra.mxu0 0.0
      %3809 = vmatprep.subr.mxu0 0.0
      %3810 = vmatpush2.msra.mxu0 0.0
      %3811 = vmatprep.subr.mxu0 0.0
      %3812 = vmatpush2.msra.mxu0 0.0
      %3813 = vmatprep.subr.mxu0 0.0
      %3814 = vmatpush2.msra.mxu0 0.0
      %3815 = vmatprep.subr.mxu0 0.0
      %3816 = vmatpush2.msra.mxu0 0.0
      %3817 = vmatprep.subr.mxu0 0.0
      %3818 = vmatpush2.msra.mxu0 0.0
      %3819 = vmatprep.subr.mxu0 0.0
      %3820 = vmatpush2.msra.mxu0 0.0
      %3821 = vmatprep.subr.mxu0 0.0
      %3822 = vmatpush2.msra.mxu0 0.0
      %3823 = vmatprep.subr.mxu0 0.0
      %3824 = vmatpush2.msra.mxu0 0.0
      %3825 = vmatprep.subr.mxu0 0.0
      %3826 = vmatpush2.msra.mxu0 0.0
      %3827 = vmatprep.subr.mxu0 0.0
      %3828 = vmatpush2.msra.mxu0 0.0
      %3829 = vmatprep.subr.mxu0 0.0
      %3830 = vmatpush2.msra.mxu0 0.0
      %3831 = vmatprep.subr.mxu0 %v3759
      %3832 = vmatpush2.msra.mxu0 %v3758
      %3833 = vmatprep.subr.mxu0 %v3755
      %3834 = vmatpush2.msra.mxu0 %v3754
      %3835 = vmatprep.mubr.f32.mxu0 %v3769
      %3836 = vmatmul.mubr.f32.gmra.mxu0 %v3688
      %v3837 = vpop.f32.mrf.mxu0
      %v3838 = vadd.f32 %v3766, %v3837
      %v3839 = vpop.f32.mrf.mxu0
      %v3840 = vadd.f32 %v3766, %v3839
      %3841 = vdwg.mxu0
      %3842 = vmatprep.subr.mxu0 %v3753
      %3843 = vmatpush1.msra.mxu0 %v3752
      %3844 = vmatprep.subr.mxu0 %v3749
      %3845 = vmatpush1.msra.mxu0 %v3748
      %3846 = vmatprep.subr.mxu0 %v3745
      %3847 = vmatpush1.msra.mxu0 %v3744
      %3848 = vmatprep.subr.mxu0 %v3741
      %3849 = vmatpush1.msra.mxu0 %v3740
      %3850 = vmatprep.subr.mxu0 %v3737
      %3851 = vmatpush1.msra.mxu0 %v3736
      %3852 = vmatprep.subr.mxu0 %v3733
      %3853 = vmatpush1.msra.mxu0 %v3732
      %3854 = vmatprep.subr.mxu0 %v3729
      %3855 = vmatpush1.msra.mxu0 %v3728
      %3856 = vmatprep.subr.mxu0 %v3725
      %3857 = vmatpush1.msra.mxu0 %v3724
      %3858 = vmatprep.subr.mxu0 %v3721
      %3859 = vmatpush1.msra.mxu0 %v3720
      %3860 = vmatprep.subr.mxu0 %v3717
      %3861 = vmatpush1.msra.mxu0 %v3716
      %3862 = vmatprep.subr.mxu0 %v3713
      %3863 = vmatpush1.msra.mxu0 %v3712
      %3864 = vmatprep.subr.mxu0 %v3709
      %3865 = vmatpush1.msra.mxu0 %v3708
      %3866 = vmatprep.subr.mxu0 %v3705
      %3867 = vmatpush1.msra.mxu0 %v3704
      %3868 = vmatprep.subr.mxu0 %v3701
      %3869 = vmatpush1.msra.mxu0 %v3700
      %3870 = vmatprep.subr.mxu0 %v3697
      %3871 = vmatpush1.msra.mxu0 %v3696
      %3872 = vmatprep.subr.mxu0 %v3693
      %3873 = vmatpush1.msra.mxu0 %v3692
      %3874 = vmatprep.subr.mxu0 0.0
      %3875 = vmatpush2.msra.mxu0 0.0
      %3876 = vmatprep.subr.mxu0 0.0
      %3877 = vmatpush2.msra.mxu0 0.0
      %3878 = vmatprep.subr.mxu0 0.0
      %3879 = vmatpush2.msra.mxu0 0.0
      %3880 = vmatprep.subr.mxu0 0.0
      %3881 = vmatpush2.msra.mxu0 0.0
      %3882 = vmatprep.subr.mxu0 0.0
      %3883 = vmatpush2.msra.mxu0 0.0
      %3884 = vmatprep.subr.mxu0 0.0
      %3885 = vmatpush2.msra.mxu0 0.0
      %3886 = vmatprep.subr.mxu0 0.0
      %3887 = vmatpush2.msra.mxu0 0.0
      %3888 = vmatprep.subr.mxu0 0.0
      %3889 = vmatpush2.msra.mxu0 0.0
      %3890 = vmatprep.subr.mxu0 0.0
      %3891 = vmatpush2.msra.mxu0 0.0
      %3892 = vmatprep.subr.mxu0 0.0
      %3893 = vmatpush2.msra.mxu0 0.0
      %3894 = vmatprep.subr.mxu0 0.0
      %3895 = vmatpush2.msra.mxu0 0.0
      %3896 = vmatprep.subr.mxu0 0.0
      %3897 = vmatpush2.msra.mxu0 0.0
      %3898 = vmatprep.subr.mxu0 0.0
      %3899 = vmatpush2.msra.mxu0 0.0
      %3900 = vmatprep.subr.mxu0 0.0
      %3901 = vmatpush2.msra.mxu0 0.0
      %3902 = vmatprep.subr.mxu0 %v3761
      %3903 = vmatpush2.msra.mxu0 %v3760
      %3904 = vmatprep.subr.mxu0 %v3757
      %3905 = vmatpush2.msra.mxu0 %v3756
      %3906 = vmatprep.mubr.f32.mxu0 %v3769
      %3907 = vmatmul.mubr.f32.gmra.mxu0 %v3688
      %v3908 = vpop.f32.mrf.mxu0
      %v3909 = vadd.f32 %v3766, %v3908
      %v3910 = vpop.f32.mrf.mxu0
      %v3911 = vadd.f32 %v3766, %v3910
      %3912 = vdwg.mxu0
      %v3913 = vsub.f32 0.0, %v3838
      %v3914 = vsub.f32 0.0, %v3840
      %v3915 = vsub.f32 0.0, %v3909
      %v3916 = vsub.f32 0.0, %v3911
      %v3917 = vmul.f32 %v3913, 1.442695
      %v3918 = vpow.pop %v3917
      %v3919 = vmul.f32 %v3914, 1.442695
      %v3920 = vpow.pop %v3919
      %v3921 = vmul.f32 %v3915, 1.442695
      %v3922 = vpow.pop %v3921
      %v3923 = vmul.f32 %v3916, 1.442695
      %v3924 = vpow.pop %v3923
      %v3925 = vadd.f32 %v3918, 1.0
      %v3926 = vadd.f32 %v3920, 1.0
      %v3927 = vadd.f32 %v3922, 1.0
      %v3928 = vadd.f32 %v3924, 1.0
      %v3929 = vrcp.pop %v3925
      %v3930 = vmul.f32 1.0, %v3929
      %v3931 = vrcp.pop %v3926
      %v3932 = vmul.f32 1.0, %v3931
      %v3933 = vrcp.pop %v3927
      %v3934 = vmul.f32 1.0, %v3933
      %v3935 = vrcp.pop %v3928
      %v3936 = vmul.f32 1.0, %v3935
      %v3941 = vcombine.low %v3930, %v3932
      %v3942 = vcombine.low %v3934, %v3936
      %v3944 = vunpack.c.l.s4 1966171168
      %v3945 = vunpack.c.0.s8 %v3944
      %v3946 = vlaneseq
      %v3947 = vshrl.u32 %v3946, 7
      %v3948 = vsub.s32 %v3945, %v3947
      %v3949 = vrot.slane %v3941, %v3948
      %v3951 = vunpack.c.l.s4 1966171168
      %v3952 = vunpack.c.0.s8 %v3951
      %v3953 = vlaneseq
      %v3954 = vshrl.u32 %v3953, 7
      %v3955 = vsub.s32 %v3952, %v3954
      %v3956 = vrot.slane %v3942, %v3955
      %v3957 = vcombine.low %v3949, %v3956
      %v3959 = vunpack.c.l.s4 1966171168
      %v3960 = vunpack.c.0.s8 %v3959
      %v3961 = vlaneseq
      %v3962 = vshrl.u32 %v3961, 7
      %v3963 = vsub.s32 %v3960, %v3962
      %v3964 = vrot.slane %v3957, %v3963
      %v3966 = vlaneseq
      %vm3967 = vcmp.ge.s32.totalorder %v3966, 0
      %vm3968 = vcmp.lt.s32.totalorder %v3966, 512
      %vm3969 = vmand %vm3967, %vm3968
      %3970 = vst.msk [vmem:[%s354] sm:$0xf] %vm3969, %v3964
      %p3971 = scmp.lt.s32.totalorder %s21, 1
      %s3972 = scalar_select %p3971, %s21, 1
      %s3973 = smul.addr %s3972, 4
      %s3974 = scalar_lea.vmem %s10, %s3973
      // Predicated region
      $region61: #{unet_forward.1} parent=59 // pred_check
        %p3975 = pneg %p254
      $region62: #{unet_forward.1} parent=59 // pred_check_branch
        %3977 = sbr.rel (%p3975) target = $region64
      $region63: #{unet_forward.1} parent=59 // pred_region
        _
      $region64: #{unet_forward.1} parent=59 // pred_fallthru
        _
    $region60: #{unet_forward.1} parent=5 // pred_fallthru
      _
    %p3978 = scmp.le.s32.totalorder 2, %s16
    // Predicated region
    $region65: #{unet_forward.1} parent=5 // pred_check
      %p3979 = pneg %p3978
    $region66: #{unet_forward.1} parent=5 // pred_check_branch
      %3981 = sbr.rel (%p3979) target = $region68
    $region67: #{unet_forward.1} parent=5 // pred_region
      %s3982 = ssub.s32 %s16, 2
      // Predicated region
      $region69: #{unet_forward.1} parent=67 // pred_check
        %p3983 = pneg %p260
      $region70: #{unet_forward.1} parent=67 // pred_check_branch
        %3985 = sbr.rel (%p3983) target = $region72
      $region71: #{unet_forward.1} parent=67 // pred_region
        %p3986 = scmp.lt.s32.totalorder %s22, 1
        %s3987 = scalar_select %p3986, %s22, 1
        %s3988 = smul.addr %s3987, 4
        %s3989 = scalar_lea.vmem %s10, %s3988
      $region72: #{unet_forward.1} parent=67 // pred_fallthru
        _
    $region68: #{unet_forward.1} parent=5 // pred_fallthru
      _
  $region6: #{unet_forward.1} parent=0 // loop_footer
    %s20 = sadd.s32 1, %s16
  $region7: #{unet_forward.1} parent=0 // loop_footer_branch
    %15 = sbr.rel target = $region3
  $region8: #{unet_forward.1} parent=0 // loop_exit
    _

</llo_original>
